<compile_context>
chip_gen: v7x
topology: tpu7x:2x2x1
jax: 0.10.0
libtpu: 0.0.40
codegen_flags: <defaults>
</compile_context>

<pallas_src>
import functools

import jax
import jax.numpy as jnp
from jax import lax
from jax.experimental import pallas as pl
from jax.experimental.pallas import tpu as pltpu

CF_PAD = 128                      # backbone feature channels padded to a full lane tile
HID_PAD = 128                     # box-head hidden width padded to a full lane tile
OUT_PAD = 128                     # box-head output width padded to a full lane tile
VMEM_LIMIT = 32 * 1024 * 1024     # explicit scoped-VMEM limit (safe on v5e / v6e / v7x)


# ----------------------------- Pallas kernels ------------------------------

def _backbone_kernel(xp_ref, w1_ref, b1_ref, w2_ref, b2_ref, out_ref,
                     col1_ref, f1pad_ref, col2_ref, *, H, W):
    """Fused (conv3x3 + ReLU) x 2 for one image with tap-fused K=9*C matmuls.

    xp_ref   : (1, H+2, W+2, Cin) f32   pre-padded NHWC image
    w1_ref   : (9*Cin, Cmid)      bf16  tap-major flattened conv1 weights
    b1_ref   : (1, Cmid)          f32
    w2_ref   : (9*Cmid, CF_PAD)   bf16  conv2 weights, out-channels zero-padded to 128
    b2_ref   : (1, CF_PAD)        f32
    out_ref  : (1, H*W, CF_PAD)   bf16  lane-dense features
    col1_ref : VMEM (H, W, 9*Cin)    bf16  stage-1 im2col patches
    f1pad_ref: VMEM (H+2, W+2, Cmid) f32   zero-halo stage-1 activations
    col2_ref : VMEM (H, W, 9*Cmid)   bf16  stage-2 im2col patches
    """
    cin = xp_ref.shape[-1]
    cmid = f1pad_ref.shape[-1]

    # ---- stage 1: in-VMEM im2col, then ONE matmul with K = 9*Cin ----
    for tap in range(9):
        dy, dx = tap // 3, tap % 3
        col1_ref[:, :, tap * cin:(tap + 1) * cin] = (
            xp_ref[0, dy:dy + H, dx:dx + W, :].astype(jnp.bfloat16))
    f1 = jnp.dot(col1_ref[...].reshape(H * W, 9 * cin), w1_ref[...],
                 preferred_element_type=jnp.float32) + b1_ref[...]
    f1 = jnp.maximum(f1, 0.0)                                      # (H*W, Cmid) f32

    # ---- zero only the 1-px halo; the interior is fully overwritten every step ----
    f1pad_ref[0:1, :, :] = jnp.zeros((1, W + 2, cmid), jnp.float32)
    f1pad_ref[H + 1:H + 2, :, :] = jnp.zeros((1, W + 2, cmid), jnp.float32)
    f1pad_ref[:, 0:1, :] = jnp.zeros((H + 2, 1, cmid), jnp.float32)
    f1pad_ref[:, W + 1:W + 2, :] = jnp.zeros((H + 2, 1, cmid), jnp.float32)
    f1pad_ref[1:H + 1, 1:W + 1, :] = f1.reshape(H, W, cmid)

    # ---- stage 2: im2col from padded VMEM activations, ONE matmul with K = 9*Cmid ----
    for tap in range(9):
        dy, dx = tap // 3, tap % 3
        col2_ref[:, :, tap * cmid:(tap + 1) * cmid] = (
            f1pad_ref[dy:dy + H, dx:dx + W, :].astype(jnp.bfloat16))
    f2 = jnp.dot(col2_ref[...].reshape(H * W, 9 * cmid), w2_ref[...],
                 preferred_element_type=jnp.float32) + b2_ref[...]
    out_ref[0] = jnp.maximum(f2, 0.0).astype(out_ref.dtype)        # lane-dense (H*W, 128)


def _roi_head_kernel(boxes_ref, feat_ref, fc1_w_ref, fc1_b_ref, fc2_w_ref, fc2_b_ref,
                     head_w_ref, head_b_ref, out_ref, *, H, W, tk):
    """ROI mean-pool (chunked mask @ features on the MXU) + fused box head, one image/step.

    boxes_ref : (1, P, 4) int32  inclusive [x0, y0, x1, y1] integer boxes
    feat_ref  : (1, H*W, CF_PAD) bf16
    fc*/head  : zero-padded 128-wide weight/bias matrices (bf16 / f32)
    out_ref   : (1, P, OUT_PAD) f32  [cls_logits | bbox_deltas | zero pad]
    """
    del H  # box coords are already clipped to the image; H not needed in-kernel
    P = boxes_ref.shape[1]
    HW = feat_ref.shape[1]
    cf = feat_ref.shape[2]

    x0 = boxes_ref[0, :, 0:1]                                      # (P, 1) int32
    y0 = boxes_ref[0, :, 1:2]
    x1 = boxes_ref[0, :, 2:3]
    y1 = boxes_ref[0, :, 3:4]
    area = ((x1 - x0 + 1) * (y1 - y0 + 1)).astype(jnp.float32)     # (P, 1)
    inv_area = pl.reciprocal(area, approx=True)                    # EUP, not VPU divide

    pow2 = (W & (W - 1)) == 0
    shift = W.bit_length() - 1

    # Chunk the H*W reduction axis; build rows/cols once per chunk at (1, tk) and let the
    # compares broadcast against the (P, 1) box coords.
    pooled = jnp.zeros((P, cf), jnp.float32)
    for c in range(HW // tk):
        base = c * tk
        idx = base + lax.broadcasted_iota(jnp.int32, (1, tk), 1)   # (1, tk)
        if pow2:
            rows = idx >> shift
            cols = idx & (W - 1)
        else:
            rows = idx // W
            cols = idx % W
        inside = (rows >= y0) & (rows <= y1) & (cols >= x0) & (cols <= x1)   # (P, tk)
        mask = inside.astype(jnp.bfloat16)                         # 0/1 exact in bf16
        feat_chunk = feat_ref[0, base:base + tk, :]                # (tk, cf) bf16
        pooled = pooled + jnp.dot(mask, feat_chunk,
                                  preferred_element_type=jnp.float32)
    pooled = pooled * inv_area                                     # (P, cf)

    h = jnp.maximum(jnp.dot(pooled.astype(jnp.bfloat16), fc1_w_ref[...],
                            preferred_element_type=jnp.float32) + fc1_b_ref[...], 0.0)
    h = jnp.maximum(jnp.dot(h.astype(jnp.bfloat16), fc2_w_ref[...],
                            preferred_element_type=jnp.float32) + fc2_b_ref[...], 0.0)
    out_ref[0] = (jnp.dot(h.astype(jnp.bfloat16), head_w_ref[...],
                          preferred_element_type=jnp.float32) + head_b_ref[...])


# ----------------------------- JAX wrappers ---------------------------------

def backbone_forward(x_nhwc, params):
    """x:(N,H,W,Cin) f32 -> features:(N, H*W, CF_PAD) bf16 (one fused pallas_call)."""
    N, H, W, cin = x_nhwc.shape
    cmid = params["conv1_w"].shape[0]
    cfeat = params["conv2_w"].shape[0]
    xp = jnp.pad(x_nhwc, ((0, 0), (1, 1), (1, 1), (0, 0)))
    # PyTorch (Cout, Cin, 3, 3) -> tap-major flattened (9*Cin, Cout); tap = ky*3 + kx.
    w1 = (jnp.transpose(params["conv1_w"], (2, 3, 1, 0))
          .reshape(9 * cin, cmid).astype(jnp.bfloat16))
    w2 = jnp.transpose(params["conv2_w"], (2, 3, 1, 0)).reshape(9 * cmid, cfeat)
    w2 = jnp.pad(w2, ((0, 0), (0, CF_PAD - cfeat))).astype(jnp.bfloat16)
    b1 = params["conv1_b"].reshape(1, cmid)
    b2 = jnp.pad(params["conv2_b"], (0, CF_PAD - cfeat)).reshape(1, CF_PAD)
    # TODO(synk): at realistic H, W add a second (row-strip, halo'd) grid axis so each image
    # is several pipeline steps (hides image DMA, fits v7x's 32 MiB scoped VMEM).
    return pl.pallas_call(
        functools.partial(_backbone_kernel, H=H, W=W),
        out_shape=jax.ShapeDtypeStruct((N, H * W, CF_PAD), jnp.bfloat16),
        grid=(N,),
        in_specs=[
            pl.BlockSpec((1, H + 2, W + 2, cin), lambda i: (i, 0, 0, 0)),
            pl.BlockSpec((9 * cin, cmid), lambda i: (0, 0)),
            pl.BlockSpec((1, cmid), lambda i: (0, 0)),
            pl.BlockSpec((9 * cmid, CF_PAD), lambda i: (0, 0)),
            pl.BlockSpec((1, CF_PAD), lambda i: (0, 0)),
        ],
        out_specs=pl.BlockSpec((1, H * W, CF_PAD), lambda i: (i, 0, 0)),
        scratch_shapes=[
            pltpu.VMEM((H, W, 9 * cin), jnp.bfloat16),
            pltpu.VMEM((H + 2, W + 2, cmid), jnp.float32),
            pltpu.VMEM((H, W, 9 * cmid), jnp.bfloat16),
        ],
        compiler_params=pltpu.CompilerParams(
            dimension_semantics=("parallel",), vmem_limit_bytes=VMEM_LIMIT),
    )(xp, w1, b1, w2, b2)


def roi_heads_forward(features, boxes_per_image, params, H, W):
    """features:(N,H*W,CF_PAD) bf16, boxes:(N,P,4) int32 -> (N, P, num_classes+4) f32."""
    N, HW, cf = features.shape
    P = boxes_per_image.shape[1]
    cfeat = params["fc1_w"].shape[0]
    hidden = params["fc1_w"].shape[1]
    num_classes = params["cls_w"].shape[1]
    n_out = num_classes + 4

    # Zero-pad every head matrix to 128-wide so all matmuls / stores are lane-dense.
    fc1_w = jnp.pad(params["fc1_w"],
                    ((0, CF_PAD - cfeat), (0, HID_PAD - hidden))).astype(jnp.bfloat16)
    fc1_b = jnp.pad(params["fc1_b"], (0, HID_PAD - hidden)).reshape(1, HID_PAD)
    fc2_w = jnp.pad(params["fc2_w"],
                    ((0, HID_PAD - hidden), (0, HID_PAD - hidden))).astype(jnp.bfloat16)
    fc2_b = jnp.pad(params["fc2_b"], (0, HID_PAD - hidden)).reshape(1, HID_PAD)
    head_w = jnp.concatenate([params["cls_w"], params["bbox_w"]], axis=1)       # (hidden, n_out)
    head_w = jnp.pad(head_w,
                     ((0, HID_PAD - hidden), (0, OUT_PAD - n_out))).astype(jnp.bfloat16)
    head_b = jnp.concatenate([params["cls_b"], params["bbox_b"]], axis=0)
    head_b = jnp.pad(head_b, (0, OUT_PAD - n_out)).reshape(1, OUT_PAD)

    tk = 128 if HW % 128 == 0 else HW        # 128-aligned chunks of the H*W reduction axis
    out = pl.pallas_call(
        functools.partial(_roi_head_kernel, H=H, W=W, tk=tk),
        out_shape=jax.ShapeDtypeStruct((N, P, OUT_PAD), jnp.float32),
        grid=(N,),
        in_specs=[
            pl.BlockSpec((1, P, 4), lambda i: (i, 0, 0)),
            pl.BlockSpec((1, HW, cf), lambda i: (i, 0, 0)),
            pl.BlockSpec((CF_PAD, HID_PAD), lambda i: (0, 0)),
            pl.BlockSpec((1, HID_PAD), lambda i: (0, 0)),
            pl.BlockSpec((HID_PAD, HID_PAD), lambda i: (0, 0)),
            pl.BlockSpec((1, HID_PAD), lambda i: (0, 0)),
            pl.BlockSpec((HID_PAD, OUT_PAD), lambda i: (0, 0)),
            pl.BlockSpec((1, OUT_PAD), lambda i: (0, 0)),
        ],
        out_specs=pl.BlockSpec((1, P, OUT_PAD), lambda i: (i, 0, 0)),
        compiler_params=pltpu.CompilerParams(
            dimension_semantics=("parallel",), vmem_limit_bytes=VMEM_LIMIT),
    )(boxes_per_image, features, fc1_w, fc1_b, fc2_w, fc2_b, head_w, head_b)
    return out[:, :, :n_out]                 # drop the lane padding in the wrapper


def make_anchors(num_images, H, W, stride=4, size=6):
    """Deterministic anchor generator ("RPN"): one box per stride-4 grid cell."""
    ys, xs = jnp.meshgrid(jnp.arange(stride // 2, H, stride),
                          jnp.arange(stride // 2, W, stride), indexing="ij")
    cy = ys.reshape(-1)
    cx = xs.reshape(-1)
    half = size // 2
    x0 = jnp.clip(cx - half, 0, W - 1)
    y0 = jnp.clip(cy - half, 0, H - 1)
    x1 = jnp.clip(cx + half, 0, W - 1)
    y1 = jnp.clip(cy + half, 0, H - 1)
    boxes = jnp.stack([x0, y0, x1, y1], axis=1).astype(jnp.int32)        # (A, 4)
    A = boxes.shape[0]
    boxes_per_image = jnp.broadcast_to(boxes[None], (num_images, A, 4))  # (N, A, 4)
    batch_idx = jnp.repeat(jnp.arange(num_images, dtype=jnp.int32), A)   # (N*A,)
    return batch_idx, boxes_per_image


def init_params(key, c_in=4, c_mid=8, c_feat=8, hidden=32, num_classes=5):
    ks = jax.random.split(key, 6)

    def winit(k, shape, fan_in):
        return jax.random.normal(k, shape, jnp.float32) / jnp.sqrt(float(fan_in))

    return {
        "conv1_w": winit(ks[0], (c_mid, c_in, 3, 3), c_in * 9),
        "conv1_b": jnp.zeros((c_mid,), jnp.float32),
        "conv2_w": winit(ks[1], (c_feat, c_mid, 3, 3), c_mid * 9),
        "conv2_b": jnp.zeros((c_feat,), jnp.float32),
        "fc1_w": winit(ks[2], (c_feat, hidden), c_feat),
        "fc1_b": jnp.zeros((hidden,), jnp.float32),
        "fc2_w": winit(ks[3], (hidden, hidden), hidden),
        "fc2_b": jnp.zeros((hidden,), jnp.float32),
        "cls_w": winit(ks[4], (hidden, num_classes), hidden),
        "cls_b": jnp.zeros((num_classes,), jnp.float32),
        "bbox_w": winit(ks[5], (hidden, 4), hidden),
        "bbox_b": jnp.zeros((4,), jnp.float32),
    }


def generalized_rcnn_forward(params, images, targets=None, training=False):
    """Inference path of GeneralizedRCNN.forward (eval mode -> returns detections)."""
    if training and targets is None:
        raise ValueError("In training mode, targets should be passed")
    # to_image_list: inputs are already uniformly sized & batched (NCHW).
    x = jnp.transpose(images, (0, 2, 3, 1))                     # NCHW -> NHWC (internal)
    N, H, W, _ = x.shape

    # backbone: fused two-stage conv+ReLU (single Pallas kernel, bf16 MXU matmuls)
    features = backbone_forward(x, params)                      # (N, H*W, CF_PAD) bf16

    # rpn (anchor generator) -> proposals, grouped per image
    batch_idx, proposals = make_anchors(N, H, W)                # (N*A,), (N, A, 4)

    # roi_heads: chunked ROI mean-pool + fused box head (single Pallas kernel)
    head_out = roi_heads_forward(features, proposals, params, H, W)   # (N, A, C+4)
    num_classes = params["cls_w"].shape[1]
    head_out = head_out.reshape(-1, head_out.shape[-1])         # (N*A, C+4)
    cls_logits = head_out[:, :num_classes]
    bbox_deltas = head_out[:, num_classes:]

    # post-processing glue (small, not the hot path)
    probs = jax.nn.softmax(cls_logits, axis=-1)
    scores = jnp.max(probs, axis=-1)
    labels = jnp.argmax(probs, axis=-1)
    # TODO(synk): torchvision applies a box-coder (dx*w+cx, exp(dw)*h, ...) + per-class NMS;
    # here deltas are added to corners directly.
    boxes = proposals.reshape(-1, 4).astype(jnp.float32) + bbox_deltas

    if training:
        # TODO(synk): RPN/detector losses (matcher, fg/bg sampler, smooth-L1) not implemented.
        return {}
    # TODO(synk): add_depth=True dual-backbone path not implemented.
    return {"batch_idx": batch_idx, "boxes": boxes, "scores": scores, "labels": labels}


if __name__ == "__main__":
    key = jax.random.PRNGKey(0)
    pkey, xkey = jax.random.split(key)
    params = init_params(pkey)
    images = jax.random.normal(xkey, (2, 4, 16, 16), jnp.float32)   # NCHW, PyTorch-style
    rcnn_eval = jax.jit(functools.partial(generalized_rcnn_forward, training=False))
    result = rcnn_eval(params, images)
    jax.tree_util.tree_map(jax.block_until_ready, result)
    assert result["boxes"].shape == (32, 4)
    assert result["scores"].shape == (32,)
    assert result["labels"].shape == (32,)
    print("KERNEL_OK")
</pallas_src>

<mosaic_0001>
module attributes {stable_mosaic.version = 11 : i64} {
  func.func @_backbone_kernel(%arg0: i32, %arg1: memref<1x18x18x4xf32, #tpu.memory_space<vmem>>, %arg2: memref<36x8xbf16, #tpu.memory_space<vmem>>, %arg3: memref<1x8xf32, #tpu.memory_space<vmem>>, %arg4: memref<72x128xbf16, #tpu.memory_space<vmem>>, %arg5: memref<1x128xf32, #tpu.memory_space<vmem>>, %arg6: memref<1x256x128xbf16, #tpu.memory_space<vmem>>, %arg7: memref<16x16x36xbf16, #tpu.memory_space<vmem>>, %arg8: memref<18x18x8xf32, #tpu.memory_space<vmem>>, %arg9: memref<16x16x72xbf16, #tpu.memory_space<vmem>>) attributes {dimension_semantics = [#tpu.dimension_semantics<parallel>], iteration_bounds = array<i64: 2>, scalar_prefetch = 0 : i64, scratch_operands = 3 : i64, tpu.core_type = #tpu.core_type<tc>, window_params = [{transform_indices = @transform_0, window_bounds = array<i64: 1, 18, 18, 4>}, {pipeline_mode = #tpu.pipeline_mode<synchronous>, transform_indices = @transform_1, window_bounds = array<i64: 36, 8>}, {pipeline_mode = #tpu.pipeline_mode<synchronous>, transform_indices = @transform_2, window_bounds = array<i64: 1, 8>}, {pipeline_mode = #tpu.pipeline_mode<synchronous>, transform_indices = @transform_3, window_bounds = array<i64: 72, 128>}, {pipeline_mode = #tpu.pipeline_mode<synchronous>, transform_indices = @transform_4, window_bounds = array<i64: 1, 128>}, {transform_indices = @transform_5, window_bounds = array<i64: 1, 256, 128>}]} {
    %c0 = arith.constant 0 : index
    %c0_0 = arith.constant 0 : index
    %c0_1 = arith.constant 0 : index
    %c0_2 = arith.constant 0 : index
    %0 = vector.load %arg1[%c0, %c0_0, %c0_1, %c0_2] : memref<1x18x18x4xf32, #tpu.memory_space<vmem>>, vector<1x16x16x4xf32>
    %1 = vector.shape_cast %0 : vector<1x16x16x4xf32> to vector<16x16x4xf32>
    %2 = arith.truncf %1 : vector<16x16x4xf32> to vector<16x16x4xbf16>
    %c0_3 = arith.constant 0 : index
    %c0_4 = arith.constant 0 : index
    %c0_5 = arith.constant 0 : index
    %3 = vector.load %arg7[%c0_3, %c0_4, %c0_5] : memref<16x16x36xbf16, #tpu.memory_space<vmem>>, vector<16x16x4xbf16>
    tpu.vector_store %arg7[%c0_3, %c0_4, %c0_5], %2 {strides = array<i32>} : memref<16x16x36xbf16, #tpu.memory_space<vmem>>, vector<16x16x4xbf16>,
    %c0_6 = arith.constant 0 : index
    %c0_7 = arith.constant 0 : index
    %c1 = arith.constant 1 : index
    %c0_8 = arith.constant 0 : index
    %4 = vector.load %arg1[%c0_6, %c0_7, %c1, %c0_8] : memref<1x18x18x4xf32, #tpu.memory_space<vmem>>, vector<1x16x16x4xf32>
    %5 = vector.shape_cast %4 : vector<1x16x16x4xf32> to vector<16x16x4xf32>
    %6 = arith.truncf %5 : vector<16x16x4xf32> to vector<16x16x4xbf16>
    %c0_9 = arith.constant 0 : index
    %c0_10 = arith.constant 0 : index
    %c4 = arith.constant 4 : index
    %7 = vector.load %arg7[%c0_9, %c0_10, %c4] : memref<16x16x36xbf16, #tpu.memory_space<vmem>>, vector<16x16x4xbf16>
    tpu.vector_store %arg7[%c0_9, %c0_10, %c4], %6 {strides = array<i32>} : memref<16x16x36xbf16, #tpu.memory_space<vmem>>, vector<16x16x4xbf16>,
    %c0_11 = arith.constant 0 : index
    %c0_12 = arith.constant 0 : index
    %c2 = arith.constant 2 : index
    %c0_13 = arith.constant 0 : index
    %8 = vector.load %arg1[%c0_11, %c0_12, %c2, %c0_13] : memref<1x18x18x4xf32, #tpu.memory_space<vmem>>, vector<1x16x16x4xf32>
    %9 = vector.shape_cast %8 : vector<1x16x16x4xf32> to vector<16x16x4xf32>
    %10 = arith.truncf %9 : vector<16x16x4xf32> to vector<16x16x4xbf16>
    %c0_14 = arith.constant 0 : index
    %c0_15 = arith.constant 0 : index
    %c8 = arith.constant 8 : index
    %11 = vector.load %arg7[%c0_14, %c0_15, %c8] : memref<16x16x36xbf16, #tpu.memory_space<vmem>>, vector<16x16x4xbf16>
    tpu.vector_store %arg7[%c0_14, %c0_15, %c8], %10 {strides = array<i32>} : memref<16x16x36xbf16, #tpu.memory_space<vmem>>, vector<16x16x4xbf16>,
    %c0_16 = arith.constant 0 : index
    %c1_17 = arith.constant 1 : index
    %c0_18 = arith.constant 0 : index
    %c0_19 = arith.constant 0 : index
    %12 = vector.load %arg1[%c0_16, %c1_17, %c0_18, %c0_19] : memref<1x18x18x4xf32, #tpu.memory_space<vmem>>, vector<1x16x16x4xf32>
    %13 = vector.shape_cast %12 : vector<1x16x16x4xf32> to vector<16x16x4xf32>
    %14 = arith.truncf %13 : vector<16x16x4xf32> to vector<16x16x4xbf16>
    %c0_20 = arith.constant 0 : index
    %c0_21 = arith.constant 0 : index
    %c12 = arith.constant 12 : index
    %15 = vector.load %arg7[%c0_20, %c0_21, %c12] : memref<16x16x36xbf16, #tpu.memory_space<vmem>>, vector<16x16x4xbf16>
    tpu.vector_store %arg7[%c0_20, %c0_21, %c12], %14 {strides = array<i32>} : memref<16x16x36xbf16, #tpu.memory_space<vmem>>, vector<16x16x4xbf16>,
    %c0_22 = arith.constant 0 : index
    %c1_23 = arith.constant 1 : index
    %c1_24 = arith.constant 1 : index
    %c0_25 = arith.constant 0 : index
    %16 = vector.load %arg1[%c0_22, %c1_23, %c1_24, %c0_25] : memref<1x18x18x4xf32, #tpu.memory_space<vmem>>, vector<1x16x16x4xf32>
    %17 = vector.shape_cast %16 : vector<1x16x16x4xf32> to vector<16x16x4xf32>
    %18 = arith.truncf %17 : vector<16x16x4xf32> to vector<16x16x4xbf16>
    %c0_26 = arith.constant 0 : index
    %c0_27 = arith.constant 0 : index
    %c16 = arith.constant 16 : index
    %19 = vector.load %arg7[%c0_26, %c0_27, %c16] : memref<16x16x36xbf16, #tpu.memory_space<vmem>>, vector<16x16x4xbf16>
    tpu.vector_store %arg7[%c0_26, %c0_27, %c16], %18 {strides = array<i32>} : memref<16x16x36xbf16, #tpu.memory_space<vmem>>, vector<16x16x4xbf16>,
    %c0_28 = arith.constant 0 : index
    %c1_29 = arith.constant 1 : index
    %c2_30 = arith.constant 2 : index
    %c0_31 = arith.constant 0 : index
    %20 = vector.load %arg1[%c0_28, %c1_29, %c2_30, %c0_31] : memref<1x18x18x4xf32, #tpu.memory_space<vmem>>, vector<1x16x16x4xf32>
    %21 = vector.shape_cast %20 : vector<1x16x16x4xf32> to vector<16x16x4xf32>
    %22 = arith.truncf %21 : vector<16x16x4xf32> to vector<16x16x4xbf16>
    %c0_32 = arith.constant 0 : index
    %c0_33 = arith.constant 0 : index
    %c20 = arith.constant 20 : index
    %23 = vector.load %arg7[%c0_32, %c0_33, %c20] : memref<16x16x36xbf16, #tpu.memory_space<vmem>>, vector<16x16x4xbf16>
    tpu.vector_store %arg7[%c0_32, %c0_33, %c20], %22 {strides = array<i32>} : memref<16x16x36xbf16, #tpu.memory_space<vmem>>, vector<16x16x4xbf16>,
    %c0_34 = arith.constant 0 : index
    %c2_35 = arith.constant 2 : index
    %c0_36 = arith.constant 0 : index
    %c0_37 = arith.constant 0 : index
    %24 = vector.load %arg1[%c0_34, %c2_35, %c0_36, %c0_37] : memref<1x18x18x4xf32, #tpu.memory_space<vmem>>, vector<1x16x16x4xf32>
    %25 = vector.shape_cast %24 : vector<1x16x16x4xf32> to vector<16x16x4xf32>
    %26 = arith.truncf %25 : vector<16x16x4xf32> to vector<16x16x4xbf16>
    %c0_38 = arith.constant 0 : index
    %c0_39 = arith.constant 0 : index
    %c24 = arith.constant 24 : index
    %27 = vector.load %arg7[%c0_38, %c0_39, %c24] : memref<16x16x36xbf16, #tpu.memory_space<vmem>>, vector<16x16x4xbf16>
    tpu.vector_store %arg7[%c0_38, %c0_39, %c24], %26 {strides = array<i32>} : memref<16x16x36xbf16, #tpu.memory_space<vmem>>, vector<16x16x4xbf16>,
    %c0_40 = arith.constant 0 : index
    %c2_41 = arith.constant 2 : index
    %c1_42 = arith.constant 1 : index
    %c0_43 = arith.constant 0 : index
    %28 = vector.load %arg1[%c0_40, %c2_41, %c1_42, %c0_43] : memref<1x18x18x4xf32, #tpu.memory_space<vmem>>, vector<1x16x16x4xf32>
    %29 = vector.shape_cast %28 : vector<1x16x16x4xf32> to vector<16x16x4xf32>
    %30 = arith.truncf %29 : vector<16x16x4xf32> to vector<16x16x4xbf16>
    %c0_44 = arith.constant 0 : index
    %c0_45 = arith.constant 0 : index
    %c28 = arith.constant 28 : index
    %31 = vector.load %arg7[%c0_44, %c0_45, %c28] : memref<16x16x36xbf16, #tpu.memory_space<vmem>>, vector<16x16x4xbf16>
    tpu.vector_store %arg7[%c0_44, %c0_45, %c28], %30 {strides = array<i32>} : memref<16x16x36xbf16, #tpu.memory_space<vmem>>, vector<16x16x4xbf16>,
    %c0_46 = arith.constant 0 : index
    %c2_47 = arith.constant 2 : index
    %c2_48 = arith.constant 2 : index
    %c0_49 = arith.constant 0 : index
    %32 = vector.load %arg1[%c0_46, %c2_47, %c2_48, %c0_49] : memref<1x18x18x4xf32, #tpu.memory_space<vmem>>, vector<1x16x16x4xf32>
    %33 = vector.shape_cast %32 : vector<1x16x16x4xf32> to vector<16x16x4xf32>
    %34 = arith.truncf %33 : vector<16x16x4xf32> to vector<16x16x4xbf16>
    %c0_50 = arith.constant 0 : index
    %c0_51 = arith.constant 0 : index
    %c32 = arith.constant 32 : index
    %35 = vector.load %arg7[%c0_50, %c0_51, %c32] : memref<16x16x36xbf16, #tpu.memory_space<vmem>>, vector<16x16x4xbf16>
    tpu.vector_store %arg7[%c0_50, %c0_51, %c32], %34 {strides = array<i32>} : memref<16x16x36xbf16, #tpu.memory_space<vmem>>, vector<16x16x4xbf16>,
    %c0_52 = arith.constant 0 : index
    %c0_53 = arith.constant 0 : index
    %c0_54 = arith.constant 0 : index
    %36 = vector.load %arg7[%c0_52, %c0_53, %c0_54] : memref<16x16x36xbf16, #tpu.memory_space<vmem>>, vector<16x16x36xbf16>
    %37 = vector.shape_cast %36 : vector<16x16x36xbf16> to vector<256x36xbf16>
    %c0_55 = arith.constant 0 : index
    %c0_56 = arith.constant 0 : index
    %38 = vector.load %arg2[%c0_55, %c0_56] : memref<36x8xbf16, #tpu.memory_space<vmem>>, vector<36x8xbf16>
    %cst = arith.constant dense<0.000000e+00> : vector<256x8xf32>
    %39 = tpu.matmul %37, %38, %cst {dimension_numbers = #tpu.dot_dimension_numbers<[1], [0], [0], [1], [0, 0, 1, 1], [], []>} : vector<256x36xbf16>, vector<36x8xbf16>, vector<256x8xf32> -> vector<256x8xf32>
    %c0_57 = arith.constant 0 : index
    %c0_58 = arith.constant 0 : index
    %40 = vector.load %arg3[%c0_57, %c0_58] : memref<1x8xf32, #tpu.memory_space<vmem>>, vector<1x8xf32>
    %41 = vector.broadcast %40 : vector<1x8xf32> to vector<256x8xf32>
    %42 = arith.addf %39, %41 : vector<256x8xf32>
    %cst_59 = arith.constant 0.000000e+00 : f32
    %43 = vector.broadcast %cst_59 : f32 to vector<256x8xf32>
    %44 = arith.maximumf %42, %43 : vector<256x8xf32>
    %cst_60 = arith.constant 0.000000e+00 : f32
    %45 = vector.broadcast %cst_60 : f32 to vector<1x18x8xf32>
    %c0_61 = arith.constant 0 : index
    %c0_62 = arith.constant 0 : index
    %c0_63 = arith.constant 0 : index
    %46 = vector.load %arg8[%c0_61, %c0_62, %c0_63] : memref<18x18x8xf32, #tpu.memory_space<vmem>>, vector<1x18x8xf32>
    tpu.vector_store %arg8[%c0_61, %c0_62, %c0_63], %45 {strides = array<i32>} : memref<18x18x8xf32, #tpu.memory_space<vmem>>, vector<1x18x8xf32>,
    %cst_64 = arith.constant 0.000000e+00 : f32
    %47 = vector.broadcast %cst_64 : f32 to vector<1x18x8xf32>
    %c17 = arith.constant 17 : index
    %c0_65 = arith.constant 0 : index
    %c0_66 = arith.constant 0 : index
    %48 = vector.load %arg8[%c17, %c0_65, %c0_66] : memref<18x18x8xf32, #tpu.memory_space<vmem>>, vector<1x18x8xf32>
    tpu.vector_store %arg8[%c17, %c0_65, %c0_66], %47 {strides = array<i32>} : memref<18x18x8xf32, #tpu.memory_space<vmem>>, vector<1x18x8xf32>,
    %cst_67 = arith.constant 0.000000e+00 : f32
    %49 = vector.broadcast %cst_67 : f32 to vector<18x1x8xf32>
    %c0_68 = arith.constant 0 : index
    %c0_69 = arith.constant 0 : index
    %c0_70 = arith.constant 0 : index
    %50 = vector.load %arg8[%c0_68, %c0_69, %c0_70] : memref<18x18x8xf32, #tpu.memory_space<vmem>>, vector<18x1x8xf32>
    tpu.vector_store %arg8[%c0_68, %c0_69, %c0_70], %49 {strides = array<i32>} : memref<18x18x8xf32, #tpu.memory_space<vmem>>, vector<18x1x8xf32>,
    %cst_71 = arith.constant 0.000000e+00 : f32
    %51 = vector.broadcast %cst_71 : f32 to vector<18x1x8xf32>
    %c0_72 = arith.constant 0 : index
    %c17_73 = arith.constant 17 : index
    %c0_74 = arith.constant 0 : index
    %52 = vector.load %arg8[%c0_72, %c17_73, %c0_74] : memref<18x18x8xf32, #tpu.memory_space<vmem>>, vector<18x1x8xf32>
    tpu.vector_store %arg8[%c0_72, %c17_73, %c0_74], %51 {strides = array<i32>} : memref<18x18x8xf32, #tpu.memory_space<vmem>>, vector<18x1x8xf32>,
    %53 = vector.shape_cast %44 : vector<256x8xf32> to vector<16x16x8xf32>
    %c1_75 = arith.constant 1 : index
    %c1_76 = arith.constant 1 : index
    %c0_77 = arith.constant 0 : index
    %54 = vector.load %arg8[%c1_75, %c1_76, %c0_77] : memref<18x18x8xf32, #tpu.memory_space<vmem>>, vector<16x16x8xf32>
    tpu.vector_store %arg8[%c1_75, %c1_76, %c0_77], %53 {strides = array<i32>} : memref<18x18x8xf32, #tpu.memory_space<vmem>>, vector<16x16x8xf32>,
    %c0_78 = arith.constant 0 : index
    %c0_79 = arith.constant 0 : index
    %c0_80 = arith.constant 0 : index
    %55 = vector.load %arg8[%c0_78, %c0_79, %c0_80] : memref<18x18x8xf32, #tpu.memory_space<vmem>>, vector<16x16x8xf32>
    %56 = arith.truncf %55 : vector<16x16x8xf32> to vector<16x16x8xbf16>
    %c0_81 = arith.constant 0 : index
    %c0_82 = arith.constant 0 : index
    %c0_83 = arith.constant 0 : index
    %57 = vector.load %arg9[%c0_81, %c0_82, %c0_83] : memref<16x16x72xbf16, #tpu.memory_space<vmem>>, vector<16x16x8xbf16>
    tpu.vector_store %arg9[%c0_81, %c0_82, %c0_83], %56 {strides = array<i32>} : memref<16x16x72xbf16, #tpu.memory_space<vmem>>, vector<16x16x8xbf16>,
    %c0_84 = arith.constant 0 : index
    %c1_85 = arith.constant 1 : index
    %c0_86 = arith.constant 0 : index
    %58 = vector.load %arg8[%c0_84, %c1_85, %c0_86] : memref<18x18x8xf32, #tpu.memory_space<vmem>>, vector<16x16x8xf32>
    %59 = arith.truncf %58 : vector<16x16x8xf32> to vector<16x16x8xbf16>
    %c0_87 = arith.constant 0 : index
    %c0_88 = arith.constant 0 : index
    %c8_89 = arith.constant 8 : index
    %60 = vector.load %arg9[%c0_87, %c0_88, %c8_89] : memref<16x16x72xbf16, #tpu.memory_space<vmem>>, vector<16x16x8xbf16>
    tpu.vector_store %arg9[%c0_87, %c0_88, %c8_89], %59 {strides = array<i32>} : memref<16x16x72xbf16, #tpu.memory_space<vmem>>, vector<16x16x8xbf16>,
    %c0_90 = arith.constant 0 : index
    %c2_91 = arith.constant 2 : index
    %c0_92 = arith.constant 0 : index
    %61 = vector.load %arg8[%c0_90, %c2_91, %c0_92] : memref<18x18x8xf32, #tpu.memory_space<vmem>>, vector<16x16x8xf32>
    %62 = arith.truncf %61 : vector<16x16x8xf32> to vector<16x16x8xbf16>
    %c0_93 = arith.constant 0 : index
    %c0_94 = arith.constant 0 : index
    %c16_95 = arith.constant 16 : index
    %63 = vector.load %arg9[%c0_93, %c0_94, %c16_95] : memref<16x16x72xbf16, #tpu.memory_space<vmem>>, vector<16x16x8xbf16>
    tpu.vector_store %arg9[%c0_93, %c0_94, %c16_95], %62 {strides = array<i32>} : memref<16x16x72xbf16, #tpu.memory_space<vmem>>, vector<16x16x8xbf16>,
    %c1_96 = arith.constant 1 : index
    %c0_97 = arith.constant 0 : index
    %c0_98 = arith.constant 0 : index
    %64 = vector.load %arg8[%c1_96, %c0_97, %c0_98] : memref<18x18x8xf32, #tpu.memory_space<vmem>>, vector<16x16x8xf32>
    %65 = arith.truncf %64 : vector<16x16x8xf32> to vector<16x16x8xbf16>
    %c0_99 = arith.constant 0 : index
    %c0_100 = arith.constant 0 : index
    %c24_101 = arith.constant 24 : index
    %66 = vector.load %arg9[%c0_99, %c0_100, %c24_101] : memref<16x16x72xbf16, #tpu.memory_space<vmem>>, vector<16x16x8xbf16>
    tpu.vector_store %arg9[%c0_99, %c0_100, %c24_101], %65 {strides = array<i32>} : memref<16x16x72xbf16, #tpu.memory_space<vmem>>, vector<16x16x8xbf16>,
    %c1_102 = arith.constant 1 : index
    %c1_103 = arith.constant 1 : index
    %c0_104 = arith.constant 0 : index
    %67 = vector.load %arg8[%c1_102, %c1_103, %c0_104] : memref<18x18x8xf32, #tpu.memory_space<vmem>>, vector<16x16x8xf32>
    %68 = arith.truncf %67 : vector<16x16x8xf32> to vector<16x16x8xbf16>
    %c0_105 = arith.constant 0 : index
    %c0_106 = arith.constant 0 : index
    %c32_107 = arith.constant 32 : index
    %69 = vector.load %arg9[%c0_105, %c0_106, %c32_107] : memref<16x16x72xbf16, #tpu.memory_space<vmem>>, vector<16x16x8xbf16>
    tpu.vector_store %arg9[%c0_105, %c0_106, %c32_107], %68 {strides = array<i32>} : memref<16x16x72xbf16, #tpu.memory_space<vmem>>, vector<16x16x8xbf16>,
    %c1_108 = arith.constant 1 : index
    %c2_109 = arith.constant 2 : index
    %c0_110 = arith.constant 0 : index
    %70 = vector.load %arg8[%c1_108, %c2_109, %c0_110] : memref<18x18x8xf32, #tpu.memory_space<vmem>>, vector<16x16x8xf32>
    %71 = arith.truncf %70 : vector<16x16x8xf32> to vector<16x16x8xbf16>
    %c0_111 = arith.constant 0 : index
    %c0_112 = arith.constant 0 : index
    %c40 = arith.constant 40 : index
    %72 = vector.load %arg9[%c0_111, %c0_112, %c40] : memref<16x16x72xbf16, #tpu.memory_space<vmem>>, vector<16x16x8xbf16>
    tpu.vector_store %arg9[%c0_111, %c0_112, %c40], %71 {strides = array<i32>} : memref<16x16x72xbf16, #tpu.memory_space<vmem>>, vector<16x16x8xbf16>,
    %c2_113 = arith.constant 2 : index
    %c0_114 = arith.constant 0 : index
    %c0_115 = arith.constant 0 : index
    %73 = vector.load %arg8[%c2_113, %c0_114, %c0_115] : memref<18x18x8xf32, #tpu.memory_space<vmem>>, vector<16x16x8xf32>
    %74 = arith.truncf %73 : vector<16x16x8xf32> to vector<16x16x8xbf16>
    %c0_116 = arith.constant 0 : index
    %c0_117 = arith.constant 0 : index
    %c48 = arith.constant 48 : index
    %75 = vector.load %arg9[%c0_116, %c0_117, %c48] : memref<16x16x72xbf16, #tpu.memory_space<vmem>>, vector<16x16x8xbf16>
    tpu.vector_store %arg9[%c0_116, %c0_117, %c48], %74 {strides = array<i32>} : memref<16x16x72xbf16, #tpu.memory_space<vmem>>, vector<16x16x8xbf16>,
    %c2_118 = arith.constant 2 : index
    %c1_119 = arith.constant 1 : index
    %c0_120 = arith.constant 0 : index
    %76 = vector.load %arg8[%c2_118, %c1_119, %c0_120] : memref<18x18x8xf32, #tpu.memory_space<vmem>>, vector<16x16x8xf32>
    %77 = arith.truncf %76 : vector<16x16x8xf32> to vector<16x16x8xbf16>
    %c0_121 = arith.constant 0 : index
    %c0_122 = arith.constant 0 : index
    %c56 = arith.constant 56 : index
    %78 = vector.load %arg9[%c0_121, %c0_122, %c56] : memref<16x16x72xbf16, #tpu.memory_space<vmem>>, vector<16x16x8xbf16>
    tpu.vector_store %arg9[%c0_121, %c0_122, %c56], %77 {strides = array<i32>} : memref<16x16x72xbf16, #tpu.memory_space<vmem>>, vector<16x16x8xbf16>,
    %c2_123 = arith.constant 2 : index
    %c2_124 = arith.constant 2 : index
    %c0_125 = arith.constant 0 : index
    %79 = vector.load %arg8[%c2_123, %c2_124, %c0_125] : memref<18x18x8xf32, #tpu.memory_space<vmem>>, vector<16x16x8xf32>
    %80 = arith.truncf %79 : vector<16x16x8xf32> to vector<16x16x8xbf16>
    %c0_126 = arith.constant 0 : index
    %c0_127 = arith.constant 0 : index
    %c64 = arith.constant 64 : index
    %81 = vector.load %arg9[%c0_126, %c0_127, %c64] : memref<16x16x72xbf16, #tpu.memory_space<vmem>>, vector<16x16x8xbf16>
    tpu.vector_store %arg9[%c0_126, %c0_127, %c64], %80 {strides = array<i32>} : memref<16x16x72xbf16, #tpu.memory_space<vmem>>, vector<16x16x8xbf16>,
    %c0_128 = arith.constant 0 : index
    %c0_129 = arith.constant 0 : index
    %c0_130 = arith.constant 0 : index
    %82 = vector.load %arg9[%c0_128, %c0_129, %c0_130] : memref<16x16x72xbf16, #tpu.memory_space<vmem>>, vector<16x16x72xbf16>
    %83 = vector.shape_cast %82 : vector<16x16x72xbf16> to vector<256x72xbf16>
    %c0_131 = arith.constant 0 : index
    %c0_132 = arith.constant 0 : index
    %84 = vector.load %arg4[%c0_131, %c0_132] : memref<72x128xbf16, #tpu.memory_space<vmem>>, vector<72x128xbf16>
    %cst_133 = arith.constant dense<0.000000e+00> : vector<256x128xf32>
    %85 = tpu.matmul %83, %84, %cst_133 {dimension_numbers = #tpu.dot_dimension_numbers<[1], [0], [0], [1], [0, 0, 1, 1], [], []>} : vector<256x72xbf16>, vector<72x128xbf16>, vector<256x128xf32> -> vector<256x128xf32>
    %c0_134 = arith.constant 0 : index
    %c0_135 = arith.constant 0 : index
    %86 = vector.load %arg5[%c0_134, %c0_135] : memref<1x128xf32, #tpu.memory_space<vmem>>, vector<1x128xf32>
    %87 = vector.broadcast %86 : vector<1x128xf32> to vector<256x128xf32>
    %88 = arith.addf %85, %87 : vector<256x128xf32>
    %cst_136 = arith.constant 0.000000e+00 : f32
    %89 = vector.broadcast %cst_136 : f32 to vector<256x128xf32>
    %90 = arith.maximumf %88, %89 : vector<256x128xf32>
    %91 = arith.truncf %90 : vector<256x128xf32> to vector<256x128xbf16>
    %c0_137 = arith.constant 0 : index
    %c0_138 = arith.constant 0 : index
    %c0_139 = arith.constant 0 : index
    %92 = vector.load %arg6[%c0_137, %c0_138, %c0_139] : memref<1x256x128xbf16, #tpu.memory_space<vmem>>, vector<1x256x128xbf16>
    %93 = vector.shape_cast %92 : vector<1x256x128xbf16> to vector<256x128xbf16>
    %94 = vector.shape_cast %91 : vector<256x128xbf16> to vector<1x256x128xbf16>
    tpu.vector_store %arg6[%c0_137, %c0_138, %c0_139], %94 {strides = array<i32>} : memref<1x256x128xbf16, #tpu.memory_space<vmem>>, vector<1x256x128xbf16>,
    return
  }
  func.func @transform_0(%arg0: i32) -> (i32, i32, i32, i32) {
    %c0_i32 = arith.constant 0 : i32
    %c0_i32_0 = arith.constant 0 : i32
    %c0_i32_1 = arith.constant 0 : i32
    %c0_i32_2 = arith.constant 0 : i32
    return %arg0, %c0_i32, %c0_i32_0, %c0_i32_1 : i32, i32, i32, i32
  }
  func.func @transform_1(%arg0: i32) -> (i32, i32) {
    %c0_i32 = arith.constant 0 : i32
    %c0_i32_0 = arith.constant 0 : i32
    %c0_i32_1 = arith.constant 0 : i32
    return %c0_i32, %c0_i32_0 : i32, i32
  }
  func.func @transform_2(%arg0: i32) -> (i32, i32) {
    %c0_i32 = arith.constant 0 : i32
    %c0_i32_0 = arith.constant 0 : i32
    %c0_i32_1 = arith.constant 0 : i32
    return %c0_i32, %c0_i32_0 : i32, i32
  }
  func.func @transform_3(%arg0: i32) -> (i32, i32) {
    %c0_i32 = arith.constant 0 : i32
    %c0_i32_0 = arith.constant 0 : i32
    %c0_i32_1 = arith.constant 0 : i32
    return %c0_i32, %c0_i32_0 : i32, i32
  }
  func.func @transform_4(%arg0: i32) -> (i32, i32) {
    %c0_i32 = arith.constant 0 : i32
    %c0_i32_0 = arith.constant 0 : i32
    %c0_i32_1 = arith.constant 0 : i32
    return %c0_i32, %c0_i32_0 : i32, i32
  }
  func.func @transform_5(%arg0: i32) -> (i32, i32, i32) {
    %c0_i32 = arith.constant 0 : i32
    %c0_i32_0 = arith.constant 0 : i32
    %c0_i32_1 = arith.constant 0 : i32
    return %arg0, %c0_i32, %c0_i32_0 : i32, i32, i32
  }
}

module attributes {stable_mosaic.version = 11 : i64} {
  func.func @_roi_head_kernel(%arg0: i32, %arg1: memref<1x16x4xi32, #tpu.memory_space<vmem>>, %arg2: memref<1x256x128xbf16, #tpu.memory_space<vmem>>, %arg3: memref<128x128xbf16, #tpu.memory_space<vmem>>, %arg4: memref<1x128xf32, #tpu.memory_space<vmem>>, %arg5: memref<128x128xbf16, #tpu.memory_space<vmem>>, %arg6: memref<1x128xf32, #tpu.memory_space<vmem>>, %arg7: memref<128x128xbf16, #tpu.memory_space<vmem>>, %arg8: memref<1x128xf32, #tpu.memory_space<vmem>>, %arg9: memref<1x16x128xf32, #tpu.memory_space<vmem>>) attributes {dimension_semantics = [#tpu.dimension_semantics<parallel>], iteration_bounds = array<i64: 2>, scalar_prefetch = 0 : i64, scratch_operands = 0 : i64, tpu.core_type = #tpu.core_type<tc>, window_params = [{transform_indices = @transform_0, window_bounds = array<i64: 1, 16, 4>}, {transform_indices = @transform_1, window_bounds = array<i64: 1, 256, 128>}, {pipeline_mode = #tpu.pipeline_mode<synchronous>, transform_indices = @transform_2, window_bounds = array<i64: 128, 128>}, {pipeline_mode = #tpu.pipeline_mode<synchronous>, transform_indices = @transform_3, window_bounds = array<i64: 1, 128>}, {pipeline_mode = #tpu.pipeline_mode<synchronous>, transform_indices = @transform_4, window_bounds = array<i64: 128, 128>}, {pipeline_mode = #tpu.pipeline_mode<synchronous>, transform_indices = @transform_5, window_bounds = array<i64: 1, 128>}, {pipeline_mode = #tpu.pipeline_mode<synchronous>, transform_indices = @transform_6, window_bounds = array<i64: 128, 128>}, {pipeline_mode = #tpu.pipeline_mode<synchronous>, transform_indices = @transform_7, window_bounds = array<i64: 1, 128>}, {transform_indices = @transform_8, window_bounds = array<i64: 1, 16, 128>}]} {
    %c0 = arith.constant 0 : index
    %c0_0 = arith.constant 0 : index
    %c0_1 = arith.constant 0 : index
    %0 = vector.load %arg1[%c0, %c0_0, %c0_1] : memref<1x16x4xi32, #tpu.memory_space<vmem>>, vector<1x16x1xi32>
    %1 = vector.shape_cast %0 : vector<1x16x1xi32> to vector<16x1xi32>
    %c0_2 = arith.constant 0 : index
    %c0_3 = arith.constant 0 : index
    %c1 = arith.constant 1 : index
    %2 = vector.load %arg1[%c0_2, %c0_3, %c1] : memref<1x16x4xi32, #tpu.memory_space<vmem>>, vector<1x16x1xi32>
    %3 = vector.shape_cast %2 : vector<1x16x1xi32> to vector<16x1xi32>
    %c0_4 = arith.constant 0 : index
    %c0_5 = arith.constant 0 : index
    %c2 = arith.constant 2 : index
    %4 = vector.load %arg1[%c0_4, %c0_5, %c2] : memref<1x16x4xi32, #tpu.memory_space<vmem>>, vector<1x16x1xi32>
    %5 = vector.shape_cast %4 : vector<1x16x1xi32> to vector<16x1xi32>
    %c0_6 = arith.constant 0 : index
    %c0_7 = arith.constant 0 : index
    %c3 = arith.constant 3 : index
    %6 = vector.load %arg1[%c0_6, %c0_7, %c3] : memref<1x16x4xi32, #tpu.memory_space<vmem>>, vector<1x16x1xi32>
    %7 = vector.shape_cast %6 : vector<1x16x1xi32> to vector<16x1xi32>
    %8 = arith.subi %5, %1 : vector<16x1xi32>
    %c1_i32 = arith.constant 1 : i32
    %9 = vector.broadcast %c1_i32 : i32 to vector<16x1xi32>
    %10 = arith.addi %8, %9 : vector<16x1xi32>
    %11 = arith.subi %7, %3 : vector<16x1xi32>
    %c1_i32_8 = arith.constant 1 : i32
    %12 = vector.broadcast %c1_i32_8 : i32 to vector<16x1xi32>
    %13 = arith.addi %11, %12 : vector<16x1xi32>
    %14 = arith.muli %10, %13 : vector<16x1xi32>
    %15 = arith.sitofp %14 : vector<16x1xi32> to vector<16x1xf32>
    %16 = tpu.reciprocal %15 {approx = true} : vector<16x1xf32> -> vector<16x1xf32>
    %cst = arith.constant 0.000000e+00 : f32
    %17 = vector.broadcast %cst : f32 to vector<16x128xf32>
    %18 = tpu.iota {dimensions = array<i32: 1>} : vector<1x128xi32>
    %c0_i32 = arith.constant 0 : i32
    %19 = vector.broadcast %c0_i32 : i32 to vector<1x128xi32>
    %20 = arith.addi %19, %18 : vector<1x128xi32>
    %c4_i32 = arith.constant 4 : i32
    %21 = vector.broadcast %c4_i32 : i32 to vector<1x128xi32>
    %22 = arith.shrsi %20, %21 : vector<1x128xi32>
    %c15_i32 = arith.constant 15 : i32
    %23 = vector.broadcast %c15_i32 : i32 to vector<1x128xi32>
    %24 = arith.andi %20, %23 : vector<1x128xi32>
    %25 = vector.broadcast %22 : vector<1x128xi32> to vector<16x128xi32>
    %26 = vector.broadcast %3 : vector<16x1xi32> to vector<16x128xi32>
    %27 = arith.cmpi sge, %25, %26 : vector<16x128xi32>
    %28 = vector.broadcast %22 : vector<1x128xi32> to vector<16x128xi32>
    %29 = vector.broadcast %7 : vector<16x1xi32> to vector<16x128xi32>
    %30 = arith.cmpi sle, %28, %29 : vector<16x128xi32>
    %31 = arith.andi %27, %30 : vector<16x128xi1>
    %32 = vector.broadcast %24 : vector<1x128xi32> to vector<16x128xi32>
    %33 = vector.broadcast %1 : vector<16x1xi32> to vector<16x128xi32>
    %34 = arith.cmpi sge, %32, %33 : vector<16x128xi32>
    %35 = arith.andi %31, %34 : vector<16x128xi1>
    %36 = vector.broadcast %24 : vector<1x128xi32> to vector<16x128xi32>
    %37 = vector.broadcast %5 : vector<16x1xi32> to vector<16x128xi32>
    %38 = arith.cmpi sle, %36, %37 : vector<16x128xi32>
    %39 = arith.andi %35, %38 : vector<16x128xi1>
    %40 = arith.extui %39 : vector<16x128xi1> to vector<16x128xi32>
    %41 = arith.sitofp %40 : vector<16x128xi32> to vector<16x128xf32>
    %42 = arith.truncf %41 : vector<16x128xf32> to vector<16x128xbf16>
    %c0_9 = arith.constant 0 : index
    %c0_10 = arith.constant 0 : index
    %c0_11 = arith.constant 0 : index
    %43 = vector.load %arg2[%c0_9, %c0_10, %c0_11] : memref<1x256x128xbf16, #tpu.memory_space<vmem>>, vector<1x128x128xbf16>
    %44 = vector.shape_cast %43 : vector<1x128x128xbf16> to vector<128x128xbf16>
    %cst_12 = arith.constant dense<0.000000e+00> : vector<16x128xf32>
    %45 = tpu.matmul %42, %44, %cst_12 {dimension_numbers = #tpu.dot_dimension_numbers<[1], [0], [0], [1], [0, 0, 1, 1], [], []>} : vector<16x128xbf16>, vector<128x128xbf16>, vector<16x128xf32> -> vector<16x128xf32>
    %46 = arith.addf %17, %45 : vector<16x128xf32>
    %47 = tpu.iota {dimensions = array<i32: 1>} : vector<1x128xi32>
    %c128_i32 = arith.constant 128 : i32
    %48 = vector.broadcast %c128_i32 : i32 to vector<1x128xi32>
    %49 = arith.addi %48, %47 : vector<1x128xi32>
    %c4_i32_13 = arith.constant 4 : i32
    %50 = vector.broadcast %c4_i32_13 : i32 to vector<1x128xi32>
    %51 = arith.shrsi %49, %50 : vector<1x128xi32>
    %c15_i32_14 = arith.constant 15 : i32
    %52 = vector.broadcast %c15_i32_14 : i32 to vector<1x128xi32>
    %53 = arith.andi %49, %52 : vector<1x128xi32>
    %54 = vector.broadcast %51 : vector<1x128xi32> to vector<16x128xi32>
    %55 = vector.broadcast %3 : vector<16x1xi32> to vector<16x128xi32>
    %56 = arith.cmpi sge, %54, %55 : vector<16x128xi32>
    %57 = vector.broadcast %51 : vector<1x128xi32> to vector<16x128xi32>
    %58 = vector.broadcast %7 : vector<16x1xi32> to vector<16x128xi32>
    %59 = arith.cmpi sle, %57, %58 : vector<16x128xi32>
    %60 = arith.andi %56, %59 : vector<16x128xi1>
    %61 = vector.broadcast %53 : vector<1x128xi32> to vector<16x128xi32>
    %62 = vector.broadcast %1 : vector<16x1xi32> to vector<16x128xi32>
    %63 = arith.cmpi sge, %61, %62 : vector<16x128xi32>
    %64 = arith.andi %60, %63 : vector<16x128xi1>
    %65 = vector.broadcast %53 : vector<1x128xi32> to vector<16x128xi32>
    %66 = vector.broadcast %5 : vector<16x1xi32> to vector<16x128xi32>
    %67 = arith.cmpi sle, %65, %66 : vector<16x128xi32>
    %68 = arith.andi %64, %67 : vector<16x128xi1>
    %69 = arith.extui %68 : vector<16x128xi1> to vector<16x128xi32>
    %70 = arith.sitofp %69 : vector<16x128xi32> to vector<16x128xf32>
    %71 = arith.truncf %70 : vector<16x128xf32> to vector<16x128xbf16>
    %c0_15 = arith.constant 0 : index
    %c128 = arith.constant 128 : index
    %c0_16 = arith.constant 0 : index
    %72 = vector.load %arg2[%c0_15, %c128, %c0_16] : memref<1x256x128xbf16, #tpu.memory_space<vmem>>, vector<1x128x128xbf16>
    %73 = vector.shape_cast %72 : vector<1x128x128xbf16> to vector<128x128xbf16>
    %cst_17 = arith.constant dense<0.000000e+00> : vector<16x128xf32>
    %74 = tpu.matmul %71, %73, %cst_17 {dimension_numbers = #tpu.dot_dimension_numbers<[1], [0], [0], [1], [0, 0, 1, 1], [], []>} : vector<16x128xbf16>, vector<128x128xbf16>, vector<16x128xf32> -> vector<16x128xf32>
    %75 = arith.addf %46, %74 : vector<16x128xf32>
    %76 = vector.broadcast %16 : vector<16x1xf32> to vector<16x128xf32>
    %77 = arith.mulf %75, %76 : vector<16x128xf32>
    %78 = arith.truncf %77 : vector<16x128xf32> to vector<16x128xbf16>
    %c0_18 = arith.constant 0 : index
    %c0_19 = arith.constant 0 : index
    %79 = vector.load %arg3[%c0_18, %c0_19] : memref<128x128xbf16, #tpu.memory_space<vmem>>, vector<128x128xbf16>
    %cst_20 = arith.constant dense<0.000000e+00> : vector<16x128xf32>
    %80 = tpu.matmul %78, %79, %cst_20 {dimension_numbers = #tpu.dot_dimension_numbers<[1], [0], [0], [1], [0, 0, 1, 1], [], []>} : vector<16x128xbf16>, vector<128x128xbf16>, vector<16x128xf32> -> vector<16x128xf32>
    %c0_21 = arith.constant 0 : index
    %c0_22 = arith.constant 0 : index
    %81 = vector.load %arg4[%c0_21, %c0_22] : memref<1x128xf32, #tpu.memory_space<vmem>>, vector<1x128xf32>
    %82 = vector.broadcast %81 : vector<1x128xf32> to vector<16x128xf32>
    %83 = arith.addf %80, %82 : vector<16x128xf32>
    %cst_23 = arith.constant 0.000000e+00 : f32
    %84 = vector.broadcast %cst_23 : f32 to vector<16x128xf32>
    %85 = arith.maximumf %83, %84 : vector<16x128xf32>
    %86 = arith.truncf %85 : vector<16x128xf32> to vector<16x128xbf16>
    %c0_24 = arith.constant 0 : index
    %c0_25 = arith.constant 0 : index
    %87 = vector.load %arg5[%c0_24, %c0_25] : memref<128x128xbf16, #tpu.memory_space<vmem>>, vector<128x128xbf16>
    %cst_26 = arith.constant dense<0.000000e+00> : vector<16x128xf32>
    %88 = tpu.matmul %86, %87, %cst_26 {dimension_numbers = #tpu.dot_dimension_numbers<[1], [0], [0], [1], [0, 0, 1, 1], [], []>} : vector<16x128xbf16>, vector<128x128xbf16>, vector<16x128xf32> -> vector<16x128xf32>
    %c0_27 = arith.constant 0 : index
    %c0_28 = arith.constant 0 : index
    %89 = vector.load %arg6[%c0_27, %c0_28] : memref<1x128xf32, #tpu.memory_space<vmem>>, vector<1x128xf32>
    %90 = vector.broadcast %89 : vector<1x128xf32> to vector<16x128xf32>
    %91 = arith.addf %88, %90 : vector<16x128xf32>
    %cst_29 = arith.constant 0.000000e+00 : f32
    %92 = vector.broadcast %cst_29 : f32 to vector<16x128xf32>
    %93 = arith.maximumf %91, %92 : vector<16x128xf32>
    %94 = arith.truncf %93 : vector<16x128xf32> to vector<16x128xbf16>
    %c0_30 = arith.constant 0 : index
    %c0_31 = arith.constant 0 : index
    %95 = vector.load %arg7[%c0_30, %c0_31] : memref<128x128xbf16, #tpu.memory_space<vmem>>, vector<128x128xbf16>
    %cst_32 = arith.constant dense<0.000000e+00> : vector<16x128xf32>
    %96 = tpu.matmul %94, %95, %cst_32 {dimension_numbers = #tpu.dot_dimension_numbers<[1], [0], [0], [1], [0, 0, 1, 1], [], []>} : vector<16x128xbf16>, vector<128x128xbf16>, vector<16x128xf32> -> vector<16x128xf32>
    %c0_33 = arith.constant 0 : index
    %c0_34 = arith.constant 0 : index
    %97 = vector.load %arg8[%c0_33, %c0_34] : memref<1x128xf32, #tpu.memory_space<vmem>>, vector<1x128xf32>
    %98 = vector.broadcast %97 : vector<1x128xf32> to vector<16x128xf32>
    %99 = arith.addf %96, %98 : vector<16x128xf32>
    %c0_35 = arith.constant 0 : index
    %c0_36 = arith.constant 0 : index
    %c0_37 = arith.constant 0 : index
    %100 = vector.load %arg9[%c0_35, %c0_36, %c0_37] : memref<1x16x128xf32, #tpu.memory_space<vmem>>, vector<1x16x128xf32>
    %101 = vector.shape_cast %100 : vector<1x16x128xf32> to vector<16x128xf32>
    %102 = vector.shape_cast %99 : vector<16x128xf32> to vector<1x16x128xf32>
    tpu.vector_store %arg9[%c0_35, %c0_36, %c0_37], %102 {strides = array<i32>} : memref<1x16x128xf32, #tpu.memory_space<vmem>>, vector<1x16x128xf32>,
    return
  }
  func.func @transform_0(%arg0: i32) -> (i32, i32, i32) {
    %c0_i32 = arith.constant 0 : i32
    %c0_i32_0 = arith.constant 0 : i32
    %c0_i32_1 = arith.constant 0 : i32
    return %arg0, %c0_i32, %c0_i32_0 : i32, i32, i32
  }
  func.func @transform_1(%arg0: i32) -> (i32, i32, i32) {
    %c0_i32 = arith.constant 0 : i32
    %c0_i32_0 = arith.constant 0 : i32
    %c0_i32_1 = arith.constant 0 : i32
    return %arg0, %c0_i32, %c0_i32_0 : i32, i32, i32
  }
  func.func @transform_2(%arg0: i32) -> (i32, i32) {
    %c0_i32 = arith.constant 0 : i32
    %c0_i32_0 = arith.constant 0 : i32
    %c0_i32_1 = arith.constant 0 : i32
    return %c0_i32, %c0_i32_0 : i32, i32
  }
  func.func @transform_3(%arg0: i32) -> (i32, i32) {
    %c0_i32 = arith.constant 0 : i32
    %c0_i32_0 = arith.constant 0 : i32
    %c0_i32_1 = arith.constant 0 : i32
    return %c0_i32, %c0_i32_0 : i32, i32
  }
  func.func @transform_4(%arg0: i32) -> (i32, i32) {
    %c0_i32 = arith.constant 0 : i32
    %c0_i32_0 = arith.constant 0 : i32
    %c0_i32_1 = arith.constant 0 : i32
    return %c0_i32, %c0_i32_0 : i32, i32
  }
  func.func @transform_5(%arg0: i32) -> (i32, i32) {
    %c0_i32 = arith.constant 0 : i32
    %c0_i32_0 = arith.constant 0 : i32
    %c0_i32_1 = arith.constant 0 : i32
    return %c0_i32, %c0_i32_0 : i32, i32
  }
  func.func @transform_6(%arg0: i32) -> (i32, i32) {
    %c0_i32 = arith.constant 0 : i32
    %c0_i32_0 = arith.constant 0 : i32
    %c0_i32_1 = arith.constant 0 : i32
    return %c0_i32, %c0_i32_0 : i32, i32
  }
  func.func @transform_7(%arg0: i32) -> (i32, i32) {
    %c0_i32 = arith.constant 0 : i32
    %c0_i32_0 = arith.constant 0 : i32
    %c0_i32_1 = arith.constant 0 : i32
    return %c0_i32, %c0_i32_0 : i32, i32
  }
  func.func @transform_8(%arg0: i32) -> (i32, i32, i32) {
    %c0_i32 = arith.constant 0 : i32
    %c0_i32_0 = arith.constant 0 : i32
    %c0_i32_1 = arith.constant 0 : i32
    return %arg0, %c0_i32, %c0_i32_0 : i32, i32, i32
  }
}

</mosaic_0001>

<llo_original>
// kernel: generalized_rcnn_forward.3
$region0: #{generalized_rcnn_forward.3}
  #allocation0 [shape = 'u32[]', space=smem, size = 0x4, offset = 0x4, fixed_abs, tag = 'smem constant byte address 0x4 - core index']
  #allocation1 [shape = 'u32[144,128]{1,0:T(1,128)}', space=vmem, size = 0x12000, scoped, tag = 'internal scratch']
  %s0 = inlined_call_operand.vmem [shape: s32[2,16,4], index: 0, kind: input, shape index: {}]
  %s1 = inlined_call_operand.vmem [shape: bf16[2,256,128], index: 1, kind: input, shape index: {}]
  %s2 = inlined_call_operand.vmem [shape: bf16[128,128], index: 2, kind: input, shape index: {}]
  %s3 = inlined_call_operand.vmem [shape: f32[1,128], index: 3, kind: input, shape index: {}]
  %s4 = inlined_call_operand.vmem [shape: bf16[128,128], index: 4, kind: input, shape index: {}]
  %s5 = inlined_call_operand.vmem [shape: f32[1,128], index: 5, kind: input, shape index: {}]
  %s6 = inlined_call_operand.vmem [shape: bf16[128,128], index: 6, kind: input, shape index: {}]
  %s7 = inlined_call_operand.vmem [shape: f32[1,128], index: 7, kind: input, shape index: {}]
  %s8 = inlined_call_operand.vmem [shape: f32[2,16,128], index: 8, kind: output, shape index: {}]
  %s9 = sld [smem:[#allocation0]]
  $region65: #{generalized_rcnn_forward.3} parent=0
    _
  %s11 = ssub.s32 1, %s9
  %s12 = scalar_select 0, %s11, %s9
  loop: start=0, step=1, limit=4
  $region2: #{generalized_rcnn_forward.3} parent=0 // loop_pre_header
    _
  $region3: #{generalized_rcnn_forward.3} parent=0 // loop_header
    %s14 = sphi 0, %s18
    %p15 = scmp.ge.s32.totalorder %s14, 4
    %s24 = sphi 0, %s26
    %s27 = sphi 0, %s24
    %s28 = sphi 0, %s27
    %s44 = sphi 0, %s28
    %s50 = sphi 0, %s52
    %s53 = sphi 0, %s50
    %s54 = sphi 0, %s53
    %s70 = sphi 0, %s54
    %s74 = sphi 0, %s74
    %s76 = sphi 0, %s74
    %s77 = sphi 0, %s76
    %s91 = sphi 0, %s77
    %s95 = sphi 0, %s95
    %s97 = sphi 0, %s95
    %s98 = sphi 0, %s97
    %s112 = sphi 0, %s98
    %s116 = sphi 0, %s116
    %s118 = sphi 0, %s116
    %s119 = sphi 0, %s118
    %s133 = sphi 0, %s119
    %s137 = sphi 0, %s137
    %s139 = sphi 0, %s137
    %s140 = sphi 0, %s139
    %s154 = sphi 0, %s140
    %s158 = sphi 0, %s158
    %s160 = sphi 0, %s158
    %s161 = sphi 0, %s160
    %s175 = sphi 0, %s161
    %s179 = sphi 0, %s179
    %s181 = sphi 0, %s179
    %s182 = sphi 0, %s181
    %s196 = sphi 0, %s182
    %s202 = sphi 0, %s204
    %s205 = sphi 0, %s202
    %s206 = sphi 0, %s205
    %s222 = sphi 0, %s206
  $region4: #{generalized_rcnn_forward.3} parent=0 // loop_header_branch
    %17 = sbr.rel (%p15) target = $region8
  $region5: #{generalized_rcnn_forward.3} parent=0 // loop_body
    %s19 = ssub.s32 %s14, 1
    %s20 = ssub.s32 %s14, 2
    %s21 = sadd.s32 %s14, 1
    %s22 = ssub.s32 %s14, %s21
    %p23 = scmp.eq.s32.totalorder %s22, 0
    %s25 = sadd.s32 %s24, 1
    %s26 = scalar_select %p23, %s24, %s25
    %p29 = pneg %p23
    %p30 = scmp.eq.s32.totalorder %s14, 1
    %p31 = por %p29, %p30
    %p32 = scmp.ne.s32.totalorder %s24, %s27
    %p33 = scmp.eq.s32.totalorder %s14, 0
    %p34 = por %p32, %p33
    %p35 = scmp.ne.s32.totalorder %s24, %s27
    %p36 = scmp.eq.s32.totalorder %s19, 1
    %p37 = por %p35, %p36
    %p38 = scmp.ne.s32.totalorder %s27, %s28
    %p39 = scmp.eq.s32.totalorder %s19, 0
    %p40 = por %p38, %p39
    %p41 = scmp.ne.s32.totalorder %s27, %s28
    %p42 = scmp.eq.s32.totalorder %s20, 1
    %p43 = por %p41, %p42
    %p45 = scmp.ne.s32.totalorder %s28, %s44
    %p46 = scmp.eq.s32.totalorder %s20, 0
    %p47 = por %p45, %p46
    %s48 = ssub.s32 %s14, %s21
    %p49 = scmp.eq.s32.totalorder %s48, 0
    %s51 = sadd.s32 %s50, 1
    %s52 = scalar_select %p49, %s50, %s51
    %p55 = pneg %p49
    %p56 = scmp.eq.s32.totalorder %s14, 1
    %p57 = por %p55, %p56
    %p58 = scmp.ne.s32.totalorder %s50, %s53
    %p59 = scmp.eq.s32.totalorder %s14, 0
    %p60 = por %p58, %p59
    %p61 = scmp.ne.s32.totalorder %s50, %s53
    %p62 = scmp.eq.s32.totalorder %s19, 1
    %p63 = por %p61, %p62
    %p64 = scmp.ne.s32.totalorder %s53, %s54
    %p65 = scmp.eq.s32.totalorder %s19, 0
    %p66 = por %p64, %p65
    %p67 = scmp.ne.s32.totalorder %s53, %s54
    %p68 = scmp.eq.s32.totalorder %s20, 1
    %p69 = por %p67, %p68
    %p71 = scmp.ne.s32.totalorder %s54, %s70
    %p72 = scmp.eq.s32.totalorder %s20, 0
    %p73 = por %p71, %p72
    %s75 = sadd.s32 %s74, 1
    %p78 = scmp.eq.s32.totalorder %s14, 1
    %p79 = scmp.ne.s32.totalorder %s74, %s76
    %p80 = scmp.eq.s32.totalorder %s14, 0
    %p81 = por %p79, %p80
    %p82 = scmp.ne.s32.totalorder %s74, %s76
    %p83 = scmp.eq.s32.totalorder %s19, 1
    %p84 = por %p82, %p83
    %p85 = scmp.ne.s32.totalorder %s76, %s77
    %p86 = scmp.eq.s32.totalorder %s19, 0
    %p87 = por %p85, %p86
    %p88 = scmp.ne.s32.totalorder %s76, %s77
    %p89 = scmp.eq.s32.totalorder %s20, 1
    %p90 = por %p88, %p89
    %p92 = scmp.ne.s32.totalorder %s77, %s91
    %p93 = scmp.eq.s32.totalorder %s20, 0
    %p94 = por %p92, %p93
    %s96 = sadd.s32 %s95, 1
    %p99 = scmp.eq.s32.totalorder %s14, 1
    %p100 = scmp.ne.s32.totalorder %s95, %s97
    %p101 = scmp.eq.s32.totalorder %s14, 0
    %p102 = por %p100, %p101
    %p103 = scmp.ne.s32.totalorder %s95, %s97
    %p104 = scmp.eq.s32.totalorder %s19, 1
    %p105 = por %p103, %p104
    %p106 = scmp.ne.s32.totalorder %s97, %s98
    %p107 = scmp.eq.s32.totalorder %s19, 0
    %p108 = por %p106, %p107
    %p109 = scmp.ne.s32.totalorder %s97, %s98
    %p110 = scmp.eq.s32.totalorder %s20, 1
    %p111 = por %p109, %p110
    %p113 = scmp.ne.s32.totalorder %s98, %s112
    %p114 = scmp.eq.s32.totalorder %s20, 0
    %p115 = por %p113, %p114
    %s117 = sadd.s32 %s116, 1
    %p120 = scmp.eq.s32.totalorder %s14, 1
    %p121 = scmp.ne.s32.totalorder %s116, %s118
    %p122 = scmp.eq.s32.totalorder %s14, 0
    %p123 = por %p121, %p122
    %p124 = scmp.ne.s32.totalorder %s116, %s118
    %p125 = scmp.eq.s32.totalorder %s19, 1
    %p126 = por %p124, %p125
    %p127 = scmp.ne.s32.totalorder %s118, %s119
    %p128 = scmp.eq.s32.totalorder %s19, 0
    %p129 = por %p127, %p128
    %p130 = scmp.ne.s32.totalorder %s118, %s119
    %p131 = scmp.eq.s32.totalorder %s20, 1
    %p132 = por %p130, %p131
    %p134 = scmp.ne.s32.totalorder %s119, %s133
    %p135 = scmp.eq.s32.totalorder %s20, 0
    %p136 = por %p134, %p135
    %s138 = sadd.s32 %s137, 1
    %p141 = scmp.eq.s32.totalorder %s14, 1
    %p142 = scmp.ne.s32.totalorder %s137, %s139
    %p143 = scmp.eq.s32.totalorder %s14, 0
    %p144 = por %p142, %p143
    %p145 = scmp.ne.s32.totalorder %s137, %s139
    %p146 = scmp.eq.s32.totalorder %s19, 1
    %p147 = por %p145, %p146
    %p148 = scmp.ne.s32.totalorder %s139, %s140
    %p149 = scmp.eq.s32.totalorder %s19, 0
    %p150 = por %p148, %p149
    %p151 = scmp.ne.s32.totalorder %s139, %s140
    %p152 = scmp.eq.s32.totalorder %s20, 1
    %p153 = por %p151, %p152
    %p155 = scmp.ne.s32.totalorder %s140, %s154
    %p156 = scmp.eq.s32.totalorder %s20, 0
    %p157 = por %p155, %p156
    %s159 = sadd.s32 %s158, 1
    %p162 = scmp.eq.s32.totalorder %s14, 1
    %p163 = scmp.ne.s32.totalorder %s158, %s160
    %p164 = scmp.eq.s32.totalorder %s14, 0
    %p165 = por %p163, %p164
    %p166 = scmp.ne.s32.totalorder %s158, %s160
    %p167 = scmp.eq.s32.totalorder %s19, 1
    %p168 = por %p166, %p167
    %p169 = scmp.ne.s32.totalorder %s160, %s161
    %p170 = scmp.eq.s32.totalorder %s19, 0
    %p171 = por %p169, %p170
    %p172 = scmp.ne.s32.totalorder %s160, %s161
    %p173 = scmp.eq.s32.totalorder %s20, 1
    %p174 = por %p172, %p173
    %p176 = scmp.ne.s32.totalorder %s161, %s175
    %p177 = scmp.eq.s32.totalorder %s20, 0
    %p178 = por %p176, %p177
    %s180 = sadd.s32 %s179, 1
    %p183 = scmp.eq.s32.totalorder %s14, 1
    %p184 = scmp.ne.s32.totalorder %s179, %s181
    %p185 = scmp.eq.s32.totalorder %s14, 0
    %p186 = por %p184, %p185
    %p187 = scmp.ne.s32.totalorder %s179, %s181
    %p188 = scmp.eq.s32.totalorder %s19, 1
    %p189 = por %p187, %p188
    %p190 = scmp.ne.s32.totalorder %s181, %s182
    %p191 = scmp.eq.s32.totalorder %s19, 0
    %p192 = por %p190, %p191
    %p193 = scmp.ne.s32.totalorder %s181, %s182
    %p194 = scmp.eq.s32.totalorder %s20, 1
    %p195 = por %p193, %p194
    %p197 = scmp.ne.s32.totalorder %s182, %s196
    %p198 = scmp.eq.s32.totalorder %s20, 0
    %p199 = por %p197, %p198
    %s200 = ssub.s32 %s14, %s21
    %p201 = scmp.eq.s32.totalorder %s200, 0
    %s203 = sadd.s32 %s202, 1
    %s204 = scalar_select %p201, %s202, %s203
    %p207 = pneg %p201
    %p208 = scmp.eq.s32.totalorder %s14, 1
    %p209 = por %p207, %p208
    %p210 = scmp.ne.s32.totalorder %s202, %s205
    %p211 = scmp.eq.s32.totalorder %s14, 0
    %p212 = por %p210, %p211
    %p213 = scmp.ne.s32.totalorder %s202, %s205
    %p214 = scmp.eq.s32.totalorder %s19, 1
    %p215 = por %p213, %p214
    %p216 = scmp.ne.s32.totalorder %s205, %s206
    %p217 = scmp.eq.s32.totalorder %s19, 0
    %p218 = por %p216, %p217
    %p219 = scmp.ne.s32.totalorder %s205, %s206
    %p220 = scmp.eq.s32.totalorder %s20, 1
    %p221 = por %p219, %p220
    %p223 = scmp.ne.s32.totalorder %s206, %s222
    %p224 = scmp.eq.s32.totalorder %s20, 0
    %p225 = por %p223, %p224
    %p226 = scmp.le.s32.totalorder 1, %s14
    %p227 = scmp.lt.s32.totalorder %s14, 3
    %p228 = pnand %p226, %p227
    %p229 = pneg %p228
    // Predicated region
    $region9: #{generalized_rcnn_forward.3} parent=5 // pred_check
      _
    $region10: #{generalized_rcnn_forward.3} parent=5 // pred_check_branch
      %231 = sbr.rel (%p228) target = $region12
    $region11: #{generalized_rcnn_forward.3} parent=5 // pred_region
      %s232 = ssub.s32 %s14, 1
      // Predicated region
      $region13: #{generalized_rcnn_forward.3} parent=11 // pred_check
        %p233 = pneg %p87
      $region14: #{generalized_rcnn_forward.3} parent=11 // pred_check_branch
        %235 = sbr.rel (%p233) target = $region16
      $region15: #{generalized_rcnn_forward.3} parent=11 // pred_region
        _
      $region16: #{generalized_rcnn_forward.3} parent=11 // pred_fallthru
        _
      // Predicated region
      $region17: #{generalized_rcnn_forward.3} parent=11 // pred_check
        %p236 = pneg %p108
      $region18: #{generalized_rcnn_forward.3} parent=11 // pred_check_branch
        %238 = sbr.rel (%p236) target = $region20
      $region19: #{generalized_rcnn_forward.3} parent=11 // pred_region
        _
      $region20: #{generalized_rcnn_forward.3} parent=11 // pred_fallthru
        _
      // Predicated region
      $region21: #{generalized_rcnn_forward.3} parent=11 // pred_check
        %p239 = pneg %p129
      $region22: #{generalized_rcnn_forward.3} parent=11 // pred_check_branch
        %241 = sbr.rel (%p239) target = $region24
      $region23: #{generalized_rcnn_forward.3} parent=11 // pred_region
        _
      $region24: #{generalized_rcnn_forward.3} parent=11 // pred_fallthru
        _
      // Predicated region
      $region25: #{generalized_rcnn_forward.3} parent=11 // pred_check
        %p242 = pneg %p150
      $region26: #{generalized_rcnn_forward.3} parent=11 // pred_check_branch
        %244 = sbr.rel (%p242) target = $region28
      $region27: #{generalized_rcnn_forward.3} parent=11 // pred_region
        _
      $region28: #{generalized_rcnn_forward.3} parent=11 // pred_fallthru
        _
      // Predicated region
      $region29: #{generalized_rcnn_forward.3} parent=11 // pred_check
        %p245 = pneg %p171
      $region30: #{generalized_rcnn_forward.3} parent=11 // pred_check_branch
        %247 = sbr.rel (%p245) target = $region32
      $region31: #{generalized_rcnn_forward.3} parent=11 // pred_region
        _
      $region32: #{generalized_rcnn_forward.3} parent=11 // pred_fallthru
        _
      // Predicated region
      $region33: #{generalized_rcnn_forward.3} parent=11 // pred_check
        %p248 = pneg %p192
      $region34: #{generalized_rcnn_forward.3} parent=11 // pred_check_branch
        %250 = sbr.rel (%p248) target = $region36
      $region35: #{generalized_rcnn_forward.3} parent=11 // pred_region
        _
      $region36: #{generalized_rcnn_forward.3} parent=11 // pred_fallthru
        _
    $region12: #{generalized_rcnn_forward.3} parent=5 // pred_fallthru
      _
    %p251 = scmp.lt.s32.totalorder %s14, 2
    // Predicated region
    $region37: #{generalized_rcnn_forward.3} parent=5 // pred_check
      %p252 = pneg %p251
    $region38: #{generalized_rcnn_forward.3} parent=5 // pred_check_branch
      %254 = sbr.rel (%p252) target = $region40
    $region39: #{generalized_rcnn_forward.3} parent=5 // pred_region
      // Predicated region
      $region41: #{generalized_rcnn_forward.3} parent=39 // pred_check
        %p255 = pneg %p34
      $region42: #{generalized_rcnn_forward.3} parent=39 // pred_check_branch
        %257 = sbr.rel (%p255) target = $region44
      $region43: #{generalized_rcnn_forward.3} parent=39 // pred_region
        %p258 = scmp.lt.s32.totalorder %s14, 1
        %s259 = scalar_select %p258, %s14, 1
        %s260 = smul.addr %s259, 2
        %s261 = smul.addr %s260, 8
        %s262 = scalar_lea.vmem %s0, %s261
      $region44: #{generalized_rcnn_forward.3} parent=39 // pred_fallthru
        _
      // Predicated region
      $region45: #{generalized_rcnn_forward.3} parent=39 // pred_check
        %p263 = pneg %p60
      $region46: #{generalized_rcnn_forward.3} parent=39 // pred_check_branch
        %265 = sbr.rel (%p263) target = $region48
      $region47: #{generalized_rcnn_forward.3} parent=39 // pred_region
        %p266 = scmp.lt.s32.totalorder %s14, 1
        %s267 = scalar_select %p266, %s14, 1
        %s268 = smul.addr %s267, 32
        %s269 = smul.addr %s268, 4
        %s270 = scalar_lea.vmem %s1, %s269
      $region48: #{generalized_rcnn_forward.3} parent=39 // pred_fallthru
        _
    $region40: #{generalized_rcnn_forward.3} parent=5 // pred_fallthru
      _
    %p271 = scmp.le.s32.totalorder 1, %s14
    %p272 = scmp.lt.s32.totalorder %s14, 3
    %p273 = pnand %p271, %p272
    %p274 = pneg %p273
    // Predicated region
    $region49: #{generalized_rcnn_forward.3} parent=5 // pred_check
      _
    $region50: #{generalized_rcnn_forward.3} parent=5 // pred_check_branch
      %276 = sbr.rel (%p273) target = $region52
    $region51: #{generalized_rcnn_forward.3} parent=5 // pred_region
      %s277 = ssub.s32 %s14, 1
      %p278 = scmp.lt.s32.totalorder %s19, 1
      %s279 = scalar_select %p278, %s19, 1
      %s280 = smul.addr %s279, 2
      %s281 = smul.addr %s280, 8
      %s282 = scalar_lea.vmem %s0, %s281
      %p283 = pneg %p40
      %p284 = pneg %p37
      %p285 = scmp.lt.s32.totalorder %s19, 1
      %s286 = scalar_select %p285, %s19, 1
      %s287 = smul.addr %s286, 32
      %s288 = smul.addr %s287, 4
      %s289 = scalar_lea.vmem %s1, %s288
      %p290 = pneg %p66
      %p291 = pneg %p63
      %p292 = pneg %p87
      %p293 = pneg %p84
      %p294 = pneg %p108
      %p295 = pneg %p105
      %p296 = pneg %p129
      %p297 = pneg %p126
      %p298 = pneg %p150
      %p299 = pneg %p147
      %p300 = pneg %p171
      %p301 = pneg %p168
      %p302 = pneg %p192
      %p303 = pneg %p189
      %p304 = pneg %p218
      %p305 = pneg %p215
      %p306 = scmp.lt.s32.totalorder %s19, 1
      %s307 = scalar_select %p306, %s19, 1
      %s308 = smul.addr %s307, 2
      %s309 = smul.addr %s308, 8
      %s310 = scalar_lea.vmem %s8, %s309
      %p311 = scmp.lt.s32.totalorder %s19, 1
      %s312 = scalar_select %p311, %s19, 1
      %s313 = smul.addr %s312, 2
      %s314 = smul.addr %s313, 8
      %s315 = scalar_lea.vmem %s0, %s314
      %p316 = scmp.lt.s32.totalorder %s19, 1
      %s317 = scalar_select %p316, %s19, 1
      %s318 = smul.addr %s317, 32
      %s319 = smul.addr %s318, 4
      %s320 = scalar_lea.vmem %s1, %s319
      %p321 = scmp.lt.s32.totalorder %s19, 1
      %s322 = scalar_select %p321, %s19, 1
      %s323 = smul.addr %s322, 2
      %s324 = smul.addr %s323, 8
      %s325 = scalar_lea.vmem %s8, %s324
      %v327 = vld [vmem:[%s315] sm:$0xff]
      %v328 = vld [vmem:[%s315 + $0x8] sm:$0xff]
      %329 = vrot.lane.b32.xlu0 %v327, 2
      %v330 = vpop.permute.xlu0 %329
      %331 = vrot.lane.b32.xlu0 %v328, 2
      %v332 = vpop.permute.xlu0 %331
      %v333 = vsub.s32 %v327, %v330
      %v334 = vsub.s32 %v328, %v332
      %v335 = vadd.s32 %v333, 1
      %v336 = vadd.s32 %v334, 1
      %337 = vrot.lane.b32.xlu0 %v335, 127
      %v338 = vpop.permute.xlu0 %337
      %339 = vrot.lane.b32.xlu0 %v336, 127
      %v340 = vpop.permute.xlu0 %339
      %v341 = vmul.u32 %v335, %v338
      %v342 = vmul.u32 %v336, %v340
      %v343 = vcvt.s32.f32 %v341
      %v344 = vcvt.s32.f32 %v342
      %v345 = vrcp.pop %v343
      %v346 = vrcp.pop %v344
      %v347 = vlaneseq
      %v348 = vand.u32 %v347, 127
      %v349 = vshra.s32 %v348, 4
      %v350 = vand.u32 %v348, 15
      %351 = vset.pattern.permute.xlu0 1
      %352 = vperm.xlu0 %351, %v327
      %v353 = vpop.permute.xlu0 %352
      %354 = vset.pattern.permute.xlu0 1
      %355 = vperm.xlu0 %354, %v328
      %v356 = vpop.permute.xlu0 %355
      %vm357 = vcmp.ge.s32.totalorder %v349, %v353
      %vm358 = vcmp.ge.s32.totalorder %v349, %v356
      %359 = vset.pattern.permute.xlu0 3
      %360 = vperm.xlu0 %359, %v327
      %v361 = vpop.permute.xlu0 %360
      %362 = vset.pattern.permute.xlu0 3
      %363 = vperm.xlu0 %362, %v328
      %v364 = vpop.permute.xlu0 %363
      %vm365 = vcmp.le.s32.totalorder %v349, %v361
      %vm366 = vcmp.le.s32.totalorder %v349, %v364
      %vm367 = vmand %vm357, %vm365
      %vm368 = vmand %vm358, %vm366
      %369 = vset.pattern.permute.xlu0 0
      %370 = vperm.xlu0 %369, %v327
      %v371 = vpop.permute.xlu0 %370
      %372 = vset.pattern.permute.xlu0 0
      %373 = vperm.xlu0 %372, %v328
      %v374 = vpop.permute.xlu0 %373
      %vm375 = vcmp.ge.s32.totalorder %v350, %v371
      %vm376 = vcmp.ge.s32.totalorder %v350, %v374
      %vm377 = vmand %vm367, %vm375
      %vm378 = vmand %vm368, %vm376
      %379 = vset.pattern.permute.xlu0 2
      %380 = vperm.xlu0 %379, %v327
      %v381 = vpop.permute.xlu0 %380
      %382 = vset.pattern.permute.xlu0 2
      %383 = vperm.xlu0 %382, %v328
      %v384 = vpop.permute.xlu0 %383
      %vm385 = vcmp.le.s32.totalorder %v350, %v381
      %vm386 = vcmp.le.s32.totalorder %v350, %v384
      %vm387 = vmand %vm377, %vm385
      %vm388 = vmand %vm378, %vm386
      %v389 = vsel %vm387, 1, 0
      %v390 = vsel %vm388, 1, 0
      %v391 = vcvt.s32.f32 %v389
      %v392 = vcvt.s32.f32 %v390
      %v393 = vpack.c.bf16 %v392, %v391
      %v394 = vld [vmem:[%s320] sm:$0xf]
      %v395 = vld [vmem:[%s320 + $0x4] sm:$0xf]
      %v396 = vld [vmem:[%s320 + $0x8] sm:$0xf]
      %v397 = vld [vmem:[%s320 + $0xc] sm:$0xf]
      %v398 = vld [vmem:[%s320 + $0x10] sm:$0xf]
      %v399 = vld [vmem:[%s320 + $0x14] sm:$0xf]
      %v400 = vld [vmem:[%s320 + $0x18] sm:$0xf]
      %v401 = vld [vmem:[%s320 + $0x1c] sm:$0xf]
      %v402 = vld [vmem:[%s320 + $0x20] sm:$0xf]
      %v403 = vld [vmem:[%s320 + $0x24] sm:$0xf]
      %v404 = vld [vmem:[%s320 + $0x28] sm:$0xf]
      %v405 = vld [vmem:[%s320 + $0x2c] sm:$0xf]
      %v406 = vld [vmem:[%s320 + $0x30] sm:$0xf]
      %v407 = vld [vmem:[%s320 + $0x34] sm:$0xf]
      %v408 = vld [vmem:[%s320 + $0x38] sm:$0xf]
      %v409 = vld [vmem:[%s320 + $0x3c] sm:$0xf]
      %v410 = vadd.s32 %v348, 128
      %v411 = vshra.s32 %v410, 4
      %v412 = vand.u32 %v410, 15
      %vm413 = vcmp.ge.s32.totalorder %v411, %v353
      %vm414 = vcmp.ge.s32.totalorder %v411, %v356
      %vm415 = vcmp.le.s32.totalorder %v411, %v361
      %vm416 = vcmp.le.s32.totalorder %v411, %v364
      %vm417 = vmand %vm413, %vm415
      %vm418 = vmand %vm414, %vm416
      %vm419 = vcmp.ge.s32.totalorder %v412, %v371
      %vm420 = vcmp.ge.s32.totalorder %v412, %v374
      %vm421 = vmand %vm417, %vm419
      %vm422 = vmand %vm418, %vm420
      %vm423 = vcmp.le.s32.totalorder %v412, %v381
      %vm424 = vcmp.le.s32.totalorder %v412, %v384
      %vm425 = vmand %vm421, %vm423
      %vm426 = vmand %vm422, %vm424
      %v427 = vsel %vm425, 1, 0
      %v428 = vsel %vm426, 1, 0
      %v429 = vcvt.s32.f32 %v427
      %v430 = vcvt.s32.f32 %v428
      %v431 = vpack.c.bf16 %v430, %v429
      %v432 = vld [vmem:[%s320 + $0x40] sm:$0xf]
      %v433 = vld [vmem:[%s320 + $0x44] sm:$0xf]
      %v434 = vld [vmem:[%s320 + $0x48] sm:$0xf]
      %v435 = vld [vmem:[%s320 + $0x4c] sm:$0xf]
      %v436 = vld [vmem:[%s320 + $0x50] sm:$0xf]
      %v437 = vld [vmem:[%s320 + $0x54] sm:$0xf]
      %v438 = vld [vmem:[%s320 + $0x58] sm:$0xf]
      %v439 = vld [vmem:[%s320 + $0x5c] sm:$0xf]
      %v440 = vld [vmem:[%s320 + $0x60] sm:$0xf]
      %v441 = vld [vmem:[%s320 + $0x64] sm:$0xf]
      %v442 = vld [vmem:[%s320 + $0x68] sm:$0xf]
      %v443 = vld [vmem:[%s320 + $0x6c] sm:$0xf]
      %v444 = vld [vmem:[%s320 + $0x70] sm:$0xf]
      %v445 = vld [vmem:[%s320 + $0x74] sm:$0xf]
      %v446 = vld [vmem:[%s320 + $0x78] sm:$0xf]
      %v447 = vld [vmem:[%s320 + $0x7c] sm:$0xf]
      %v464 = vunpack.c.l.b16 %v432
      %v465 = vunpack.c.l.b16 %v433
      %v466 = vunpack.c.l.b16 %v434
      %v467 = vunpack.c.l.b16 %v435
      %v468 = vunpack.c.l.b16 %v436
      %v469 = vunpack.c.l.b16 %v437
      %v470 = vunpack.c.l.b16 %v438
      %v471 = vunpack.c.l.b16 %v439
      %v472 = vunpack.c.l.b16 %v440
      %v473 = vunpack.c.l.b16 %v441
      %v474 = vunpack.c.l.b16 %v442
      %v475 = vunpack.c.l.b16 %v443
      %v476 = vunpack.c.l.b16 %v444
      %v477 = vunpack.c.l.b16 %v445
      %v478 = vunpack.c.l.b16 %v446
      %v479 = vunpack.c.l.b16 %v447
      %v480 = vpack.c.b16 %v465, %v464
      %v481 = vpack.c.b16 %v467, %v466
      %v482 = vpack.c.b16 %v469, %v468
      %v483 = vpack.c.b16 %v471, %v470
      %v484 = vpack.c.b16 %v473, %v472
      %v485 = vpack.c.b16 %v475, %v474
      %v486 = vpack.c.b16 %v477, %v476
      %v487 = vpack.c.b16 %v479, %v478
      %496 = vmatprep.subr.bf16.mxu0 0
      %497 = vmatpush1.bf16.msra.mxu0 %v480
      %498 = vmatprep.subr.bf16.mxu0 0
      %499 = vmatpush1.bf16.msra.mxu0 %v481
      %500 = vmatprep.subr.bf16.mxu0 0
      %501 = vmatpush1.bf16.msra.mxu0 %v482
      %502 = vmatprep.subr.bf16.mxu0 0
      %503 = vmatpush1.bf16.msra.mxu0 %v483
      %504 = vmatprep.subr.bf16.mxu0 0
      %505 = vmatpush1.bf16.msra.mxu0 %v484
      %506 = vmatprep.subr.bf16.mxu0 0
      %507 = vmatpush1.bf16.msra.mxu0 %v485
      %508 = vmatprep.subr.bf16.mxu0 0
      %509 = vmatpush1.bf16.msra.mxu0 %v486
      %510 = vmatprep.subr.bf16.mxu0 0
      %511 = vmatpush1.bf16.msra.mxu0 %v487
      %512 = vmatprep.subr.bf16.mxu0 0
      %513 = vmatpush1.bf16.msra.mxu0 0
      %514 = vmatprep.subr.bf16.mxu0 0
      %515 = vmatpush1.bf16.msra.mxu0 0
      %516 = vmatprep.subr.bf16.mxu0 0
      %517 = vmatpush1.bf16.msra.mxu0 0
      %518 = vmatprep.subr.bf16.mxu0 0
      %519 = vmatpush1.bf16.msra.mxu0 0
      %520 = vmatprep.subr.bf16.mxu0 0
      %521 = vmatpush1.bf16.msra.mxu0 0
      %522 = vmatprep.subr.bf16.mxu0 0
      %523 = vmatpush1.bf16.msra.mxu0 0
      %524 = vmatprep.subr.bf16.mxu0 0
      %525 = vmatpush1.bf16.msra.mxu0 0
      %526 = vmatprep.subr.bf16.mxu0 0
      %527 = vmatpush1.bf16.msra.mxu0 0
      %528 = vmatprep.mubr.bf16.mxu0 0
      %529 = vmatmul.mubr.bf16.gmra.mrb[0].mxu0 %v431
      %v530 = vpop.f32.mrb[0].mxu0
      %v531 = vadd.f32 0.0, %v530
      %v532 = vpop.f32.mrb[0].mxu0
      %v533 = vpop.f32.mrb[0].mxu0
      %v534 = vadd.f32 0.0, %v533
      %v535 = vpop.f32.mrb[0].mxu0
      %536 = vdwg.mxu0
      %v553 = vunpack.c.l.b16 %v394
      %v554 = vunpack.c.l.b16 %v395
      %v555 = vunpack.c.l.b16 %v396
      %v556 = vunpack.c.l.b16 %v397
      %v557 = vunpack.c.l.b16 %v398
      %v558 = vunpack.c.l.b16 %v399
      %v559 = vunpack.c.l.b16 %v400
      %v560 = vunpack.c.l.b16 %v401
      %v561 = vunpack.c.l.b16 %v402
      %v562 = vunpack.c.l.b16 %v403
      %v563 = vunpack.c.l.b16 %v404
      %v564 = vunpack.c.l.b16 %v405
      %v565 = vunpack.c.l.b16 %v406
      %v566 = vunpack.c.l.b16 %v407
      %v567 = vunpack.c.l.b16 %v408
      %v568 = vunpack.c.l.b16 %v409
      %v569 = vpack.c.b16 %v554, %v553
      %v570 = vpack.c.b16 %v556, %v555
      %v571 = vpack.c.b16 %v558, %v557
      %v572 = vpack.c.b16 %v560, %v559
      %v573 = vpack.c.b16 %v562, %v561
      %v574 = vpack.c.b16 %v564, %v563
      %v575 = vpack.c.b16 %v566, %v565
      %v576 = vpack.c.b16 %v568, %v567
      %585 = vmatprep.subr.bf16.mxu0 0
      %586 = vmatpush1.bf16.msra.mxu0 %v569
      %587 = vmatprep.subr.bf16.mxu0 0
      %588 = vmatpush1.bf16.msra.mxu0 %v570
      %589 = vmatprep.subr.bf16.mxu0 0
      %590 = vmatpush1.bf16.msra.mxu0 %v571
      %591 = vmatprep.subr.bf16.mxu0 0
      %592 = vmatpush1.bf16.msra.mxu0 %v572
      %593 = vmatprep.subr.bf16.mxu0 0
      %594 = vmatpush1.bf16.msra.mxu0 %v573
      %595 = vmatprep.subr.bf16.mxu0 0
      %596 = vmatpush1.bf16.msra.mxu0 %v574
      %597 = vmatprep.subr.bf16.mxu0 0
      %598 = vmatpush1.bf16.msra.mxu0 %v575
      %599 = vmatprep.subr.bf16.mxu0 0
      %600 = vmatpush1.bf16.msra.mxu0 %v576
      %601 = vmatprep.subr.bf16.mxu0 0
      %602 = vmatpush1.bf16.msra.mxu0 0
      %603 = vmatprep.subr.bf16.mxu0 0
      %604 = vmatpush1.bf16.msra.mxu0 0
      %605 = vmatprep.subr.bf16.mxu0 0
      %606 = vmatpush1.bf16.msra.mxu0 0
      %607 = vmatprep.subr.bf16.mxu0 0
      %608 = vmatpush1.bf16.msra.mxu0 0
      %609 = vmatprep.subr.bf16.mxu0 0
      %610 = vmatpush1.bf16.msra.mxu0 0
      %611 = vmatprep.subr.bf16.mxu0 0
      %612 = vmatpush1.bf16.msra.mxu0 0
      %613 = vmatprep.subr.bf16.mxu0 0
      %614 = vmatpush1.bf16.msra.mxu0 0
      %615 = vmatprep.subr.bf16.mxu0 0
      %616 = vmatpush1.bf16.msra.mxu0 0
      %617 = vmatprep.mubr.bf16.mxu0 0
      %618 = vmatmul.mubr.bf16.gmra.mrb[0].mxu0 %v393
      %v619 = vpop.f32.mrb[0].mxu0
      %v620 = vadd.f32 %v531, %v619
      %v621 = vpop.f32.mrb[0].mxu0
      %v622 = vpop.f32.mrb[0].mxu0
      %v623 = vadd.f32 %v534, %v622
      %v624 = vpop.f32.mrb[0].mxu0
      %625 = vdwg.mxu0
      %627 = vset.pattern.permute.xlu0 2
      %628 = vperm.xlu0 %627, %v345
      %v629 = vpop.permute.xlu0 %628
      %632 = vset.pattern.permute.xlu0 2
      %633 = vperm.xlu0 %632, %v346
      %v634 = vpop.permute.xlu0 %633
      %v636 = vmul.f32 %v620, %v629
      %v637 = vmul.f32 %v623, %v634
      %v638 = vpack.c.bf16 %v637, %v636
      %v639 = vld [vmem:[%s2] sm:$0xf]
      %v640 = vld [vmem:[%s2 + $0x4] sm:$0xf]
      %v641 = vld [vmem:[%s2 + $0x8] sm:$0xf]
      %v642 = vld [vmem:[%s2 + $0xc] sm:$0xf]
      %v643 = vld [vmem:[%s2 + $0x10] sm:$0xf]
      %v644 = vld [vmem:[%s2 + $0x14] sm:$0xf]
      %v645 = vld [vmem:[%s2 + $0x18] sm:$0xf]
      %v646 = vld [vmem:[%s2 + $0x1c] sm:$0xf]
      %v647 = vld [vmem:[%s2 + $0x20] sm:$0xf]
      %v648 = vld [vmem:[%s2 + $0x24] sm:$0xf]
      %v649 = vld [vmem:[%s2 + $0x28] sm:$0xf]
      %v650 = vld [vmem:[%s2 + $0x2c] sm:$0xf]
      %v651 = vld [vmem:[%s2 + $0x30] sm:$0xf]
      %v652 = vld [vmem:[%s2 + $0x34] sm:$0xf]
      %v653 = vld [vmem:[%s2 + $0x38] sm:$0xf]
      %v654 = vld [vmem:[%s2 + $0x3c] sm:$0xf]
      %v655 = vld [vmem:[%s3] sm:$0x1]
      %v657 = vlaneseq
      %v658 = vshrl.u32 %v657, 7
      %v659 = vsub.s32 0, %v658
      %v660 = vrot.slane %v655, %v659
      %v678 = vunpack.c.l.b16 %v639
      %v679 = vunpack.c.l.b16 %v640
      %v680 = vunpack.c.l.b16 %v641
      %v681 = vunpack.c.l.b16 %v642
      %v682 = vunpack.c.l.b16 %v643
      %v683 = vunpack.c.l.b16 %v644
      %v684 = vunpack.c.l.b16 %v645
      %v685 = vunpack.c.l.b16 %v646
      %v686 = vunpack.c.l.b16 %v647
      %v687 = vunpack.c.l.b16 %v648
      %v688 = vunpack.c.l.b16 %v649
      %v689 = vunpack.c.l.b16 %v650
      %v690 = vunpack.c.l.b16 %v651
      %v691 = vunpack.c.l.b16 %v652
      %v692 = vunpack.c.l.b16 %v653
      %v693 = vunpack.c.l.b16 %v654
      %v694 = vpack.c.b16 %v679, %v678
      %v695 = vpack.c.b16 %v681, %v680
      %v696 = vpack.c.b16 %v683, %v682
      %v697 = vpack.c.b16 %v685, %v684
      %v698 = vpack.c.b16 %v687, %v686
      %v699 = vpack.c.b16 %v689, %v688
      %v700 = vpack.c.b16 %v691, %v690
      %v701 = vpack.c.b16 %v693, %v692
      %710 = vmatprep.subr.bf16.mxu0 0
      %711 = vmatpush1.bf16.msra.mxu0 %v694
      %712 = vmatprep.subr.bf16.mxu0 0
      %713 = vmatpush1.bf16.msra.mxu0 %v695
      %714 = vmatprep.subr.bf16.mxu0 0
      %715 = vmatpush1.bf16.msra.mxu0 %v696
      %716 = vmatprep.subr.bf16.mxu0 0
      %717 = vmatpush1.bf16.msra.mxu0 %v697
      %718 = vmatprep.subr.bf16.mxu0 0
      %719 = vmatpush1.bf16.msra.mxu0 %v698
      %720 = vmatprep.subr.bf16.mxu0 0
      %721 = vmatpush1.bf16.msra.mxu0 %v699
      %722 = vmatprep.subr.bf16.mxu0 0
      %723 = vmatpush1.bf16.msra.mxu0 %v700
      %724 = vmatprep.subr.bf16.mxu0 0
      %725 = vmatpush1.bf16.msra.mxu0 %v701
      %726 = vmatprep.subr.bf16.mxu0 0
      %727 = vmatpush1.bf16.msra.mxu0 0
      %728 = vmatprep.subr.bf16.mxu0 0
      %729 = vmatpush1.bf16.msra.mxu0 0
      %730 = vmatprep.subr.bf16.mxu0 0
      %731 = vmatpush1.bf16.msra.mxu0 0
      %732 = vmatprep.subr.bf16.mxu0 0
      %733 = vmatpush1.bf16.msra.mxu0 0
      %734 = vmatprep.subr.bf16.mxu0 0
      %735 = vmatpush1.bf16.msra.mxu0 0
      %736 = vmatprep.subr.bf16.mxu0 0
      %737 = vmatpush1.bf16.msra.mxu0 0
      %738 = vmatprep.subr.bf16.mxu0 0
      %739 = vmatpush1.bf16.msra.mxu0 0
      %740 = vmatprep.subr.bf16.mxu0 0
      %741 = vmatpush1.bf16.msra.mxu0 0
      %742 = vmatprep.mubr.bf16.mxu0 0
      %743 = vmatmul.mubr.bf16.gmra.mrb[0].mxu0 %v638
      %v744 = vpop.f32.mrb[0].mxu0
      %v745 = vadd.f32 %v660, %v744
      %v746 = vpop.f32.mrb[0].mxu0
      %v747 = vpop.f32.mrb[0].mxu0
      %v748 = vadd.f32 %v660, %v747
      %v749 = vpop.f32.mrb[0].mxu0
      %750 = vdwg.mxu0
      %v751 = vmax.f32 %v745, 0.0
      %v752 = vmax.f32 %v748, 0.0
      %v753 = vpack.c.bf16 %v752, %v751
      %v754 = vld [vmem:[%s4] sm:$0xf]
      %v755 = vld [vmem:[%s4 + $0x4] sm:$0xf]
      %v756 = vld [vmem:[%s4 + $0x8] sm:$0xf]
      %v757 = vld [vmem:[%s4 + $0xc] sm:$0xf]
      %v758 = vld [vmem:[%s4 + $0x10] sm:$0xf]
      %v759 = vld [vmem:[%s4 + $0x14] sm:$0xf]
      %v760 = vld [vmem:[%s4 + $0x18] sm:$0xf]
      %v761 = vld [vmem:[%s4 + $0x1c] sm:$0xf]
      %v762 = vld [vmem:[%s4 + $0x20] sm:$0xf]
      %v763 = vld [vmem:[%s4 + $0x24] sm:$0xf]
      %v764 = vld [vmem:[%s4 + $0x28] sm:$0xf]
      %v765 = vld [vmem:[%s4 + $0x2c] sm:$0xf]
      %v766 = vld [vmem:[%s4 + $0x30] sm:$0xf]
      %v767 = vld [vmem:[%s4 + $0x34] sm:$0xf]
      %v768 = vld [vmem:[%s4 + $0x38] sm:$0xf]
      %v769 = vld [vmem:[%s4 + $0x3c] sm:$0xf]
      %v770 = vld [vmem:[%s5] sm:$0x1]
      %v772 = vlaneseq
      %v773 = vshrl.u32 %v772, 7
      %v774 = vsub.s32 0, %v773
      %v775 = vrot.slane %v770, %v774
      %v793 = vunpack.c.l.b16 %v754
      %v794 = vunpack.c.l.b16 %v755
      %v795 = vunpack.c.l.b16 %v756
      %v796 = vunpack.c.l.b16 %v757
      %v797 = vunpack.c.l.b16 %v758
      %v798 = vunpack.c.l.b16 %v759
      %v799 = vunpack.c.l.b16 %v760
      %v800 = vunpack.c.l.b16 %v761
      %v801 = vunpack.c.l.b16 %v762
      %v802 = vunpack.c.l.b16 %v763
      %v803 = vunpack.c.l.b16 %v764
      %v804 = vunpack.c.l.b16 %v765
      %v805 = vunpack.c.l.b16 %v766
      %v806 = vunpack.c.l.b16 %v767
      %v807 = vunpack.c.l.b16 %v768
      %v808 = vunpack.c.l.b16 %v769
      %v809 = vpack.c.b16 %v794, %v793
      %v810 = vpack.c.b16 %v796, %v795
      %v811 = vpack.c.b16 %v798, %v797
      %v812 = vpack.c.b16 %v800, %v799
      %v813 = vpack.c.b16 %v802, %v801
      %v814 = vpack.c.b16 %v804, %v803
      %v815 = vpack.c.b16 %v806, %v805
      %v816 = vpack.c.b16 %v808, %v807
      %825 = vmatprep.subr.bf16.mxu0 0
      %826 = vmatpush1.bf16.msra.mxu0 %v809
      %827 = vmatprep.subr.bf16.mxu0 0
      %828 = vmatpush1.bf16.msra.mxu0 %v810
      %829 = vmatprep.subr.bf16.mxu0 0
      %830 = vmatpush1.bf16.msra.mxu0 %v811
      %831 = vmatprep.subr.bf16.mxu0 0
      %832 = vmatpush1.bf16.msra.mxu0 %v812
      %833 = vmatprep.subr.bf16.mxu0 0
      %834 = vmatpush1.bf16.msra.mxu0 %v813
      %835 = vmatprep.subr.bf16.mxu0 0
      %836 = vmatpush1.bf16.msra.mxu0 %v814
      %837 = vmatprep.subr.bf16.mxu0 0
      %838 = vmatpush1.bf16.msra.mxu0 %v815
      %839 = vmatprep.subr.bf16.mxu0 0
      %840 = vmatpush1.bf16.msra.mxu0 %v816
      %841 = vmatprep.subr.bf16.mxu0 0
      %842 = vmatpush1.bf16.msra.mxu0 0
      %843 = vmatprep.subr.bf16.mxu0 0
      %844 = vmatpush1.bf16.msra.mxu0 0
      %845 = vmatprep.subr.bf16.mxu0 0
      %846 = vmatpush1.bf16.msra.mxu0 0
      %847 = vmatprep.subr.bf16.mxu0 0
      %848 = vmatpush1.bf16.msra.mxu0 0
      %849 = vmatprep.subr.bf16.mxu0 0
      %850 = vmatpush1.bf16.msra.mxu0 0
      %851 = vmatprep.subr.bf16.mxu0 0
      %852 = vmatpush1.bf16.msra.mxu0 0
      %853 = vmatprep.subr.bf16.mxu0 0
      %854 = vmatpush1.bf16.msra.mxu0 0
      %855 = vmatprep.subr.bf16.mxu0 0
      %856 = vmatpush1.bf16.msra.mxu0 0
      %857 = vmatprep.mubr.bf16.mxu0 0
      %858 = vmatmul.mubr.bf16.gmra.mrb[0].mxu0 %v753
      %v859 = vpop.f32.mrb[0].mxu0
      %v860 = vadd.f32 %v775, %v859
      %v861 = vpop.f32.mrb[0].mxu0
      %v862 = vpop.f32.mrb[0].mxu0
      %v863 = vadd.f32 %v775, %v862
      %v864 = vpop.f32.mrb[0].mxu0
      %865 = vdwg.mxu0
      %v866 = vmax.f32 %v860, 0.0
      %v867 = vmax.f32 %v863, 0.0
      %v868 = vpack.c.bf16 %v867, %v866
      %v869 = vld [vmem:[%s6] sm:$0xf]
      %v870 = vld [vmem:[%s6 + $0x4] sm:$0xf]
      %v871 = vld [vmem:[%s6 + $0x8] sm:$0xf]
      %v872 = vld [vmem:[%s6 + $0xc] sm:$0xf]
      %v873 = vld [vmem:[%s6 + $0x10] sm:$0xf]
      %v874 = vld [vmem:[%s6 + $0x14] sm:$0xf]
      %v875 = vld [vmem:[%s6 + $0x18] sm:$0xf]
      %v876 = vld [vmem:[%s6 + $0x1c] sm:$0xf]
      %v877 = vld [vmem:[%s6 + $0x20] sm:$0xf]
      %v878 = vld [vmem:[%s6 + $0x24] sm:$0xf]
      %v879 = vld [vmem:[%s6 + $0x28] sm:$0xf]
      %v880 = vld [vmem:[%s6 + $0x2c] sm:$0xf]
      %v881 = vld [vmem:[%s6 + $0x30] sm:$0xf]
      %v882 = vld [vmem:[%s6 + $0x34] sm:$0xf]
      %v883 = vld [vmem:[%s6 + $0x38] sm:$0xf]
      %v884 = vld [vmem:[%s6 + $0x3c] sm:$0xf]
      %v885 = vld [vmem:[%s7] sm:$0x1]
      %v887 = vlaneseq
      %v888 = vshrl.u32 %v887, 7
      %v889 = vsub.s32 0, %v888
      %v890 = vrot.slane %v885, %v889
      %v908 = vunpack.c.l.b16 %v869
      %v909 = vunpack.c.l.b16 %v870
      %v910 = vunpack.c.l.b16 %v871
      %v911 = vunpack.c.l.b16 %v872
      %v912 = vunpack.c.l.b16 %v873
      %v913 = vunpack.c.l.b16 %v874
      %v914 = vunpack.c.l.b16 %v875
      %v915 = vunpack.c.l.b16 %v876
      %v916 = vunpack.c.l.b16 %v877
      %v917 = vunpack.c.l.b16 %v878
      %v918 = vunpack.c.l.b16 %v879
      %v919 = vunpack.c.l.b16 %v880
      %v920 = vunpack.c.l.b16 %v881
      %v921 = vunpack.c.l.b16 %v882
      %v922 = vunpack.c.l.b16 %v883
      %v923 = vunpack.c.l.b16 %v884
      %v924 = vpack.c.b16 %v909, %v908
      %v925 = vpack.c.b16 %v911, %v910
      %v926 = vpack.c.b16 %v913, %v912
      %v927 = vpack.c.b16 %v915, %v914
      %v928 = vpack.c.b16 %v917, %v916
      %v929 = vpack.c.b16 %v919, %v918
      %v930 = vpack.c.b16 %v921, %v920
      %v931 = vpack.c.b16 %v923, %v922
      %940 = vmatprep.subr.bf16.mxu0 0
      %941 = vmatpush1.bf16.msra.mxu0 %v924
      %942 = vmatprep.subr.bf16.mxu0 0
      %943 = vmatpush1.bf16.msra.mxu0 %v925
      %944 = vmatprep.subr.bf16.mxu0 0
      %945 = vmatpush1.bf16.msra.mxu0 %v926
      %946 = vmatprep.subr.bf16.mxu0 0
      %947 = vmatpush1.bf16.msra.mxu0 %v927
      %948 = vmatprep.subr.bf16.mxu0 0
      %949 = vmatpush1.bf16.msra.mxu0 %v928
      %950 = vmatprep.subr.bf16.mxu0 0
      %951 = vmatpush1.bf16.msra.mxu0 %v929
      %952 = vmatprep.subr.bf16.mxu0 0
      %953 = vmatpush1.bf16.msra.mxu0 %v930
      %954 = vmatprep.subr.bf16.mxu0 0
      %955 = vmatpush1.bf16.msra.mxu0 %v931
      %956 = vmatprep.subr.bf16.mxu0 0
      %957 = vmatpush1.bf16.msra.mxu0 0
      %958 = vmatprep.subr.bf16.mxu0 0
      %959 = vmatpush1.bf16.msra.mxu0 0
      %960 = vmatprep.subr.bf16.mxu0 0
      %961 = vmatpush1.bf16.msra.mxu0 0
      %962 = vmatprep.subr.bf16.mxu0 0
      %963 = vmatpush1.bf16.msra.mxu0 0
      %964 = vmatprep.subr.bf16.mxu0 0
      %965 = vmatpush1.bf16.msra.mxu0 0
      %966 = vmatprep.subr.bf16.mxu0 0
      %967 = vmatpush1.bf16.msra.mxu0 0
      %968 = vmatprep.subr.bf16.mxu0 0
      %969 = vmatpush1.bf16.msra.mxu0 0
      %970 = vmatprep.subr.bf16.mxu0 0
      %971 = vmatpush1.bf16.msra.mxu0 0
      %972 = vmatprep.mubr.bf16.mxu0 0
      %973 = vmatmul.mubr.bf16.gmra.mrb[0].mxu0 %v868
      %v974 = vpop.f32.mrb[0].mxu0
      %v975 = vadd.f32 %v890, %v974
      %v976 = vpop.f32.mrb[0].mxu0
      %v977 = vpop.f32.mrb[0].mxu0
      %v978 = vadd.f32 %v890, %v977
      %v979 = vpop.f32.mrb[0].mxu0
      %980 = vdwg.mxu0
      %981 = vst [vmem:[%s325] sm:$0xff] %v975
      %982 = vst [vmem:[%s325 + $0x8] sm:$0xff] %v978
      %p983 = scmp.lt.s32.totalorder %s19, 1
      %s984 = scalar_select %p983, %s19, 1
      %s985 = smul.addr %s984, 2
      %s986 = smul.addr %s985, 8
      %s987 = scalar_lea.vmem %s8, %s986
      // Predicated region
      $region53: #{generalized_rcnn_forward.3} parent=51 // pred_check
        %p988 = pneg %p215
      $region54: #{generalized_rcnn_forward.3} parent=51 // pred_check_branch
        %990 = sbr.rel (%p988) target = $region56
      $region55: #{generalized_rcnn_forward.3} parent=51 // pred_region
        _
      $region56: #{generalized_rcnn_forward.3} parent=51 // pred_fallthru
        _
    $region52: #{generalized_rcnn_forward.3} parent=5 // pred_fallthru
      _
    %p991 = scmp.le.s32.totalorder 2, %s14
    // Predicated region
    $region57: #{generalized_rcnn_forward.3} parent=5 // pred_check
      %p992 = pneg %p991
    $region58: #{generalized_rcnn_forward.3} parent=5 // pred_check_branch
      %994 = sbr.rel (%p992) target = $region60
    $region59: #{generalized_rcnn_forward.3} parent=5 // pred_region
      %s995 = ssub.s32 %s14, 2
      // Predicated region
      $region61: #{generalized_rcnn_forward.3} parent=59 // pred_check
        %p996 = pneg %p221
      $region62: #{generalized_rcnn_forward.3} parent=59 // pred_check_branch
        %998 = sbr.rel (%p996) target = $region64
      $region63: #{generalized_rcnn_forward.3} parent=59 // pred_region
        %p999 = scmp.lt.s32.totalorder %s20, 1
        %s1000 = scalar_select %p999, %s20, 1
        %s1001 = smul.addr %s1000, 2
        %s1002 = smul.addr %s1001, 8
        %s1003 = scalar_lea.vmem %s8, %s1002
      $region64: #{generalized_rcnn_forward.3} parent=59 // pred_fallthru
        _
    $region60: #{generalized_rcnn_forward.3} parent=5 // pred_fallthru
      _
  $region6: #{generalized_rcnn_forward.3} parent=0 // loop_footer
    %s18 = sadd.s32 1, %s14
  $region7: #{generalized_rcnn_forward.3} parent=0 // loop_footer_branch
    %13 = sbr.rel target = $region3
  $region8: #{generalized_rcnn_forward.3} parent=0 // loop_exit
    _

// kernel: generalized_rcnn_forward.2
$region0: #{generalized_rcnn_forward.2}
  #allocation0 [shape = 'u32[]', space=smem, size = 0x4, offset = 0x4, fixed_abs, tag = 'smem constant byte address 0x4 - core index']
  #allocation1 [shape = 'u32[144,128]{1,0:T(1,128)}', space=vmem, size = 0x12000, scoped, tag = 'internal scratch']
  #allocation2 [shape = 'bf16[16,16,36]{2,1,0:T(16,128)(2,1)}', space=vmem, size = 0x10000, scoped, tag = 'scratch operand']
  #allocation3 [shape = 'f32[18,18,8]{2,1,0:T(8,128)}', space=vmem, size = 0x36000, scoped, tag = 'scratch operand']
  #allocation4 [shape = 'bf16[16,16,72]{2,1,0:T(16,128)(2,1)}', space=vmem, size = 0x10000, scoped, tag = 'scratch operand']
  %s0 = inlined_call_operand.vmem [shape: f32[2,18,18,4], index: 0, kind: input, shape index: {}]
  %s1 = inlined_call_operand.vmem [shape: bf16[36,8], index: 1, kind: input, shape index: {}]
  %s2 = inlined_call_operand.vmem [shape: f32[1,8], index: 2, kind: input, shape index: {}]
  %s3 = inlined_call_operand.vmem [shape: bf16[72,128], index: 3, kind: input, shape index: {}]
  %s4 = inlined_call_operand.vmem [shape: f32[1,128], index: 4, kind: input, shape index: {}]
  %s5 = inlined_call_operand.vmem [shape: bf16[2,256,128], index: 5, kind: output, shape index: {}]
  %s6 = sld [smem:[#allocation0]]
  $region53: #{generalized_rcnn_forward.2} parent=0
    _
  %s8 = ssub.s32 1, %s6
  %s9 = scalar_select 0, %s8, %s6
  loop: start=0, step=1, limit=4
  $region2: #{generalized_rcnn_forward.2} parent=0 // loop_pre_header
    _
  $region3: #{generalized_rcnn_forward.2} parent=0 // loop_header
    %s11 = sphi 0, %s15
    %p12 = scmp.ge.s32.totalorder %s11, 4
    %s21 = sphi 0, %s23
    %s24 = sphi 0, %s21
    %s25 = sphi 0, %s24
    %s41 = sphi 0, %s25
    %s45 = sphi 0, %s45
    %s47 = sphi 0, %s45
    %s48 = sphi 0, %s47
    %s62 = sphi 0, %s48
    %s66 = sphi 0, %s66
    %s68 = sphi 0, %s66
    %s69 = sphi 0, %s68
    %s83 = sphi 0, %s69
    %s87 = sphi 0, %s87
    %s89 = sphi 0, %s87
    %s90 = sphi 0, %s89
    %s104 = sphi 0, %s90
    %s108 = sphi 0, %s108
    %s110 = sphi 0, %s108
    %s111 = sphi 0, %s110
    %s125 = sphi 0, %s111
    %s131 = sphi 0, %s133
    %s134 = sphi 0, %s131
    %s135 = sphi 0, %s134
    %s151 = sphi 0, %s135
  $region4: #{generalized_rcnn_forward.2} parent=0 // loop_header_branch
    %14 = sbr.rel (%p12) target = $region8
  $region5: #{generalized_rcnn_forward.2} parent=0 // loop_body
    %s16 = ssub.s32 %s11, 1
    %s17 = ssub.s32 %s11, 2
    %s18 = sadd.s32 %s11, 1
    %s19 = ssub.s32 %s11, %s18
    %p20 = scmp.eq.s32.totalorder %s19, 0
    %s22 = sadd.s32 %s21, 1
    %s23 = scalar_select %p20, %s21, %s22
    %p26 = pneg %p20
    %p27 = scmp.eq.s32.totalorder %s11, 1
    %p28 = por %p26, %p27
    %p29 = scmp.ne.s32.totalorder %s21, %s24
    %p30 = scmp.eq.s32.totalorder %s11, 0
    %p31 = por %p29, %p30
    %p32 = scmp.ne.s32.totalorder %s21, %s24
    %p33 = scmp.eq.s32.totalorder %s16, 1
    %p34 = por %p32, %p33
    %p35 = scmp.ne.s32.totalorder %s24, %s25
    %p36 = scmp.eq.s32.totalorder %s16, 0
    %p37 = por %p35, %p36
    %p38 = scmp.ne.s32.totalorder %s24, %s25
    %p39 = scmp.eq.s32.totalorder %s17, 1
    %p40 = por %p38, %p39
    %p42 = scmp.ne.s32.totalorder %s25, %s41
    %p43 = scmp.eq.s32.totalorder %s17, 0
    %p44 = por %p42, %p43
    %s46 = sadd.s32 %s45, 1
    %p49 = scmp.eq.s32.totalorder %s11, 1
    %p50 = scmp.ne.s32.totalorder %s45, %s47
    %p51 = scmp.eq.s32.totalorder %s11, 0
    %p52 = por %p50, %p51
    %p53 = scmp.ne.s32.totalorder %s45, %s47
    %p54 = scmp.eq.s32.totalorder %s16, 1
    %p55 = por %p53, %p54
    %p56 = scmp.ne.s32.totalorder %s47, %s48
    %p57 = scmp.eq.s32.totalorder %s16, 0
    %p58 = por %p56, %p57
    %p59 = scmp.ne.s32.totalorder %s47, %s48
    %p60 = scmp.eq.s32.totalorder %s17, 1
    %p61 = por %p59, %p60
    %p63 = scmp.ne.s32.totalorder %s48, %s62
    %p64 = scmp.eq.s32.totalorder %s17, 0
    %p65 = por %p63, %p64
    %s67 = sadd.s32 %s66, 1
    %p70 = scmp.eq.s32.totalorder %s11, 1
    %p71 = scmp.ne.s32.totalorder %s66, %s68
    %p72 = scmp.eq.s32.totalorder %s11, 0
    %p73 = por %p71, %p72
    %p74 = scmp.ne.s32.totalorder %s66, %s68
    %p75 = scmp.eq.s32.totalorder %s16, 1
    %p76 = por %p74, %p75
    %p77 = scmp.ne.s32.totalorder %s68, %s69
    %p78 = scmp.eq.s32.totalorder %s16, 0
    %p79 = por %p77, %p78
    %p80 = scmp.ne.s32.totalorder %s68, %s69
    %p81 = scmp.eq.s32.totalorder %s17, 1
    %p82 = por %p80, %p81
    %p84 = scmp.ne.s32.totalorder %s69, %s83
    %p85 = scmp.eq.s32.totalorder %s17, 0
    %p86 = por %p84, %p85
    %s88 = sadd.s32 %s87, 1
    %p91 = scmp.eq.s32.totalorder %s11, 1
    %p92 = scmp.ne.s32.totalorder %s87, %s89
    %p93 = scmp.eq.s32.totalorder %s11, 0
    %p94 = por %p92, %p93
    %p95 = scmp.ne.s32.totalorder %s87, %s89
    %p96 = scmp.eq.s32.totalorder %s16, 1
    %p97 = por %p95, %p96
    %p98 = scmp.ne.s32.totalorder %s89, %s90
    %p99 = scmp.eq.s32.totalorder %s16, 0
    %p100 = por %p98, %p99
    %p101 = scmp.ne.s32.totalorder %s89, %s90
    %p102 = scmp.eq.s32.totalorder %s17, 1
    %p103 = por %p101, %p102
    %p105 = scmp.ne.s32.totalorder %s90, %s104
    %p106 = scmp.eq.s32.totalorder %s17, 0
    %p107 = por %p105, %p106
    %s109 = sadd.s32 %s108, 1
    %p112 = scmp.eq.s32.totalorder %s11, 1
    %p113 = scmp.ne.s32.totalorder %s108, %s110
    %p114 = scmp.eq.s32.totalorder %s11, 0
    %p115 = por %p113, %p114
    %p116 = scmp.ne.s32.totalorder %s108, %s110
    %p117 = scmp.eq.s32.totalorder %s16, 1
    %p118 = por %p116, %p117
    %p119 = scmp.ne.s32.totalorder %s110, %s111
    %p120 = scmp.eq.s32.totalorder %s16, 0
    %p121 = por %p119, %p120
    %p122 = scmp.ne.s32.totalorder %s110, %s111
    %p123 = scmp.eq.s32.totalorder %s17, 1
    %p124 = por %p122, %p123
    %p126 = scmp.ne.s32.totalorder %s111, %s125
    %p127 = scmp.eq.s32.totalorder %s17, 0
    %p128 = por %p126, %p127
    %s129 = ssub.s32 %s11, %s18
    %p130 = scmp.eq.s32.totalorder %s129, 0
    %s132 = sadd.s32 %s131, 1
    %s133 = scalar_select %p130, %s131, %s132
    %p136 = pneg %p130
    %p137 = scmp.eq.s32.totalorder %s11, 1
    %p138 = por %p136, %p137
    %p139 = scmp.ne.s32.totalorder %s131, %s134
    %p140 = scmp.eq.s32.totalorder %s11, 0
    %p141 = por %p139, %p140
    %p142 = scmp.ne.s32.totalorder %s131, %s134
    %p143 = scmp.eq.s32.totalorder %s16, 1
    %p144 = por %p142, %p143
    %p145 = scmp.ne.s32.totalorder %s134, %s135
    %p146 = scmp.eq.s32.totalorder %s16, 0
    %p147 = por %p145, %p146
    %p148 = scmp.ne.s32.totalorder %s134, %s135
    %p149 = scmp.eq.s32.totalorder %s17, 1
    %p150 = por %p148, %p149
    %p152 = scmp.ne.s32.totalorder %s135, %s151
    %p153 = scmp.eq.s32.totalorder %s17, 0
    %p154 = por %p152, %p153
    %p155 = scmp.le.s32.totalorder 1, %s11
    %p156 = scmp.lt.s32.totalorder %s11, 3
    %p157 = pnand %p155, %p156
    %p158 = pneg %p157
    // Predicated region
    $region9: #{generalized_rcnn_forward.2} parent=5 // pred_check
      _
    $region10: #{generalized_rcnn_forward.2} parent=5 // pred_check_branch
      %160 = sbr.rel (%p157) target = $region12
    $region11: #{generalized_rcnn_forward.2} parent=5 // pred_region
      %s161 = ssub.s32 %s11, 1
      // Predicated region
      $region13: #{generalized_rcnn_forward.2} parent=11 // pred_check
        %p162 = pneg %p58
      $region14: #{generalized_rcnn_forward.2} parent=11 // pred_check_branch
        %164 = sbr.rel (%p162) target = $region16
      $region15: #{generalized_rcnn_forward.2} parent=11 // pred_region
        _
      $region16: #{generalized_rcnn_forward.2} parent=11 // pred_fallthru
        _
      // Predicated region
      $region17: #{generalized_rcnn_forward.2} parent=11 // pred_check
        %p165 = pneg %p79
      $region18: #{generalized_rcnn_forward.2} parent=11 // pred_check_branch
        %167 = sbr.rel (%p165) target = $region20
      $region19: #{generalized_rcnn_forward.2} parent=11 // pred_region
        _
      $region20: #{generalized_rcnn_forward.2} parent=11 // pred_fallthru
        _
      // Predicated region
      $region21: #{generalized_rcnn_forward.2} parent=11 // pred_check
        %p168 = pneg %p100
      $region22: #{generalized_rcnn_forward.2} parent=11 // pred_check_branch
        %170 = sbr.rel (%p168) target = $region24
      $region23: #{generalized_rcnn_forward.2} parent=11 // pred_region
        _
      $region24: #{generalized_rcnn_forward.2} parent=11 // pred_fallthru
        _
      // Predicated region
      $region25: #{generalized_rcnn_forward.2} parent=11 // pred_check
        %p171 = pneg %p121
      $region26: #{generalized_rcnn_forward.2} parent=11 // pred_check_branch
        %173 = sbr.rel (%p171) target = $region28
      $region27: #{generalized_rcnn_forward.2} parent=11 // pred_region
        _
      $region28: #{generalized_rcnn_forward.2} parent=11 // pred_fallthru
        _
    $region12: #{generalized_rcnn_forward.2} parent=5 // pred_fallthru
      _
    %p174 = scmp.lt.s32.totalorder %s11, 2
    // Predicated region
    $region29: #{generalized_rcnn_forward.2} parent=5 // pred_check
      %p175 = pneg %p174
    $region30: #{generalized_rcnn_forward.2} parent=5 // pred_check_branch
      %177 = sbr.rel (%p175) target = $region32
    $region31: #{generalized_rcnn_forward.2} parent=5 // pred_region
      // Predicated region
      $region33: #{generalized_rcnn_forward.2} parent=31 // pred_check
        %p178 = pneg %p31
      $region34: #{generalized_rcnn_forward.2} parent=31 // pred_check_branch
        %180 = sbr.rel (%p178) target = $region36
      $region35: #{generalized_rcnn_forward.2} parent=31 // pred_region
        %p181 = scmp.lt.s32.totalorder %s11, 1
        %s182 = scalar_select %p181, %s11, 1
        %s183 = smul.addr %s182, 54
        %s184 = smul.addr %s183, 8
        %s185 = scalar_lea.vmem %s0, %s184
      $region36: #{generalized_rcnn_forward.2} parent=31 // pred_fallthru
        _
    $region32: #{generalized_rcnn_forward.2} parent=5 // pred_fallthru
      _
    %p186 = scmp.le.s32.totalorder 1, %s11
    %p187 = scmp.lt.s32.totalorder %s11, 3
    %p188 = pnand %p186, %p187
    %p189 = pneg %p188
    // Predicated region
    $region37: #{generalized_rcnn_forward.2} parent=5 // pred_check
      _
    $region38: #{generalized_rcnn_forward.2} parent=5 // pred_check_branch
      %191 = sbr.rel (%p188) target = $region40
    $region39: #{generalized_rcnn_forward.2} parent=5 // pred_region
      %s192 = ssub.s32 %s11, 1
      %p193 = scmp.lt.s32.totalorder %s16, 1
      %s194 = scalar_select %p193, %s16, 1
      %s195 = smul.addr %s194, 54
      %s196 = smul.addr %s195, 8
      %s197 = scalar_lea.vmem %s0, %s196
      %p198 = pneg %p37
      %p199 = pneg %p34
      %p200 = pneg %p58
      %p201 = pneg %p55
      %p202 = pneg %p79
      %p203 = pneg %p76
      %p204 = pneg %p100
      %p205 = pneg %p97
      %p206 = pneg %p121
      %p207 = pneg %p118
      %p208 = pneg %p147
      %p209 = pneg %p144
      %p210 = scmp.lt.s32.totalorder %s16, 1
      %s211 = scalar_select %p210, %s16, 1
      %s212 = smul.addr %s211, 32
      %s213 = smul.addr %s212, 4
      %s214 = scalar_lea.vmem %s5, %s213
      %p215 = scmp.lt.s32.totalorder %s16, 1
      %s216 = scalar_select %p215, %s16, 1
      %s217 = smul.addr %s216, 54
      %s218 = smul.addr %s217, 8
      %s219 = scalar_lea.vmem %s0, %s218
      %p220 = scmp.lt.s32.totalorder %s16, 1
      %s221 = scalar_select %p220, %s16, 1
      %s222 = smul.addr %s221, 32
      %s223 = smul.addr %s222, 4
      %s224 = scalar_lea.vmem %s5, %s223
      %v226 = vld [vmem:[%s219] sm:$0xff]
      %v227 = vld [vmem:[%s219 + $0x8] sm:$0xff]
      %v228 = vld [vmem:[%s219 + $0x18] sm:$0xff]
      %v229 = vld [vmem:[%s219 + $0x20] sm:$0xff]
      %v230 = vld [vmem:[%s219 + $0x30] sm:$0xff]
      %v231 = vld [vmem:[%s219 + $0x38] sm:$0xff]
      %v232 = vld [vmem:[%s219 + $0x48] sm:$0xff]
      %v233 = vld [vmem:[%s219 + $0x50] sm:$0xff]
      %v234 = vld [vmem:[%s219 + $0x60] sm:$0xff]
      %v235 = vld [vmem:[%s219 + $0x68] sm:$0xff]
      %v236 = vld [vmem:[%s219 + $0x78] sm:$0xff]
      %v237 = vld [vmem:[%s219 + $0x80] sm:$0xff]
      %v238 = vld [vmem:[%s219 + $0x90] sm:$0xff]
      %v239 = vld [vmem:[%s219 + $0x98] sm:$0xff]
      %v240 = vld [vmem:[%s219 + $0xa8] sm:$0xff]
      %v241 = vld [vmem:[%s219 + $0xb0] sm:$0xff]
      %v242 = vld [vmem:[%s219 + $0xc0] sm:$0xff]
      %v243 = vld [vmem:[%s219 + $0xc8] sm:$0xff]
      %v244 = vld [vmem:[%s219 + $0xd8] sm:$0xff]
      %v245 = vld [vmem:[%s219 + $0xe0] sm:$0xff]
      %v246 = vld [vmem:[%s219 + $0xf0] sm:$0xff]
      %v247 = vld [vmem:[%s219 + $0xf8] sm:$0xff]
      %v248 = vld [vmem:[%s219 + $0x108] sm:$0xff]
      %v249 = vld [vmem:[%s219 + $0x110] sm:$0xff]
      %v250 = vld [vmem:[%s219 + $0x120] sm:$0xff]
      %v251 = vld [vmem:[%s219 + $0x128] sm:$0xff]
      %v252 = vld [vmem:[%s219 + $0x138] sm:$0xff]
      %v253 = vld [vmem:[%s219 + $0x140] sm:$0xff]
      %v254 = vld [vmem:[%s219 + $0x150] sm:$0xff]
      %v255 = vld [vmem:[%s219 + $0x158] sm:$0xff]
      %v256 = vld [vmem:[%s219 + $0x168] sm:$0xff]
      %v257 = vld [vmem:[%s219 + $0x170] sm:$0xff]
      %v258 = vpack.c.bf16 %v227, %v226
      %v259 = vpack.c.bf16 %v229, %v228
      %v260 = vpack.c.bf16 %v231, %v230
      %v261 = vpack.c.bf16 %v233, %v232
      %v262 = vpack.c.bf16 %v235, %v234
      %v263 = vpack.c.bf16 %v237, %v236
      %v264 = vpack.c.bf16 %v239, %v238
      %v265 = vpack.c.bf16 %v241, %v240
      %v266 = vpack.c.bf16 %v243, %v242
      %v267 = vpack.c.bf16 %v245, %v244
      %v268 = vpack.c.bf16 %v247, %v246
      %v269 = vpack.c.bf16 %v249, %v248
      %v270 = vpack.c.bf16 %v251, %v250
      %v271 = vpack.c.bf16 %v253, %v252
      %v272 = vpack.c.bf16 %v255, %v254
      %v273 = vpack.c.bf16 %v257, %v256
      %vm274 = vcmask 31744
      %275 = vst.msk [vmem:[#allocation2] sm:$0xff] %vm274, %v258
      %276 = vst.msk [vmem:[#allocation2 + $0x8] sm:$0xff] %vm274, %v259
      %277 = vst.msk [vmem:[#allocation2 + $0x10] sm:$0xff] %vm274, %v260
      %278 = vst.msk [vmem:[#allocation2 + $0x18] sm:$0xff] %vm274, %v261
      %279 = vst.msk [vmem:[#allocation2 + $0x20] sm:$0xff] %vm274, %v262
      %280 = vst.msk [vmem:[#allocation2 + $0x28] sm:$0xff] %vm274, %v263
      %281 = vst.msk [vmem:[#allocation2 + $0x30] sm:$0xff] %vm274, %v264
      %282 = vst.msk [vmem:[#allocation2 + $0x38] sm:$0xff] %vm274, %v265
      %283 = vst.msk [vmem:[#allocation2 + $0x40] sm:$0xff] %vm274, %v266
      %284 = vst.msk [vmem:[#allocation2 + $0x48] sm:$0xff] %vm274, %v267
      %285 = vst.msk [vmem:[#allocation2 + $0x50] sm:$0xff] %vm274, %v268
      %286 = vst.msk [vmem:[#allocation2 + $0x58] sm:$0xff] %vm274, %v269
      %287 = vst.msk [vmem:[#allocation2 + $0x60] sm:$0xff] %vm274, %v270
      %288 = vst.msk [vmem:[#allocation2 + $0x68] sm:$0xff] %vm274, %v271
      %289 = vst.msk [vmem:[#allocation2 + $0x70] sm:$0xff] %vm274, %v272
      %290 = vst.msk [vmem:[#allocation2 + $0x78] sm:$0xff] %vm274, %v273
      %v291 = vld [vmem:[%s219 + $0x1] sm:$0xff]
      %v292 = vld [vmem:[%s219 + $0x9] sm:$0xff]
      %v293 = vld [vmem:[%s219 + $0x19] sm:$0xff]
      %v294 = vld [vmem:[%s219 + $0x21] sm:$0xff]
      %v295 = vld [vmem:[%s219 + $0x31] sm:$0xff]
      %v296 = vld [vmem:[%s219 + $0x39] sm:$0xff]
      %v297 = vld [vmem:[%s219 + $0x49] sm:$0xff]
      %v298 = vld [vmem:[%s219 + $0x51] sm:$0xff]
      %v299 = vld [vmem:[%s219 + $0x61] sm:$0xff]
      %v300 = vld [vmem:[%s219 + $0x69] sm:$0xff]
      %v301 = vld [vmem:[%s219 + $0x79] sm:$0xff]
      %v302 = vld [vmem:[%s219 + $0x81] sm:$0xff]
      %v303 = vld [vmem:[%s219 + $0x91] sm:$0xff]
      %v304 = vld [vmem:[%s219 + $0x99] sm:$0xff]
      %v305 = vld [vmem:[%s219 + $0xa9] sm:$0xff]
      %v306 = vld [vmem:[%s219 + $0xb1] sm:$0xff]
      %v307 = vld [vmem:[%s219 + $0xc1] sm:$0xff]
      %v308 = vld [vmem:[%s219 + $0xc9] sm:$0xff]
      %v309 = vld [vmem:[%s219 + $0xd9] sm:$0xff]
      %v310 = vld [vmem:[%s219 + $0xe1] sm:$0xff]
      %v311 = vld [vmem:[%s219 + $0xf1] sm:$0xff]
      %v312 = vld [vmem:[%s219 + $0xf9] sm:$0xff]
      %v313 = vld [vmem:[%s219 + $0x109] sm:$0xff]
      %v314 = vld [vmem:[%s219 + $0x111] sm:$0xff]
      %v315 = vld [vmem:[%s219 + $0x121] sm:$0xff]
      %v316 = vld [vmem:[%s219 + $0x129] sm:$0xff]
      %v317 = vld [vmem:[%s219 + $0x139] sm:$0xff]
      %v318 = vld [vmem:[%s219 + $0x141] sm:$0xff]
      %v319 = vld [vmem:[%s219 + $0x151] sm:$0xff]
      %v320 = vld [vmem:[%s219 + $0x159] sm:$0xff]
      %v321 = vld [vmem:[%s219 + $0x169] sm:$0xff]
      %v322 = vld [vmem:[%s219 + $0x171] sm:$0xff]
      %v323 = vpack.c.bf16 %v292, %v291
      %v324 = vpack.c.bf16 %v294, %v293
      %v325 = vpack.c.bf16 %v296, %v295
      %v326 = vpack.c.bf16 %v298, %v297
      %v327 = vpack.c.bf16 %v300, %v299
      %v328 = vpack.c.bf16 %v302, %v301
      %v329 = vpack.c.bf16 %v304, %v303
      %v330 = vpack.c.bf16 %v306, %v305
      %v331 = vpack.c.bf16 %v308, %v307
      %v332 = vpack.c.bf16 %v310, %v309
      %v333 = vpack.c.bf16 %v312, %v311
      %v334 = vpack.c.bf16 %v314, %v313
      %v335 = vpack.c.bf16 %v316, %v315
      %v336 = vpack.c.bf16 %v318, %v317
      %v337 = vpack.c.bf16 %v320, %v319
      %v338 = vpack.c.bf16 %v322, %v321
      %355 = vrot.lane.b32.xlu0 %v323, 4
      %v356 = vpop.permute.xlu0 %355
      %357 = vrot.lane.b32.xlu0 %v324, 4
      %v358 = vpop.permute.xlu0 %357
      %359 = vrot.lane.b32.xlu0 %v325, 4
      %v360 = vpop.permute.xlu0 %359
      %361 = vrot.lane.b32.xlu0 %v326, 4
      %v362 = vpop.permute.xlu0 %361
      %363 = vrot.lane.b32.xlu0 %v327, 4
      %v364 = vpop.permute.xlu0 %363
      %365 = vrot.lane.b32.xlu0 %v328, 4
      %v366 = vpop.permute.xlu0 %365
      %367 = vrot.lane.b32.xlu0 %v329, 4
      %v368 = vpop.permute.xlu0 %367
      %369 = vrot.lane.b32.xlu0 %v330, 4
      %v370 = vpop.permute.xlu0 %369
      %371 = vrot.lane.b32.xlu0 %v331, 4
      %v372 = vpop.permute.xlu0 %371
      %373 = vrot.lane.b32.xlu0 %v332, 4
      %v374 = vpop.permute.xlu0 %373
      %375 = vrot.lane.b32.xlu0 %v333, 4
      %v376 = vpop.permute.xlu0 %375
      %377 = vrot.lane.b32.xlu0 %v334, 4
      %v378 = vpop.permute.xlu0 %377
      %379 = vrot.lane.b32.xlu0 %v335, 4
      %v380 = vpop.permute.xlu0 %379
      %381 = vrot.lane.b32.xlu0 %v336, 4
      %v382 = vpop.permute.xlu0 %381
      %383 = vrot.lane.b32.xlu0 %v337, 4
      %v384 = vpop.permute.xlu0 %383
      %385 = vrot.lane.b32.xlu0 %v338, 4
      %v386 = vpop.permute.xlu0 %385
      %vm403 = vcmask 64544
      %404 = vst.msk [vmem:[#allocation2] sm:$0xff] %vm403, %v356
      %405 = vst.msk [vmem:[#allocation2 + $0x8] sm:$0xff] %vm403, %v358
      %406 = vst.msk [vmem:[#allocation2 + $0x10] sm:$0xff] %vm403, %v360
      %407 = vst.msk [vmem:[#allocation2 + $0x18] sm:$0xff] %vm403, %v362
      %408 = vst.msk [vmem:[#allocation2 + $0x20] sm:$0xff] %vm403, %v364
      %409 = vst.msk [vmem:[#allocation2 + $0x28] sm:$0xff] %vm403, %v366
      %410 = vst.msk [vmem:[#allocation2 + $0x30] sm:$0xff] %vm403, %v368
      %411 = vst.msk [vmem:[#allocation2 + $0x38] sm:$0xff] %vm403, %v370
      %412 = vst.msk [vmem:[#allocation2 + $0x40] sm:$0xff] %vm403, %v372
      %413 = vst.msk [vmem:[#allocation2 + $0x48] sm:$0xff] %vm403, %v374
      %414 = vst.msk [vmem:[#allocation2 + $0x50] sm:$0xff] %vm403, %v376
      %415 = vst.msk [vmem:[#allocation2 + $0x58] sm:$0xff] %vm403, %v378
      %416 = vst.msk [vmem:[#allocation2 + $0x60] sm:$0xff] %vm403, %v380
      %417 = vst.msk [vmem:[#allocation2 + $0x68] sm:$0xff] %vm403, %v382
      %418 = vst.msk [vmem:[#allocation2 + $0x70] sm:$0xff] %vm403, %v384
      %419 = vst.msk [vmem:[#allocation2 + $0x78] sm:$0xff] %vm403, %v386
      %v420 = vld [vmem:[%s219 + $0x2] sm:$0xff]
      %v421 = vld [vmem:[%s219 + $0xa] sm:$0xff]
      %v422 = vld [vmem:[%s219 + $0x1a] sm:$0xff]
      %v423 = vld [vmem:[%s219 + $0x22] sm:$0xff]
      %v424 = vld [vmem:[%s219 + $0x32] sm:$0xff]
      %v425 = vld [vmem:[%s219 + $0x3a] sm:$0xff]
      %v426 = vld [vmem:[%s219 + $0x4a] sm:$0xff]
      %v427 = vld [vmem:[%s219 + $0x52] sm:$0xff]
      %v428 = vld [vmem:[%s219 + $0x62] sm:$0xff]
      %v429 = vld [vmem:[%s219 + $0x6a] sm:$0xff]
      %v430 = vld [vmem:[%s219 + $0x7a] sm:$0xff]
      %v431 = vld [vmem:[%s219 + $0x82] sm:$0xff]
      %v432 = vld [vmem:[%s219 + $0x92] sm:$0xff]
      %v433 = vld [vmem:[%s219 + $0x9a] sm:$0xff]
      %v434 = vld [vmem:[%s219 + $0xaa] sm:$0xff]
      %v435 = vld [vmem:[%s219 + $0xb2] sm:$0xff]
      %v436 = vld [vmem:[%s219 + $0xc2] sm:$0xff]
      %v437 = vld [vmem:[%s219 + $0xca] sm:$0xff]
      %v438 = vld [vmem:[%s219 + $0xda] sm:$0xff]
      %v439 = vld [vmem:[%s219 + $0xe2] sm:$0xff]
      %v440 = vld [vmem:[%s219 + $0xf2] sm:$0xff]
      %v441 = vld [vmem:[%s219 + $0xfa] sm:$0xff]
      %v442 = vld [vmem:[%s219 + $0x10a] sm:$0xff]
      %v443 = vld [vmem:[%s219 + $0x112] sm:$0xff]
      %v444 = vld [vmem:[%s219 + $0x122] sm:$0xff]
      %v445 = vld [vmem:[%s219 + $0x12a] sm:$0xff]
      %v446 = vld [vmem:[%s219 + $0x13a] sm:$0xff]
      %v447 = vld [vmem:[%s219 + $0x142] sm:$0xff]
      %v448 = vld [vmem:[%s219 + $0x152] sm:$0xff]
      %v449 = vld [vmem:[%s219 + $0x15a] sm:$0xff]
      %v450 = vld [vmem:[%s219 + $0x16a] sm:$0xff]
      %v451 = vld [vmem:[%s219 + $0x172] sm:$0xff]
      %v452 = vpack.c.bf16 %v421, %v420
      %v453 = vpack.c.bf16 %v423, %v422
      %v454 = vpack.c.bf16 %v425, %v424
      %v455 = vpack.c.bf16 %v427, %v426
      %v456 = vpack.c.bf16 %v429, %v428
      %v457 = vpack.c.bf16 %v431, %v430
      %v458 = vpack.c.bf16 %v433, %v432
      %v459 = vpack.c.bf16 %v435, %v434
      %v460 = vpack.c.bf16 %v437, %v436
      %v461 = vpack.c.bf16 %v439, %v438
      %v462 = vpack.c.bf16 %v441, %v440
      %v463 = vpack.c.bf16 %v443, %v442
      %v464 = vpack.c.bf16 %v445, %v444
      %v465 = vpack.c.bf16 %v447, %v446
      %v466 = vpack.c.bf16 %v449, %v448
      %v467 = vpack.c.bf16 %v451, %v450
      %484 = vrot.lane.b32.xlu0 %v452, 8
      %v485 = vpop.permute.xlu0 %484
      %486 = vrot.lane.b32.xlu0 %v453, 8
      %v487 = vpop.permute.xlu0 %486
      %488 = vrot.lane.b32.xlu0 %v454, 8
      %v489 = vpop.permute.xlu0 %488
      %490 = vrot.lane.b32.xlu0 %v455, 8
      %v491 = vpop.permute.xlu0 %490
      %492 = vrot.lane.b32.xlu0 %v456, 8
      %v493 = vpop.permute.xlu0 %492
      %494 = vrot.lane.b32.xlu0 %v457, 8
      %v495 = vpop.permute.xlu0 %494
      %496 = vrot.lane.b32.xlu0 %v458, 8
      %v497 = vpop.permute.xlu0 %496
      %498 = vrot.lane.b32.xlu0 %v459, 8
      %v499 = vpop.permute.xlu0 %498
      %500 = vrot.lane.b32.xlu0 %v460, 8
      %v501 = vpop.permute.xlu0 %500
      %502 = vrot.lane.b32.xlu0 %v461, 8
      %v503 = vpop.permute.xlu0 %502
      %504 = vrot.lane.b32.xlu0 %v462, 8
      %v505 = vpop.permute.xlu0 %504
      %506 = vrot.lane.b32.xlu0 %v463, 8
      %v507 = vpop.permute.xlu0 %506
      %508 = vrot.lane.b32.xlu0 %v464, 8
      %v509 = vpop.permute.xlu0 %508
      %510 = vrot.lane.b32.xlu0 %v465, 8
      %v511 = vpop.permute.xlu0 %510
      %512 = vrot.lane.b32.xlu0 %v466, 8
      %v513 = vpop.permute.xlu0 %512
      %514 = vrot.lane.b32.xlu0 %v467, 8
      %v515 = vpop.permute.xlu0 %514
      %vm532 = vcmask 97344
      %533 = vst.msk [vmem:[#allocation2] sm:$0xff] %vm532, %v485
      %534 = vst.msk [vmem:[#allocation2 + $0x8] sm:$0xff] %vm532, %v487
      %535 = vst.msk [vmem:[#allocation2 + $0x10] sm:$0xff] %vm532, %v489
      %536 = vst.msk [vmem:[#allocation2 + $0x18] sm:$0xff] %vm532, %v491
      %537 = vst.msk [vmem:[#allocation2 + $0x20] sm:$0xff] %vm532, %v493
      %538 = vst.msk [vmem:[#allocation2 + $0x28] sm:$0xff] %vm532, %v495
      %539 = vst.msk [vmem:[#allocation2 + $0x30] sm:$0xff] %vm532, %v497
      %540 = vst.msk [vmem:[#allocation2 + $0x38] sm:$0xff] %vm532, %v499
      %541 = vst.msk [vmem:[#allocation2 + $0x40] sm:$0xff] %vm532, %v501
      %542 = vst.msk [vmem:[#allocation2 + $0x48] sm:$0xff] %vm532, %v503
      %543 = vst.msk [vmem:[#allocation2 + $0x50] sm:$0xff] %vm532, %v505
      %544 = vst.msk [vmem:[#allocation2 + $0x58] sm:$0xff] %vm532, %v507
      %545 = vst.msk [vmem:[#allocation2 + $0x60] sm:$0xff] %vm532, %v509
      %546 = vst.msk [vmem:[#allocation2 + $0x68] sm:$0xff] %vm532, %v511
      %547 = vst.msk [vmem:[#allocation2 + $0x70] sm:$0xff] %vm532, %v513
      %548 = vst.msk [vmem:[#allocation2 + $0x78] sm:$0xff] %vm532, %v515
      %s549 = scalar_lea.vmem %s219, 24
      %v550 = vld [vmem:[%s549] sm:$0xff]
      %v551 = vld [vmem:[%s549 + $0x8] sm:$0xff]
      %v552 = vld [vmem:[%s549 + $0x18] sm:$0xff]
      %v553 = vld [vmem:[%s549 + $0x20] sm:$0xff]
      %v554 = vld [vmem:[%s549 + $0x30] sm:$0xff]
      %v555 = vld [vmem:[%s549 + $0x38] sm:$0xff]
      %v556 = vld [vmem:[%s549 + $0x48] sm:$0xff]
      %v557 = vld [vmem:[%s549 + $0x50] sm:$0xff]
      %v558 = vld [vmem:[%s549 + $0x60] sm:$0xff]
      %v559 = vld [vmem:[%s549 + $0x68] sm:$0xff]
      %v560 = vld [vmem:[%s549 + $0x78] sm:$0xff]
      %v561 = vld [vmem:[%s549 + $0x80] sm:$0xff]
      %v562 = vld [vmem:[%s549 + $0x90] sm:$0xff]
      %v563 = vld [vmem:[%s549 + $0x98] sm:$0xff]
      %v564 = vld [vmem:[%s549 + $0xa8] sm:$0xff]
      %v565 = vld [vmem:[%s549 + $0xb0] sm:$0xff]
      %v566 = vld [vmem:[%s549 + $0xc0] sm:$0xff]
      %v567 = vld [vmem:[%s549 + $0xc8] sm:$0xff]
      %v568 = vld [vmem:[%s549 + $0xd8] sm:$0xff]
      %v569 = vld [vmem:[%s549 + $0xe0] sm:$0xff]
      %v570 = vld [vmem:[%s549 + $0xf0] sm:$0xff]
      %v571 = vld [vmem:[%s549 + $0xf8] sm:$0xff]
      %v572 = vld [vmem:[%s549 + $0x108] sm:$0xff]
      %v573 = vld [vmem:[%s549 + $0x110] sm:$0xff]
      %v574 = vld [vmem:[%s549 + $0x120] sm:$0xff]
      %v575 = vld [vmem:[%s549 + $0x128] sm:$0xff]
      %v576 = vld [vmem:[%s549 + $0x138] sm:$0xff]
      %v577 = vld [vmem:[%s549 + $0x140] sm:$0xff]
      %v578 = vld [vmem:[%s549 + $0x150] sm:$0xff]
      %v579 = vld [vmem:[%s549 + $0x158] sm:$0xff]
      %v580 = vld [vmem:[%s549 + $0x168] sm:$0xff]
      %v581 = vld [vmem:[%s549 + $0x170] sm:$0xff]
      %v582 = vpack.c.bf16 %v551, %v550
      %v583 = vpack.c.bf16 %v553, %v552
      %v584 = vpack.c.bf16 %v555, %v554
      %v585 = vpack.c.bf16 %v557, %v556
      %v586 = vpack.c.bf16 %v559, %v558
      %v587 = vpack.c.bf16 %v561, %v560
      %v588 = vpack.c.bf16 %v563, %v562
      %v589 = vpack.c.bf16 %v565, %v564
      %v590 = vpack.c.bf16 %v567, %v566
      %v591 = vpack.c.bf16 %v569, %v568
      %v592 = vpack.c.bf16 %v571, %v570
      %v593 = vpack.c.bf16 %v573, %v572
      %v594 = vpack.c.bf16 %v575, %v574
      %v595 = vpack.c.bf16 %v577, %v576
      %v596 = vpack.c.bf16 %v579, %v578
      %v597 = vpack.c.bf16 %v581, %v580
      %614 = vrot.lane.b32.xlu0 %v582, 12
      %v615 = vpop.permute.xlu0 %614
      %616 = vrot.lane.b32.xlu0 %v583, 12
      %v617 = vpop.permute.xlu0 %616
      %618 = vrot.lane.b32.xlu0 %v584, 12
      %v619 = vpop.permute.xlu0 %618
      %620 = vrot.lane.b32.xlu0 %v585, 12
      %v621 = vpop.permute.xlu0 %620
      %622 = vrot.lane.b32.xlu0 %v586, 12
      %v623 = vpop.permute.xlu0 %622
      %624 = vrot.lane.b32.xlu0 %v587, 12
      %v625 = vpop.permute.xlu0 %624
      %626 = vrot.lane.b32.xlu0 %v588, 12
      %v627 = vpop.permute.xlu0 %626
      %628 = vrot.lane.b32.xlu0 %v589, 12
      %v629 = vpop.permute.xlu0 %628
      %630 = vrot.lane.b32.xlu0 %v590, 12
      %v631 = vpop.permute.xlu0 %630
      %632 = vrot.lane.b32.xlu0 %v591, 12
      %v633 = vpop.permute.xlu0 %632
      %634 = vrot.lane.b32.xlu0 %v592, 12
      %v635 = vpop.permute.xlu0 %634
      %636 = vrot.lane.b32.xlu0 %v593, 12
      %v637 = vpop.permute.xlu0 %636
      %638 = vrot.lane.b32.xlu0 %v594, 12
      %v639 = vpop.permute.xlu0 %638
      %640 = vrot.lane.b32.xlu0 %v595, 12
      %v641 = vpop.permute.xlu0 %640
      %642 = vrot.lane.b32.xlu0 %v596, 12
      %v643 = vpop.permute.xlu0 %642
      %644 = vrot.lane.b32.xlu0 %v597, 12
      %v645 = vpop.permute.xlu0 %644
      %vm662 = vcmask 130144
      %663 = vst.msk [vmem:[#allocation2] sm:$0xff] %vm662, %v615
      %664 = vst.msk [vmem:[#allocation2 + $0x8] sm:$0xff] %vm662, %v617
      %665 = vst.msk [vmem:[#allocation2 + $0x10] sm:$0xff] %vm662, %v619
      %666 = vst.msk [vmem:[#allocation2 + $0x18] sm:$0xff] %vm662, %v621
      %667 = vst.msk [vmem:[#allocation2 + $0x20] sm:$0xff] %vm662, %v623
      %668 = vst.msk [vmem:[#allocation2 + $0x28] sm:$0xff] %vm662, %v625
      %669 = vst.msk [vmem:[#allocation2 + $0x30] sm:$0xff] %vm662, %v627
      %670 = vst.msk [vmem:[#allocation2 + $0x38] sm:$0xff] %vm662, %v629
      %671 = vst.msk [vmem:[#allocation2 + $0x40] sm:$0xff] %vm662, %v631
      %672 = vst.msk [vmem:[#allocation2 + $0x48] sm:$0xff] %vm662, %v633
      %673 = vst.msk [vmem:[#allocation2 + $0x50] sm:$0xff] %vm662, %v635
      %674 = vst.msk [vmem:[#allocation2 + $0x58] sm:$0xff] %vm662, %v637
      %675 = vst.msk [vmem:[#allocation2 + $0x60] sm:$0xff] %vm662, %v639
      %676 = vst.msk [vmem:[#allocation2 + $0x68] sm:$0xff] %vm662, %v641
      %677 = vst.msk [vmem:[#allocation2 + $0x70] sm:$0xff] %vm662, %v643
      %678 = vst.msk [vmem:[#allocation2 + $0x78] sm:$0xff] %vm662, %v645
      %v679 = vld [vmem:[%s549 + $0x1] sm:$0xff]
      %v680 = vld [vmem:[%s549 + $0x9] sm:$0xff]
      %v681 = vld [vmem:[%s549 + $0x19] sm:$0xff]
      %v682 = vld [vmem:[%s549 + $0x21] sm:$0xff]
      %v683 = vld [vmem:[%s549 + $0x31] sm:$0xff]
      %v684 = vld [vmem:[%s549 + $0x39] sm:$0xff]
      %v685 = vld [vmem:[%s549 + $0x49] sm:$0xff]
      %v686 = vld [vmem:[%s549 + $0x51] sm:$0xff]
      %v687 = vld [vmem:[%s549 + $0x61] sm:$0xff]
      %v688 = vld [vmem:[%s549 + $0x69] sm:$0xff]
      %v689 = vld [vmem:[%s549 + $0x79] sm:$0xff]
      %v690 = vld [vmem:[%s549 + $0x81] sm:$0xff]
      %v691 = vld [vmem:[%s549 + $0x91] sm:$0xff]
      %v692 = vld [vmem:[%s549 + $0x99] sm:$0xff]
      %v693 = vld [vmem:[%s549 + $0xa9] sm:$0xff]
      %v694 = vld [vmem:[%s549 + $0xb1] sm:$0xff]
      %v695 = vld [vmem:[%s549 + $0xc1] sm:$0xff]
      %v696 = vld [vmem:[%s549 + $0xc9] sm:$0xff]
      %v697 = vld [vmem:[%s549 + $0xd9] sm:$0xff]
      %v698 = vld [vmem:[%s549 + $0xe1] sm:$0xff]
      %v699 = vld [vmem:[%s549 + $0xf1] sm:$0xff]
      %v700 = vld [vmem:[%s549 + $0xf9] sm:$0xff]
      %v701 = vld [vmem:[%s549 + $0x109] sm:$0xff]
      %v702 = vld [vmem:[%s549 + $0x111] sm:$0xff]
      %v703 = vld [vmem:[%s549 + $0x121] sm:$0xff]
      %v704 = vld [vmem:[%s549 + $0x129] sm:$0xff]
      %v705 = vld [vmem:[%s549 + $0x139] sm:$0xff]
      %v706 = vld [vmem:[%s549 + $0x141] sm:$0xff]
      %v707 = vld [vmem:[%s549 + $0x151] sm:$0xff]
      %v708 = vld [vmem:[%s549 + $0x159] sm:$0xff]
      %v709 = vld [vmem:[%s549 + $0x169] sm:$0xff]
      %v710 = vld [vmem:[%s549 + $0x171] sm:$0xff]
      %v711 = vpack.c.bf16 %v680, %v679
      %v712 = vpack.c.bf16 %v682, %v681
      %v713 = vpack.c.bf16 %v684, %v683
      %v714 = vpack.c.bf16 %v686, %v685
      %v715 = vpack.c.bf16 %v688, %v687
      %v716 = vpack.c.bf16 %v690, %v689
      %v717 = vpack.c.bf16 %v692, %v691
      %v718 = vpack.c.bf16 %v694, %v693
      %v719 = vpack.c.bf16 %v696, %v695
      %v720 = vpack.c.bf16 %v698, %v697
      %v721 = vpack.c.bf16 %v700, %v699
      %v722 = vpack.c.bf16 %v702, %v701
      %v723 = vpack.c.bf16 %v704, %v703
      %v724 = vpack.c.bf16 %v706, %v705
      %v725 = vpack.c.bf16 %v708, %v707
      %v726 = vpack.c.bf16 %v710, %v709
      %743 = vrot.lane.b32.xlu0 %v711, 16
      %v744 = vpop.permute.xlu0 %743
      %745 = vrot.lane.b32.xlu0 %v712, 16
      %v746 = vpop.permute.xlu0 %745
      %747 = vrot.lane.b32.xlu0 %v713, 16
      %v748 = vpop.permute.xlu0 %747
      %749 = vrot.lane.b32.xlu0 %v714, 16
      %v750 = vpop.permute.xlu0 %749
      %751 = vrot.lane.b32.xlu0 %v715, 16
      %v752 = vpop.permute.xlu0 %751
      %753 = vrot.lane.b32.xlu0 %v716, 16
      %v754 = vpop.permute.xlu0 %753
      %755 = vrot.lane.b32.xlu0 %v717, 16
      %v756 = vpop.permute.xlu0 %755
      %757 = vrot.lane.b32.xlu0 %v718, 16
      %v758 = vpop.permute.xlu0 %757
      %759 = vrot.lane.b32.xlu0 %v719, 16
      %v760 = vpop.permute.xlu0 %759
      %761 = vrot.lane.b32.xlu0 %v720, 16
      %v762 = vpop.permute.xlu0 %761
      %763 = vrot.lane.b32.xlu0 %v721, 16
      %v764 = vpop.permute.xlu0 %763
      %765 = vrot.lane.b32.xlu0 %v722, 16
      %v766 = vpop.permute.xlu0 %765
      %767 = vrot.lane.b32.xlu0 %v723, 16
      %v768 = vpop.permute.xlu0 %767
      %769 = vrot.lane.b32.xlu0 %v724, 16
      %v770 = vpop.permute.xlu0 %769
      %771 = vrot.lane.b32.xlu0 %v725, 16
      %v772 = vpop.permute.xlu0 %771
      %773 = vrot.lane.b32.xlu0 %v726, 16
      %v774 = vpop.permute.xlu0 %773
      %vm791 = vcmask 162944
      %792 = vst.msk [vmem:[#allocation2] sm:$0xff] %vm791, %v744
      %793 = vst.msk [vmem:[#allocation2 + $0x8] sm:$0xff] %vm791, %v746
      %794 = vst.msk [vmem:[#allocation2 + $0x10] sm:$0xff] %vm791, %v748
      %795 = vst.msk [vmem:[#allocation2 + $0x18] sm:$0xff] %vm791, %v750
      %796 = vst.msk [vmem:[#allocation2 + $0x20] sm:$0xff] %vm791, %v752
      %797 = vst.msk [vmem:[#allocation2 + $0x28] sm:$0xff] %vm791, %v754
      %798 = vst.msk [vmem:[#allocation2 + $0x30] sm:$0xff] %vm791, %v756
      %799 = vst.msk [vmem:[#allocation2 + $0x38] sm:$0xff] %vm791, %v758
      %800 = vst.msk [vmem:[#allocation2 + $0x40] sm:$0xff] %vm791, %v760
      %801 = vst.msk [vmem:[#allocation2 + $0x48] sm:$0xff] %vm791, %v762
      %802 = vst.msk [vmem:[#allocation2 + $0x50] sm:$0xff] %vm791, %v764
      %803 = vst.msk [vmem:[#allocation2 + $0x58] sm:$0xff] %vm791, %v766
      %804 = vst.msk [vmem:[#allocation2 + $0x60] sm:$0xff] %vm791, %v768
      %805 = vst.msk [vmem:[#allocation2 + $0x68] sm:$0xff] %vm791, %v770
      %806 = vst.msk [vmem:[#allocation2 + $0x70] sm:$0xff] %vm791, %v772
      %807 = vst.msk [vmem:[#allocation2 + $0x78] sm:$0xff] %vm791, %v774
      %v808 = vld [vmem:[%s549 + $0x2] sm:$0xff]
      %v809 = vld [vmem:[%s549 + $0xa] sm:$0xff]
      %v810 = vld [vmem:[%s549 + $0x1a] sm:$0xff]
      %v811 = vld [vmem:[%s549 + $0x22] sm:$0xff]
      %v812 = vld [vmem:[%s549 + $0x32] sm:$0xff]
      %v813 = vld [vmem:[%s549 + $0x3a] sm:$0xff]
      %v814 = vld [vmem:[%s549 + $0x4a] sm:$0xff]
      %v815 = vld [vmem:[%s549 + $0x52] sm:$0xff]
      %v816 = vld [vmem:[%s549 + $0x62] sm:$0xff]
      %v817 = vld [vmem:[%s549 + $0x6a] sm:$0xff]
      %v818 = vld [vmem:[%s549 + $0x7a] sm:$0xff]
      %v819 = vld [vmem:[%s549 + $0x82] sm:$0xff]
      %v820 = vld [vmem:[%s549 + $0x92] sm:$0xff]
      %v821 = vld [vmem:[%s549 + $0x9a] sm:$0xff]
      %v822 = vld [vmem:[%s549 + $0xaa] sm:$0xff]
      %v823 = vld [vmem:[%s549 + $0xb2] sm:$0xff]
      %v824 = vld [vmem:[%s549 + $0xc2] sm:$0xff]
      %v825 = vld [vmem:[%s549 + $0xca] sm:$0xff]
      %v826 = vld [vmem:[%s549 + $0xda] sm:$0xff]
      %v827 = vld [vmem:[%s549 + $0xe2] sm:$0xff]
      %v828 = vld [vmem:[%s549 + $0xf2] sm:$0xff]
      %v829 = vld [vmem:[%s549 + $0xfa] sm:$0xff]
      %v830 = vld [vmem:[%s549 + $0x10a] sm:$0xff]
      %v831 = vld [vmem:[%s549 + $0x112] sm:$0xff]
      %v832 = vld [vmem:[%s549 + $0x122] sm:$0xff]
      %v833 = vld [vmem:[%s549 + $0x12a] sm:$0xff]
      %v834 = vld [vmem:[%s549 + $0x13a] sm:$0xff]
      %v835 = vld [vmem:[%s549 + $0x142] sm:$0xff]
      %v836 = vld [vmem:[%s549 + $0x152] sm:$0xff]
      %v837 = vld [vmem:[%s549 + $0x15a] sm:$0xff]
      %v838 = vld [vmem:[%s549 + $0x16a] sm:$0xff]
      %v839 = vld [vmem:[%s549 + $0x172] sm:$0xff]
      %v840 = vpack.c.bf16 %v809, %v808
      %v841 = vpack.c.bf16 %v811, %v810
      %v842 = vpack.c.bf16 %v813, %v812
      %v843 = vpack.c.bf16 %v815, %v814
      %v844 = vpack.c.bf16 %v817, %v816
      %v845 = vpack.c.bf16 %v819, %v818
      %v846 = vpack.c.bf16 %v821, %v820
      %v847 = vpack.c.bf16 %v823, %v822
      %v848 = vpack.c.bf16 %v825, %v824
      %v849 = vpack.c.bf16 %v827, %v826
      %v850 = vpack.c.bf16 %v829, %v828
      %v851 = vpack.c.bf16 %v831, %v830
      %v852 = vpack.c.bf16 %v833, %v832
      %v853 = vpack.c.bf16 %v835, %v834
      %v854 = vpack.c.bf16 %v837, %v836
      %v855 = vpack.c.bf16 %v839, %v838
      %872 = vrot.lane.b32.xlu0 %v840, 20
      %v873 = vpop.permute.xlu0 %872
      %874 = vrot.lane.b32.xlu0 %v841, 20
      %v875 = vpop.permute.xlu0 %874
      %876 = vrot.lane.b32.xlu0 %v842, 20
      %v877 = vpop.permute.xlu0 %876
      %878 = vrot.lane.b32.xlu0 %v843, 20
      %v879 = vpop.permute.xlu0 %878
      %880 = vrot.lane.b32.xlu0 %v844, 20
      %v881 = vpop.permute.xlu0 %880
      %882 = vrot.lane.b32.xlu0 %v845, 20
      %v883 = vpop.permute.xlu0 %882
      %884 = vrot.lane.b32.xlu0 %v846, 20
      %v885 = vpop.permute.xlu0 %884
      %886 = vrot.lane.b32.xlu0 %v847, 20
      %v887 = vpop.permute.xlu0 %886
      %888 = vrot.lane.b32.xlu0 %v848, 20
      %v889 = vpop.permute.xlu0 %888
      %890 = vrot.lane.b32.xlu0 %v849, 20
      %v891 = vpop.permute.xlu0 %890
      %892 = vrot.lane.b32.xlu0 %v850, 20
      %v893 = vpop.permute.xlu0 %892
      %894 = vrot.lane.b32.xlu0 %v851, 20
      %v895 = vpop.permute.xlu0 %894
      %896 = vrot.lane.b32.xlu0 %v852, 20
      %v897 = vpop.permute.xlu0 %896
      %898 = vrot.lane.b32.xlu0 %v853, 20
      %v899 = vpop.permute.xlu0 %898
      %900 = vrot.lane.b32.xlu0 %v854, 20
      %v901 = vpop.permute.xlu0 %900
      %902 = vrot.lane.b32.xlu0 %v855, 20
      %v903 = vpop.permute.xlu0 %902
      %vm920 = vcmask 195744
      %921 = vst.msk [vmem:[#allocation2] sm:$0xff] %vm920, %v873
      %922 = vst.msk [vmem:[#allocation2 + $0x8] sm:$0xff] %vm920, %v875
      %923 = vst.msk [vmem:[#allocation2 + $0x10] sm:$0xff] %vm920, %v877
      %924 = vst.msk [vmem:[#allocation2 + $0x18] sm:$0xff] %vm920, %v879
      %925 = vst.msk [vmem:[#allocation2 + $0x20] sm:$0xff] %vm920, %v881
      %926 = vst.msk [vmem:[#allocation2 + $0x28] sm:$0xff] %vm920, %v883
      %927 = vst.msk [vmem:[#allocation2 + $0x30] sm:$0xff] %vm920, %v885
      %928 = vst.msk [vmem:[#allocation2 + $0x38] sm:$0xff] %vm920, %v887
      %929 = vst.msk [vmem:[#allocation2 + $0x40] sm:$0xff] %vm920, %v889
      %930 = vst.msk [vmem:[#allocation2 + $0x48] sm:$0xff] %vm920, %v891
      %931 = vst.msk [vmem:[#allocation2 + $0x50] sm:$0xff] %vm920, %v893
      %932 = vst.msk [vmem:[#allocation2 + $0x58] sm:$0xff] %vm920, %v895
      %933 = vst.msk [vmem:[#allocation2 + $0x60] sm:$0xff] %vm920, %v897
      %934 = vst.msk [vmem:[#allocation2 + $0x68] sm:$0xff] %vm920, %v899
      %935 = vst.msk [vmem:[#allocation2 + $0x70] sm:$0xff] %vm920, %v901
      %936 = vst.msk [vmem:[#allocation2 + $0x78] sm:$0xff] %vm920, %v903
      %s937 = scalar_lea.vmem %s219, 48
      %v938 = vld [vmem:[%s937] sm:$0xff]
      %v939 = vld [vmem:[%s937 + $0x8] sm:$0xff]
      %v940 = vld [vmem:[%s937 + $0x18] sm:$0xff]
      %v941 = vld [vmem:[%s937 + $0x20] sm:$0xff]
      %v942 = vld [vmem:[%s937 + $0x30] sm:$0xff]
      %v943 = vld [vmem:[%s937 + $0x38] sm:$0xff]
      %v944 = vld [vmem:[%s937 + $0x48] sm:$0xff]
      %v945 = vld [vmem:[%s937 + $0x50] sm:$0xff]
      %v946 = vld [vmem:[%s937 + $0x60] sm:$0xff]
      %v947 = vld [vmem:[%s937 + $0x68] sm:$0xff]
      %v948 = vld [vmem:[%s937 + $0x78] sm:$0xff]
      %v949 = vld [vmem:[%s937 + $0x80] sm:$0xff]
      %v950 = vld [vmem:[%s937 + $0x90] sm:$0xff]
      %v951 = vld [vmem:[%s937 + $0x98] sm:$0xff]
      %v952 = vld [vmem:[%s937 + $0xa8] sm:$0xff]
      %v953 = vld [vmem:[%s937 + $0xb0] sm:$0xff]
      %v954 = vld [vmem:[%s937 + $0xc0] sm:$0xff]
      %v955 = vld [vmem:[%s937 + $0xc8] sm:$0xff]
      %v956 = vld [vmem:[%s937 + $0xd8] sm:$0xff]
      %v957 = vld [vmem:[%s937 + $0xe0] sm:$0xff]
      %v958 = vld [vmem:[%s937 + $0xf0] sm:$0xff]
      %v959 = vld [vmem:[%s937 + $0xf8] sm:$0xff]
      %v960 = vld [vmem:[%s937 + $0x108] sm:$0xff]
      %v961 = vld [vmem:[%s937 + $0x110] sm:$0xff]
      %v962 = vld [vmem:[%s937 + $0x120] sm:$0xff]
      %v963 = vld [vmem:[%s937 + $0x128] sm:$0xff]
      %v964 = vld [vmem:[%s937 + $0x138] sm:$0xff]
      %v965 = vld [vmem:[%s937 + $0x140] sm:$0xff]
      %v966 = vld [vmem:[%s937 + $0x150] sm:$0xff]
      %v967 = vld [vmem:[%s937 + $0x158] sm:$0xff]
      %v968 = vld [vmem:[%s937 + $0x168] sm:$0xff]
      %v969 = vld [vmem:[%s937 + $0x170] sm:$0xff]
      %v970 = vpack.c.bf16 %v939, %v938
      %v971 = vpack.c.bf16 %v941, %v940
      %v972 = vpack.c.bf16 %v943, %v942
      %v973 = vpack.c.bf16 %v945, %v944
      %v974 = vpack.c.bf16 %v947, %v946
      %v975 = vpack.c.bf16 %v949, %v948
      %v976 = vpack.c.bf16 %v951, %v950
      %v977 = vpack.c.bf16 %v953, %v952
      %v978 = vpack.c.bf16 %v955, %v954
      %v979 = vpack.c.bf16 %v957, %v956
      %v980 = vpack.c.bf16 %v959, %v958
      %v981 = vpack.c.bf16 %v961, %v960
      %v982 = vpack.c.bf16 %v963, %v962
      %v983 = vpack.c.bf16 %v965, %v964
      %v984 = vpack.c.bf16 %v967, %v966
      %v985 = vpack.c.bf16 %v969, %v968
      %1002 = vrot.lane.b32.xlu0 %v970, 24
      %v1003 = vpop.permute.xlu0 %1002
      %1004 = vrot.lane.b32.xlu0 %v971, 24
      %v1005 = vpop.permute.xlu0 %1004
      %1006 = vrot.lane.b32.xlu0 %v972, 24
      %v1007 = vpop.permute.xlu0 %1006
      %1008 = vrot.lane.b32.xlu0 %v973, 24
      %v1009 = vpop.permute.xlu0 %1008
      %1010 = vrot.lane.b32.xlu0 %v974, 24
      %v1011 = vpop.permute.xlu0 %1010
      %1012 = vrot.lane.b32.xlu0 %v975, 24
      %v1013 = vpop.permute.xlu0 %1012
      %1014 = vrot.lane.b32.xlu0 %v976, 24
      %v1015 = vpop.permute.xlu0 %1014
      %1016 = vrot.lane.b32.xlu0 %v977, 24
      %v1017 = vpop.permute.xlu0 %1016
      %1018 = vrot.lane.b32.xlu0 %v978, 24
      %v1019 = vpop.permute.xlu0 %1018
      %1020 = vrot.lane.b32.xlu0 %v979, 24
      %v1021 = vpop.permute.xlu0 %1020
      %1022 = vrot.lane.b32.xlu0 %v980, 24
      %v1023 = vpop.permute.xlu0 %1022
      %1024 = vrot.lane.b32.xlu0 %v981, 24
      %v1025 = vpop.permute.xlu0 %1024
      %1026 = vrot.lane.b32.xlu0 %v982, 24
      %v1027 = vpop.permute.xlu0 %1026
      %1028 = vrot.lane.b32.xlu0 %v983, 24
      %v1029 = vpop.permute.xlu0 %1028
      %1030 = vrot.lane.b32.xlu0 %v984, 24
      %v1031 = vpop.permute.xlu0 %1030
      %1032 = vrot.lane.b32.xlu0 %v985, 24
      %v1033 = vpop.permute.xlu0 %1032
      %vm1050 = vcmask 228544
      %1051 = vst.msk [vmem:[#allocation2] sm:$0xff] %vm1050, %v1003
      %1052 = vst.msk [vmem:[#allocation2 + $0x8] sm:$0xff] %vm1050, %v1005
      %1053 = vst.msk [vmem:[#allocation2 + $0x10] sm:$0xff] %vm1050, %v1007
      %1054 = vst.msk [vmem:[#allocation2 + $0x18] sm:$0xff] %vm1050, %v1009
      %1055 = vst.msk [vmem:[#allocation2 + $0x20] sm:$0xff] %vm1050, %v1011
      %1056 = vst.msk [vmem:[#allocation2 + $0x28] sm:$0xff] %vm1050, %v1013
      %1057 = vst.msk [vmem:[#allocation2 + $0x30] sm:$0xff] %vm1050, %v1015
      %1058 = vst.msk [vmem:[#allocation2 + $0x38] sm:$0xff] %vm1050, %v1017
      %1059 = vst.msk [vmem:[#allocation2 + $0x40] sm:$0xff] %vm1050, %v1019
      %1060 = vst.msk [vmem:[#allocation2 + $0x48] sm:$0xff] %vm1050, %v1021
      %1061 = vst.msk [vmem:[#allocation2 + $0x50] sm:$0xff] %vm1050, %v1023
      %1062 = vst.msk [vmem:[#allocation2 + $0x58] sm:$0xff] %vm1050, %v1025
      %1063 = vst.msk [vmem:[#allocation2 + $0x60] sm:$0xff] %vm1050, %v1027
      %1064 = vst.msk [vmem:[#allocation2 + $0x68] sm:$0xff] %vm1050, %v1029
      %1065 = vst.msk [vmem:[#allocation2 + $0x70] sm:$0xff] %vm1050, %v1031
      %1066 = vst.msk [vmem:[#allocation2 + $0x78] sm:$0xff] %vm1050, %v1033
      %v1067 = vld [vmem:[%s937 + $0x1] sm:$0xff]
      %v1068 = vld [vmem:[%s937 + $0x9] sm:$0xff]
      %v1069 = vld [vmem:[%s937 + $0x19] sm:$0xff]
      %v1070 = vld [vmem:[%s937 + $0x21] sm:$0xff]
      %v1071 = vld [vmem:[%s937 + $0x31] sm:$0xff]
      %v1072 = vld [vmem:[%s937 + $0x39] sm:$0xff]
      %v1073 = vld [vmem:[%s937 + $0x49] sm:$0xff]
      %v1074 = vld [vmem:[%s937 + $0x51] sm:$0xff]
      %v1075 = vld [vmem:[%s937 + $0x61] sm:$0xff]
      %v1076 = vld [vmem:[%s937 + $0x69] sm:$0xff]
      %v1077 = vld [vmem:[%s937 + $0x79] sm:$0xff]
      %v1078 = vld [vmem:[%s937 + $0x81] sm:$0xff]
      %v1079 = vld [vmem:[%s937 + $0x91] sm:$0xff]
      %v1080 = vld [vmem:[%s937 + $0x99] sm:$0xff]
      %v1081 = vld [vmem:[%s937 + $0xa9] sm:$0xff]
      %v1082 = vld [vmem:[%s937 + $0xb1] sm:$0xff]
      %v1083 = vld [vmem:[%s937 + $0xc1] sm:$0xff]
      %v1084 = vld [vmem:[%s937 + $0xc9] sm:$0xff]
      %v1085 = vld [vmem:[%s937 + $0xd9] sm:$0xff]
      %v1086 = vld [vmem:[%s937 + $0xe1] sm:$0xff]
      %v1087 = vld [vmem:[%s937 + $0xf1] sm:$0xff]
      %v1088 = vld [vmem:[%s937 + $0xf9] sm:$0xff]
      %v1089 = vld [vmem:[%s937 + $0x109] sm:$0xff]
      %v1090 = vld [vmem:[%s937 + $0x111] sm:$0xff]
      %v1091 = vld [vmem:[%s937 + $0x121] sm:$0xff]
      %v1092 = vld [vmem:[%s937 + $0x129] sm:$0xff]
      %v1093 = vld [vmem:[%s937 + $0x139] sm:$0xff]
      %v1094 = vld [vmem:[%s937 + $0x141] sm:$0xff]
      %v1095 = vld [vmem:[%s937 + $0x151] sm:$0xff]
      %v1096 = vld [vmem:[%s937 + $0x159] sm:$0xff]
      %v1097 = vld [vmem:[%s937 + $0x169] sm:$0xff]
      %v1098 = vld [vmem:[%s937 + $0x171] sm:$0xff]
      %v1099 = vpack.c.bf16 %v1068, %v1067
      %v1100 = vpack.c.bf16 %v1070, %v1069
      %v1101 = vpack.c.bf16 %v1072, %v1071
      %v1102 = vpack.c.bf16 %v1074, %v1073
      %v1103 = vpack.c.bf16 %v1076, %v1075
      %v1104 = vpack.c.bf16 %v1078, %v1077
      %v1105 = vpack.c.bf16 %v1080, %v1079
      %v1106 = vpack.c.bf16 %v1082, %v1081
      %v1107 = vpack.c.bf16 %v1084, %v1083
      %v1108 = vpack.c.bf16 %v1086, %v1085
      %v1109 = vpack.c.bf16 %v1088, %v1087
      %v1110 = vpack.c.bf16 %v1090, %v1089
      %v1111 = vpack.c.bf16 %v1092, %v1091
      %v1112 = vpack.c.bf16 %v1094, %v1093
      %v1113 = vpack.c.bf16 %v1096, %v1095
      %v1114 = vpack.c.bf16 %v1098, %v1097
      %1131 = vrot.lane.b32.xlu0 %v1099, 28
      %v1132 = vpop.permute.xlu0 %1131
      %1133 = vrot.lane.b32.xlu0 %v1100, 28
      %v1134 = vpop.permute.xlu0 %1133
      %1135 = vrot.lane.b32.xlu0 %v1101, 28
      %v1136 = vpop.permute.xlu0 %1135
      %1137 = vrot.lane.b32.xlu0 %v1102, 28
      %v1138 = vpop.permute.xlu0 %1137
      %1139 = vrot.lane.b32.xlu0 %v1103, 28
      %v1140 = vpop.permute.xlu0 %1139
      %1141 = vrot.lane.b32.xlu0 %v1104, 28
      %v1142 = vpop.permute.xlu0 %1141
      %1143 = vrot.lane.b32.xlu0 %v1105, 28
      %v1144 = vpop.permute.xlu0 %1143
      %1145 = vrot.lane.b32.xlu0 %v1106, 28
      %v1146 = vpop.permute.xlu0 %1145
      %1147 = vrot.lane.b32.xlu0 %v1107, 28
      %v1148 = vpop.permute.xlu0 %1147
      %1149 = vrot.lane.b32.xlu0 %v1108, 28
      %v1150 = vpop.permute.xlu0 %1149
      %1151 = vrot.lane.b32.xlu0 %v1109, 28
      %v1152 = vpop.permute.xlu0 %1151
      %1153 = vrot.lane.b32.xlu0 %v1110, 28
      %v1154 = vpop.permute.xlu0 %1153
      %1155 = vrot.lane.b32.xlu0 %v1111, 28
      %v1156 = vpop.permute.xlu0 %1155
      %1157 = vrot.lane.b32.xlu0 %v1112, 28
      %v1158 = vpop.permute.xlu0 %1157
      %1159 = vrot.lane.b32.xlu0 %v1113, 28
      %v1160 = vpop.permute.xlu0 %1159
      %1161 = vrot.lane.b32.xlu0 %v1114, 28
      %v1162 = vpop.permute.xlu0 %1161
      %vm1179 = vcmask 261344
      %1180 = vst.msk [vmem:[#allocation2] sm:$0xff] %vm1179, %v1132
      %1181 = vst.msk [vmem:[#allocation2 + $0x8] sm:$0xff] %vm1179, %v1134
      %1182 = vst.msk [vmem:[#allocation2 + $0x10] sm:$0xff] %vm1179, %v1136
      %1183 = vst.msk [vmem:[#allocation2 + $0x18] sm:$0xff] %vm1179, %v1138
      %1184 = vst.msk [vmem:[#allocation2 + $0x20] sm:$0xff] %vm1179, %v1140
      %1185 = vst.msk [vmem:[#allocation2 + $0x28] sm:$0xff] %vm1179, %v1142
      %1186 = vst.msk [vmem:[#allocation2 + $0x30] sm:$0xff] %vm1179, %v1144
      %1187 = vst.msk [vmem:[#allocation2 + $0x38] sm:$0xff] %vm1179, %v1146
      %1188 = vst.msk [vmem:[#allocation2 + $0x40] sm:$0xff] %vm1179, %v1148
      %1189 = vst.msk [vmem:[#allocation2 + $0x48] sm:$0xff] %vm1179, %v1150
      %1190 = vst.msk [vmem:[#allocation2 + $0x50] sm:$0xff] %vm1179, %v1152
      %1191 = vst.msk [vmem:[#allocation2 + $0x58] sm:$0xff] %vm1179, %v1154
      %1192 = vst.msk [vmem:[#allocation2 + $0x60] sm:$0xff] %vm1179, %v1156
      %1193 = vst.msk [vmem:[#allocation2 + $0x68] sm:$0xff] %vm1179, %v1158
      %1194 = vst.msk [vmem:[#allocation2 + $0x70] sm:$0xff] %vm1179, %v1160
      %1195 = vst.msk [vmem:[#allocation2 + $0x78] sm:$0xff] %vm1179, %v1162
      %v1196 = vld [vmem:[%s937 + $0x2] sm:$0xff]
      %v1197 = vld [vmem:[%s937 + $0xa] sm:$0xff]
      %v1198 = vld [vmem:[%s937 + $0x1a] sm:$0xff]
      %v1199 = vld [vmem:[%s937 + $0x22] sm:$0xff]
      %v1200 = vld [vmem:[%s937 + $0x32] sm:$0xff]
      %v1201 = vld [vmem:[%s937 + $0x3a] sm:$0xff]
      %v1202 = vld [vmem:[%s937 + $0x4a] sm:$0xff]
      %v1203 = vld [vmem:[%s937 + $0x52] sm:$0xff]
      %v1204 = vld [vmem:[%s937 + $0x62] sm:$0xff]
      %v1205 = vld [vmem:[%s937 + $0x6a] sm:$0xff]
      %v1206 = vld [vmem:[%s937 + $0x7a] sm:$0xff]
      %v1207 = vld [vmem:[%s937 + $0x82] sm:$0xff]
      %v1208 = vld [vmem:[%s937 + $0x92] sm:$0xff]
      %v1209 = vld [vmem:[%s937 + $0x9a] sm:$0xff]
      %v1210 = vld [vmem:[%s937 + $0xaa] sm:$0xff]
      %v1211 = vld [vmem:[%s937 + $0xb2] sm:$0xff]
      %v1212 = vld [vmem:[%s937 + $0xc2] sm:$0xff]
      %v1213 = vld [vmem:[%s937 + $0xca] sm:$0xff]
      %v1214 = vld [vmem:[%s937 + $0xda] sm:$0xff]
      %v1215 = vld [vmem:[%s937 + $0xe2] sm:$0xff]
      %v1216 = vld [vmem:[%s937 + $0xf2] sm:$0xff]
      %v1217 = vld [vmem:[%s937 + $0xfa] sm:$0xff]
      %v1218 = vld [vmem:[%s937 + $0x10a] sm:$0xff]
      %v1219 = vld [vmem:[%s937 + $0x112] sm:$0xff]
      %v1220 = vld [vmem:[%s937 + $0x122] sm:$0xff]
      %v1221 = vld [vmem:[%s937 + $0x12a] sm:$0xff]
      %v1222 = vld [vmem:[%s937 + $0x13a] sm:$0xff]
      %v1223 = vld [vmem:[%s937 + $0x142] sm:$0xff]
      %v1224 = vld [vmem:[%s937 + $0x152] sm:$0xff]
      %v1225 = vld [vmem:[%s937 + $0x15a] sm:$0xff]
      %v1226 = vld [vmem:[%s937 + $0x16a] sm:$0xff]
      %v1227 = vld [vmem:[%s937 + $0x172] sm:$0xff]
      %v1228 = vpack.c.bf16 %v1197, %v1196
      %v1229 = vpack.c.bf16 %v1199, %v1198
      %v1230 = vpack.c.bf16 %v1201, %v1200
      %v1231 = vpack.c.bf16 %v1203, %v1202
      %v1232 = vpack.c.bf16 %v1205, %v1204
      %v1233 = vpack.c.bf16 %v1207, %v1206
      %v1234 = vpack.c.bf16 %v1209, %v1208
      %v1235 = vpack.c.bf16 %v1211, %v1210
      %v1236 = vpack.c.bf16 %v1213, %v1212
      %v1237 = vpack.c.bf16 %v1215, %v1214
      %v1238 = vpack.c.bf16 %v1217, %v1216
      %v1239 = vpack.c.bf16 %v1219, %v1218
      %v1240 = vpack.c.bf16 %v1221, %v1220
      %v1241 = vpack.c.bf16 %v1223, %v1222
      %v1242 = vpack.c.bf16 %v1225, %v1224
      %v1243 = vpack.c.bf16 %v1227, %v1226
      %1260 = vrot.lane.b32.xlu0 %v1228, 32
      %v1261 = vpop.permute.xlu0 %1260
      %1262 = vrot.lane.b32.xlu0 %v1229, 32
      %v1263 = vpop.permute.xlu0 %1262
      %1264 = vrot.lane.b32.xlu0 %v1230, 32
      %v1265 = vpop.permute.xlu0 %1264
      %1266 = vrot.lane.b32.xlu0 %v1231, 32
      %v1267 = vpop.permute.xlu0 %1266
      %1268 = vrot.lane.b32.xlu0 %v1232, 32
      %v1269 = vpop.permute.xlu0 %1268
      %1270 = vrot.lane.b32.xlu0 %v1233, 32
      %v1271 = vpop.permute.xlu0 %1270
      %1272 = vrot.lane.b32.xlu0 %v1234, 32
      %v1273 = vpop.permute.xlu0 %1272
      %1274 = vrot.lane.b32.xlu0 %v1235, 32
      %v1275 = vpop.permute.xlu0 %1274
      %1276 = vrot.lane.b32.xlu0 %v1236, 32
      %v1277 = vpop.permute.xlu0 %1276
      %1278 = vrot.lane.b32.xlu0 %v1237, 32
      %v1279 = vpop.permute.xlu0 %1278
      %1280 = vrot.lane.b32.xlu0 %v1238, 32
      %v1281 = vpop.permute.xlu0 %1280
      %1282 = vrot.lane.b32.xlu0 %v1239, 32
      %v1283 = vpop.permute.xlu0 %1282
      %1284 = vrot.lane.b32.xlu0 %v1240, 32
      %v1285 = vpop.permute.xlu0 %1284
      %1286 = vrot.lane.b32.xlu0 %v1241, 32
      %v1287 = vpop.permute.xlu0 %1286
      %1288 = vrot.lane.b32.xlu0 %v1242, 32
      %v1289 = vpop.permute.xlu0 %1288
      %1290 = vrot.lane.b32.xlu0 %v1243, 32
      %v1291 = vpop.permute.xlu0 %1290
      %vm1308 = vcmask 294144
      %1309 = vst.msk [vmem:[#allocation2] sm:$0xff] %vm1308, %v1261
      %1310 = vst.msk [vmem:[#allocation2 + $0x8] sm:$0xff] %vm1308, %v1263
      %1311 = vst.msk [vmem:[#allocation2 + $0x10] sm:$0xff] %vm1308, %v1265
      %1312 = vst.msk [vmem:[#allocation2 + $0x18] sm:$0xff] %vm1308, %v1267
      %1313 = vst.msk [vmem:[#allocation2 + $0x20] sm:$0xff] %vm1308, %v1269
      %1314 = vst.msk [vmem:[#allocation2 + $0x28] sm:$0xff] %vm1308, %v1271
      %1315 = vst.msk [vmem:[#allocation2 + $0x30] sm:$0xff] %vm1308, %v1273
      %1316 = vst.msk [vmem:[#allocation2 + $0x38] sm:$0xff] %vm1308, %v1275
      %1317 = vst.msk [vmem:[#allocation2 + $0x40] sm:$0xff] %vm1308, %v1277
      %1318 = vst.msk [vmem:[#allocation2 + $0x48] sm:$0xff] %vm1308, %v1279
      %1319 = vst.msk [vmem:[#allocation2 + $0x50] sm:$0xff] %vm1308, %v1281
      %1320 = vst.msk [vmem:[#allocation2 + $0x58] sm:$0xff] %vm1308, %v1283
      %1321 = vst.msk [vmem:[#allocation2 + $0x60] sm:$0xff] %vm1308, %v1285
      %1322 = vst.msk [vmem:[#allocation2 + $0x68] sm:$0xff] %vm1308, %v1287
      %1323 = vst.msk [vmem:[#allocation2 + $0x70] sm:$0xff] %vm1308, %v1289
      %1324 = vst.msk [vmem:[#allocation2 + $0x78] sm:$0xff] %vm1308, %v1291
      %v1325 = vld [vmem:[#allocation2] sm:$0xff]
      %v1326 = vld [vmem:[#allocation2 + $0x8] sm:$0xff]
      %v1327 = vld [vmem:[#allocation2 + $0x10] sm:$0xff]
      %v1328 = vld [vmem:[#allocation2 + $0x18] sm:$0xff]
      %v1329 = vld [vmem:[#allocation2 + $0x20] sm:$0xff]
      %v1330 = vld [vmem:[#allocation2 + $0x28] sm:$0xff]
      %v1331 = vld [vmem:[#allocation2 + $0x30] sm:$0xff]
      %v1332 = vld [vmem:[#allocation2 + $0x38] sm:$0xff]
      %v1333 = vld [vmem:[#allocation2 + $0x40] sm:$0xff]
      %v1334 = vld [vmem:[#allocation2 + $0x48] sm:$0xff]
      %v1335 = vld [vmem:[#allocation2 + $0x50] sm:$0xff]
      %v1336 = vld [vmem:[#allocation2 + $0x58] sm:$0xff]
      %v1337 = vld [vmem:[#allocation2 + $0x60] sm:$0xff]
      %v1338 = vld [vmem:[#allocation2 + $0x68] sm:$0xff]
      %v1339 = vld [vmem:[#allocation2 + $0x70] sm:$0xff]
      %v1340 = vld [vmem:[#allocation2 + $0x78] sm:$0xff]
      %v1341 = vld [vmem:[%s1] sm:$0xf]
      %v1342 = vld [vmem:[%s1 + $0x4] sm:$0xf]
      %v1343 = vld [vmem:[%s1 + $0x8] sm:$0xf]
      %v1344 = vld [vmem:[%s1 + $0xc] sm:$0xf]
      %v1345 = vld [vmem:[%s1 + $0x10] sm:$0x3]
      %v1346 = vld [vmem:[%s2] sm:$0x1]
      %v1348 = vlaneseq
      %v1349 = vshrl.u32 %v1348, 7
      %v1350 = vsub.s32 0, %v1349
      %v1351 = vrot.slane %v1346, %v1350
      %v1358 = vunpack.c.l.b16 %v1341
      %v1359 = vunpack.c.l.b16 %v1342
      %v1360 = vunpack.c.l.b16 %v1343
      %v1361 = vunpack.c.l.b16 %v1344
      %v1362 = vunpack.c.l.b16 %v1345
      %v1363 = vpack.c.b16 %v1359, %v1358
      %v1364 = vpack.c.b16 %v1361, %v1360
      %v1365 = vpack.c.b16 %v1362, %v1362
      %vm1368 = vcmask 293888
      %v1370 = vsel %vm1368, %v1325, 0
      %v1373 = vsel %vm1368, %v1326, 0
      %v1376 = vsel %vm1368, %v1327, 0
      %v1379 = vsel %vm1368, %v1328, 0
      %v1382 = vsel %vm1368, %v1329, 0
      %v1385 = vsel %vm1368, %v1330, 0
      %v1388 = vsel %vm1368, %v1331, 0
      %v1391 = vsel %vm1368, %v1332, 0
      %v1394 = vsel %vm1368, %v1333, 0
      %v1397 = vsel %vm1368, %v1334, 0
      %v1400 = vsel %vm1368, %v1335, 0
      %v1403 = vsel %vm1368, %v1336, 0
      %v1406 = vsel %vm1368, %v1337, 0
      %v1409 = vsel %vm1368, %v1338, 0
      %v1412 = vsel %vm1368, %v1339, 0
      %v1415 = vsel %vm1368, %v1340, 0
      %vm1417 = vcmask 1041408
      %v1419 = vsel %vm1417, %v1365, 0
      %1421 = vmatprep.subr.bf16.mxu0 0
      %1422 = vmatpush1.bf16.msra.mxu0 %v1363
      %1423 = vmatprep.subr.bf16.mxu0 0
      %1424 = vmatpush1.bf16.msra.mxu0 %v1364
      %1425 = vmatprep.subr.bf16.mxu0 0
      %1426 = vmatpush1.bf16.msra.mxu0 %v1419
      %1427 = vmatprep.subr.bf16.mxu0 0
      %1428 = vmatpush1.bf16.msra.mxu0 0
      %1429 = vmatprep.subr.bf16.mxu0 0
      %1430 = vmatpush1.bf16.msra.mxu0 0
      %1431 = vmatprep.subr.bf16.mxu0 0
      %1432 = vmatpush1.bf16.msra.mxu0 0
      %1433 = vmatprep.subr.bf16.mxu0 0
      %1434 = vmatpush1.bf16.msra.mxu0 0
      %1435 = vmatprep.subr.bf16.mxu0 0
      %1436 = vmatpush1.bf16.msra.mxu0 0
      %1437 = vmatprep.subr.bf16.mxu0 0
      %1438 = vmatpush1.bf16.msra.mxu0 0
      %1439 = vmatprep.subr.bf16.mxu0 0
      %1440 = vmatpush1.bf16.msra.mxu0 0
      %1441 = vmatprep.subr.bf16.mxu0 0
      %1442 = vmatpush1.bf16.msra.mxu0 0
      %1443 = vmatprep.subr.bf16.mxu0 0
      %1444 = vmatpush1.bf16.msra.mxu0 0
      %1445 = vmatprep.subr.bf16.mxu0 0
      %1446 = vmatpush1.bf16.msra.mxu0 0
      %1447 = vmatprep.subr.bf16.mxu0 0
      %1448 = vmatpush1.bf16.msra.mxu0 0
      %1449 = vmatprep.subr.bf16.mxu0 0
      %1450 = vmatpush1.bf16.msra.mxu0 0
      %1451 = vmatprep.subr.bf16.mxu0 0
      %1452 = vmatpush1.bf16.msra.mxu0 0
      %1453 = vmatprep.mubr.bf16.mxu0 0
      %1454 = vmatmul.mubr.bf16.gmra.mrb[0].mxu0 %v1370
      %v1455 = vpop.f32.mrb[0].mxu0
      %v1456 = vadd.f32 %v1351, %v1455
      %v1457 = vpop.f32.mrb[0].mxu0
      %v1458 = vpop.f32.mrb[0].mxu0
      %v1459 = vadd.f32 %v1351, %v1458
      %v1460 = vpop.f32.mrb[0].mxu0
      %1461 = vmatprep.mubr.bf16.mxu0 0
      %1462 = vmatmul.mubr.bf16.gmra.mrb[0].mxu0 %v1373
      %v1463 = vpop.f32.mrb[0].mxu0
      %v1464 = vadd.f32 %v1351, %v1463
      %v1465 = vpop.f32.mrb[0].mxu0
      %v1466 = vpop.f32.mrb[0].mxu0
      %v1467 = vadd.f32 %v1351, %v1466
      %v1468 = vpop.f32.mrb[0].mxu0
      %1469 = vmatprep.mubr.bf16.mxu0 0
      %1470 = vmatmul.mubr.bf16.gmra.mrb[0].mxu0 %v1376
      %v1471 = vpop.f32.mrb[0].mxu0
      %v1472 = vadd.f32 %v1351, %v1471
      %v1473 = vpop.f32.mrb[0].mxu0
      %v1474 = vpop.f32.mrb[0].mxu0
      %v1475 = vadd.f32 %v1351, %v1474
      %v1476 = vpop.f32.mrb[0].mxu0
      %1477 = vmatprep.mubr.bf16.mxu0 0
      %1478 = vmatmul.mubr.bf16.gmra.mrb[0].mxu0 %v1379
      %v1479 = vpop.f32.mrb[0].mxu0
      %v1480 = vadd.f32 %v1351, %v1479
      %v1481 = vpop.f32.mrb[0].mxu0
      %v1482 = vpop.f32.mrb[0].mxu0
      %v1483 = vadd.f32 %v1351, %v1482
      %v1484 = vpop.f32.mrb[0].mxu0
      %1485 = vmatprep.mubr.bf16.mxu0 0
      %1486 = vmatmul.mubr.bf16.gmra.mrb[0].mxu0 %v1382
      %v1487 = vpop.f32.mrb[0].mxu0
      %v1488 = vadd.f32 %v1351, %v1487
      %v1489 = vpop.f32.mrb[0].mxu0
      %v1490 = vpop.f32.mrb[0].mxu0
      %v1491 = vadd.f32 %v1351, %v1490
      %v1492 = vpop.f32.mrb[0].mxu0
      %1493 = vmatprep.mubr.bf16.mxu0 0
      %1494 = vmatmul.mubr.bf16.gmra.mrb[0].mxu0 %v1385
      %v1495 = vpop.f32.mrb[0].mxu0
      %v1496 = vadd.f32 %v1351, %v1495
      %v1497 = vpop.f32.mrb[0].mxu0
      %v1498 = vpop.f32.mrb[0].mxu0
      %v1499 = vadd.f32 %v1351, %v1498
      %v1500 = vpop.f32.mrb[0].mxu0
      %1501 = vmatprep.mubr.bf16.mxu0 0
      %1502 = vmatmul.mubr.bf16.gmra.mrb[0].mxu0 %v1388
      %v1503 = vpop.f32.mrb[0].mxu0
      %v1504 = vadd.f32 %v1351, %v1503
      %v1505 = vpop.f32.mrb[0].mxu0
      %v1506 = vpop.f32.mrb[0].mxu0
      %v1507 = vadd.f32 %v1351, %v1506
      %v1508 = vpop.f32.mrb[0].mxu0
      %1509 = vmatprep.mubr.bf16.mxu0 0
      %1510 = vmatmul.mubr.bf16.gmra.mrb[0].mxu0 %v1391
      %v1511 = vpop.f32.mrb[0].mxu0
      %v1512 = vadd.f32 %v1351, %v1511
      %v1513 = vpop.f32.mrb[0].mxu0
      %v1514 = vpop.f32.mrb[0].mxu0
      %v1515 = vadd.f32 %v1351, %v1514
      %v1516 = vpop.f32.mrb[0].mxu0
      %1517 = vmatprep.mubr.bf16.mxu0 0
      %1518 = vmatmul.mubr.bf16.gmra.mrb[0].mxu0 %v1394
      %v1519 = vpop.f32.mrb[0].mxu0
      %v1520 = vadd.f32 %v1351, %v1519
      %v1521 = vpop.f32.mrb[0].mxu0
      %v1522 = vpop.f32.mrb[0].mxu0
      %v1523 = vadd.f32 %v1351, %v1522
      %v1524 = vpop.f32.mrb[0].mxu0
      %1525 = vmatprep.mubr.bf16.mxu0 0
      %1526 = vmatmul.mubr.bf16.gmra.mrb[0].mxu0 %v1397
      %v1527 = vpop.f32.mrb[0].mxu0
      %v1528 = vadd.f32 %v1351, %v1527
      %v1529 = vpop.f32.mrb[0].mxu0
      %v1530 = vpop.f32.mrb[0].mxu0
      %v1531 = vadd.f32 %v1351, %v1530
      %v1532 = vpop.f32.mrb[0].mxu0
      %1533 = vmatprep.mubr.bf16.mxu0 0
      %1534 = vmatmul.mubr.bf16.gmra.mrb[0].mxu0 %v1400
      %v1535 = vpop.f32.mrb[0].mxu0
      %v1536 = vadd.f32 %v1351, %v1535
      %v1537 = vpop.f32.mrb[0].mxu0
      %v1538 = vpop.f32.mrb[0].mxu0
      %v1539 = vadd.f32 %v1351, %v1538
      %v1540 = vpop.f32.mrb[0].mxu0
      %1541 = vmatprep.mubr.bf16.mxu0 0
      %1542 = vmatmul.mubr.bf16.gmra.mrb[0].mxu0 %v1403
      %v1543 = vpop.f32.mrb[0].mxu0
      %v1544 = vadd.f32 %v1351, %v1543
      %v1545 = vpop.f32.mrb[0].mxu0
      %v1546 = vpop.f32.mrb[0].mxu0
      %v1547 = vadd.f32 %v1351, %v1546
      %v1548 = vpop.f32.mrb[0].mxu0
      %1549 = vmatprep.mubr.bf16.mxu0 0
      %1550 = vmatmul.mubr.bf16.gmra.mrb[0].mxu0 %v1406
      %v1551 = vpop.f32.mrb[0].mxu0
      %v1552 = vadd.f32 %v1351, %v1551
      %v1553 = vpop.f32.mrb[0].mxu0
      %v1554 = vpop.f32.mrb[0].mxu0
      %v1555 = vadd.f32 %v1351, %v1554
      %v1556 = vpop.f32.mrb[0].mxu0
      %1557 = vmatprep.mubr.bf16.mxu0 0
      %1558 = vmatmul.mubr.bf16.gmra.mrb[0].mxu0 %v1409
      %v1559 = vpop.f32.mrb[0].mxu0
      %v1560 = vadd.f32 %v1351, %v1559
      %v1561 = vpop.f32.mrb[0].mxu0
      %v1562 = vpop.f32.mrb[0].mxu0
      %v1563 = vadd.f32 %v1351, %v1562
      %v1564 = vpop.f32.mrb[0].mxu0
      %1565 = vmatprep.mubr.bf16.mxu0 0
      %1566 = vmatmul.mubr.bf16.gmra.mrb[0].mxu0 %v1412
      %v1567 = vpop.f32.mrb[0].mxu0
      %v1568 = vadd.f32 %v1351, %v1567
      %v1569 = vpop.f32.mrb[0].mxu0
      %v1570 = vpop.f32.mrb[0].mxu0
      %v1571 = vadd.f32 %v1351, %v1570
      %v1572 = vpop.f32.mrb[0].mxu0
      %1573 = vmatprep.mubr.bf16.mxu0 0
      %1574 = vmatmul.mubr.bf16.gmra.mrb[0].mxu0 %v1415
      %v1575 = vpop.f32.mrb[0].mxu0
      %v1576 = vadd.f32 %v1351, %v1575
      %v1577 = vpop.f32.mrb[0].mxu0
      %v1578 = vpop.f32.mrb[0].mxu0
      %v1579 = vadd.f32 %v1351, %v1578
      %v1580 = vpop.f32.mrb[0].mxu0
      %1581 = vdwg.mxu0
      %v1582 = vmax.f32 %v1456, 0.0
      %v1583 = vmax.f32 %v1459, 0.0
      %v1584 = vmax.f32 %v1464, 0.0
      %v1585 = vmax.f32 %v1467, 0.0
      %v1586 = vmax.f32 %v1472, 0.0
      %v1587 = vmax.f32 %v1475, 0.0
      %v1588 = vmax.f32 %v1480, 0.0
      %v1589 = vmax.f32 %v1483, 0.0
      %v1590 = vmax.f32 %v1488, 0.0
      %v1591 = vmax.f32 %v1491, 0.0
      %v1592 = vmax.f32 %v1496, 0.0
      %v1593 = vmax.f32 %v1499, 0.0
      %v1594 = vmax.f32 %v1504, 0.0
      %v1595 = vmax.f32 %v1507, 0.0
      %v1596 = vmax.f32 %v1512, 0.0
      %v1597 = vmax.f32 %v1515, 0.0
      %v1598 = vmax.f32 %v1520, 0.0
      %v1599 = vmax.f32 %v1523, 0.0
      %v1600 = vmax.f32 %v1528, 0.0
      %v1601 = vmax.f32 %v1531, 0.0
      %v1602 = vmax.f32 %v1536, 0.0
      %v1603 = vmax.f32 %v1539, 0.0
      %v1604 = vmax.f32 %v1544, 0.0
      %v1605 = vmax.f32 %v1547, 0.0
      %v1606 = vmax.f32 %v1552, 0.0
      %v1607 = vmax.f32 %v1555, 0.0
      %v1608 = vmax.f32 %v1560, 0.0
      %v1609 = vmax.f32 %v1563, 0.0
      %v1610 = vmax.f32 %v1568, 0.0
      %v1611 = vmax.f32 %v1571, 0.0
      %v1612 = vmax.f32 %v1576, 0.0
      %v1613 = vmax.f32 %v1579, 0.0
      %vm1614 = vcmask 64512
      %1615 = vst.msk [vmem:[#allocation3] sm:$0xff] %vm1614, 0.0
      %1616 = vst.msk [vmem:[#allocation3 + $0x8] sm:$0xff] %vm1614, 0.0
      %vm1617 = vcmask 58368
      %1618 = vst.msk [vmem:[#allocation3 + $0x10] sm:$0x3] %vm1617, 0.0
      %s1619 = scalar_lea.vmem [#allocation3], 408
      %1620 = vst.msk [vmem:[%s1619] sm:$0xff] %vm1614, 0.0
      %1621 = vst.msk [vmem:[%s1619 + $0x8] sm:$0xff] %vm1614, 0.0
      %1622 = vst.msk [vmem:[%s1619 + $0x10] sm:$0x3] %vm1617, 0.0
      %vm1623 = vcmask 57344
      %1624 = vst.msk [vmem:[#allocation3] sm:$0x1] %vm1623, 0.0
      %1625 = vst.msk [vmem:[#allocation3 + $0x18] sm:$0x1] %vm1623, 0.0
      %1626 = vst.msk [vmem:[#allocation3 + $0x30] sm:$0x1] %vm1623, 0.0
      %1627 = vst.msk [vmem:[#allocation3 + $0x48] sm:$0x1] %vm1623, 0.0
      %1628 = vst.msk [vmem:[#allocation3 + $0x60] sm:$0x1] %vm1623, 0.0
      %1629 = vst.msk [vmem:[#allocation3 + $0x78] sm:$0x1] %vm1623, 0.0
      %1630 = vst.msk [vmem:[#allocation3 + $0x90] sm:$0x1] %vm1623, 0.0
      %1631 = vst.msk [vmem:[#allocation3 + $0xa8] sm:$0x1] %vm1623, 0.0
      %1632 = vst.msk [vmem:[#allocation3 + $0xc0] sm:$0x1] %vm1623, 0.0
      %1633 = vst.msk [vmem:[#allocation3 + $0xd8] sm:$0x1] %vm1623, 0.0
      %1634 = vst.msk [vmem:[#allocation3 + $0xf0] sm:$0x1] %vm1623, 0.0
      %1635 = vst.msk [vmem:[#allocation3 + $0x108] sm:$0x1] %vm1623, 0.0
      %1636 = vst.msk [vmem:[#allocation3 + $0x120] sm:$0x1] %vm1623, 0.0
      %1637 = vst.msk [vmem:[#allocation3 + $0x138] sm:$0x1] %vm1623, 0.0
      %1638 = vst.msk [vmem:[#allocation3 + $0x150] sm:$0x1] %vm1623, 0.0
      %1639 = vst.msk [vmem:[#allocation3 + $0x168] sm:$0x1] %vm1623, 0.0
      %1640 = vst.msk [vmem:[#allocation3 + $0x180] sm:$0x1] %vm1623, 0.0
      %1641 = vst.msk [vmem:[#allocation3 + $0x198] sm:$0x1] %vm1623, 0.0
      %1642 = vst.msk [vmem:[#allocation3 + $0x11] sm:$0x1] %vm1623, 0.0
      %1643 = vst.msk [vmem:[#allocation3 + $0x29] sm:$0x1] %vm1623, 0.0
      %1644 = vst.msk [vmem:[#allocation3 + $0x41] sm:$0x1] %vm1623, 0.0
      %1645 = vst.msk [vmem:[#allocation3 + $0x59] sm:$0x1] %vm1623, 0.0
      %1646 = vst.msk [vmem:[#allocation3 + $0x71] sm:$0x1] %vm1623, 0.0
      %1647 = vst.msk [vmem:[#allocation3 + $0x89] sm:$0x1] %vm1623, 0.0
      %1648 = vst.msk [vmem:[#allocation3 + $0xa1] sm:$0x1] %vm1623, 0.0
      %1649 = vst.msk [vmem:[#allocation3 + $0xb9] sm:$0x1] %vm1623, 0.0
      %1650 = vst.msk [vmem:[#allocation3 + $0xd1] sm:$0x1] %vm1623, 0.0
      %1651 = vst.msk [vmem:[#allocation3 + $0xe9] sm:$0x1] %vm1623, 0.0
      %1652 = vst.msk [vmem:[#allocation3 + $0x101] sm:$0x1] %vm1623, 0.0
      %1653 = vst.msk [vmem:[#allocation3 + $0x119] sm:$0x1] %vm1623, 0.0
      %1654 = vst.msk [vmem:[#allocation3 + $0x131] sm:$0x1] %vm1623, 0.0
      %1655 = vst.msk [vmem:[#allocation3 + $0x149] sm:$0x1] %vm1623, 0.0
      %1656 = vst.msk [vmem:[#allocation3 + $0x161] sm:$0x1] %vm1623, 0.0
      %1657 = vst.msk [vmem:[#allocation3 + $0x179] sm:$0x1] %vm1623, 0.0
      %1658 = vst.msk [vmem:[#allocation3 + $0x191] sm:$0x1] %vm1623, 0.0
      %1659 = vst.msk [vmem:[#allocation3 + $0x1a9] sm:$0x1] %vm1623, 0.0
      %s1660 = scalar_lea.vmem [#allocation3], 24
      %1661 = vst.msk [vmem:[%s1660 + $0x1] sm:$0xff] %vm1614, %v1582
      %1662 = vst.msk [vmem:[%s1660 + $0x9] sm:$0xff] %vm1614, %v1583
      %1663 = vst.msk [vmem:[%s1660 + $0x19] sm:$0xff] %vm1614, %v1584
      %1664 = vst.msk [vmem:[%s1660 + $0x21] sm:$0xff] %vm1614, %v1585
      %1665 = vst.msk [vmem:[%s1660 + $0x31] sm:$0xff] %vm1614, %v1586
      %1666 = vst.msk [vmem:[%s1660 + $0x39] sm:$0xff] %vm1614, %v1587
      %1667 = vst.msk [vmem:[%s1660 + $0x49] sm:$0xff] %vm1614, %v1588
      %1668 = vst.msk [vmem:[%s1660 + $0x51] sm:$0xff] %vm1614, %v1589
      %1669 = vst.msk [vmem:[%s1660 + $0x61] sm:$0xff] %vm1614, %v1590
      %1670 = vst.msk [vmem:[%s1660 + $0x69] sm:$0xff] %vm1614, %v1591
      %1671 = vst.msk [vmem:[%s1660 + $0x79] sm:$0xff] %vm1614, %v1592
      %1672 = vst.msk [vmem:[%s1660 + $0x81] sm:$0xff] %vm1614, %v1593
      %1673 = vst.msk [vmem:[%s1660 + $0x91] sm:$0xff] %vm1614, %v1594
      %1674 = vst.msk [vmem:[%s1660 + $0x99] sm:$0xff] %vm1614, %v1595
      %1675 = vst.msk [vmem:[%s1660 + $0xa9] sm:$0xff] %vm1614, %v1596
      %1676 = vst.msk [vmem:[%s1660 + $0xb1] sm:$0xff] %vm1614, %v1597
      %1677 = vst.msk [vmem:[%s1660 + $0xc1] sm:$0xff] %vm1614, %v1598
      %1678 = vst.msk [vmem:[%s1660 + $0xc9] sm:$0xff] %vm1614, %v1599
      %1679 = vst.msk [vmem:[%s1660 + $0xd9] sm:$0xff] %vm1614, %v1600
      %1680 = vst.msk [vmem:[%s1660 + $0xe1] sm:$0xff] %vm1614, %v1601
      %1681 = vst.msk [vmem:[%s1660 + $0xf1] sm:$0xff] %vm1614, %v1602
      %1682 = vst.msk [vmem:[%s1660 + $0xf9] sm:$0xff] %vm1614, %v1603
      %1683 = vst.msk [vmem:[%s1660 + $0x109] sm:$0xff] %vm1614, %v1604
      %1684 = vst.msk [vmem:[%s1660 + $0x111] sm:$0xff] %vm1614, %v1605
      %1685 = vst.msk [vmem:[%s1660 + $0x121] sm:$0xff] %vm1614, %v1606
      %1686 = vst.msk [vmem:[%s1660 + $0x129] sm:$0xff] %vm1614, %v1607
      %1687 = vst.msk [vmem:[%s1660 + $0x139] sm:$0xff] %vm1614, %v1608
      %1688 = vst.msk [vmem:[%s1660 + $0x141] sm:$0xff] %vm1614, %v1609
      %1689 = vst.msk [vmem:[%s1660 + $0x151] sm:$0xff] %vm1614, %v1610
      %1690 = vst.msk [vmem:[%s1660 + $0x159] sm:$0xff] %vm1614, %v1611
      %1691 = vst.msk [vmem:[%s1660 + $0x169] sm:$0xff] %vm1614, %v1612
      %1692 = vst.msk [vmem:[%s1660 + $0x171] sm:$0xff] %vm1614, %v1613
      %v1693 = vld [vmem:[#allocation3] sm:$0xff]
      %v1694 = vld [vmem:[#allocation3 + $0x8] sm:$0xff]
      %v1695 = vld [vmem:[#allocation3 + $0x18] sm:$0xff]
      %v1696 = vld [vmem:[#allocation3 + $0x20] sm:$0xff]
      %v1697 = vld [vmem:[#allocation3 + $0x30] sm:$0xff]
      %v1698 = vld [vmem:[#allocation3 + $0x38] sm:$0xff]
      %v1699 = vld [vmem:[#allocation3 + $0x48] sm:$0xff]
      %v1700 = vld [vmem:[#allocation3 + $0x50] sm:$0xff]
      %v1701 = vld [vmem:[#allocation3 + $0x60] sm:$0xff]
      %v1702 = vld [vmem:[#allocation3 + $0x68] sm:$0xff]
      %v1703 = vld [vmem:[#allocation3 + $0x78] sm:$0xff]
      %v1704 = vld [vmem:[#allocation3 + $0x80] sm:$0xff]
      %v1705 = vld [vmem:[#allocation3 + $0x90] sm:$0xff]
      %v1706 = vld [vmem:[#allocation3 + $0x98] sm:$0xff]
      %v1707 = vld [vmem:[#allocation3 + $0xa8] sm:$0xff]
      %v1708 = vld [vmem:[#allocation3 + $0xb0] sm:$0xff]
      %v1709 = vld [vmem:[#allocation3 + $0xc0] sm:$0xff]
      %v1710 = vld [vmem:[#allocation3 + $0xc8] sm:$0xff]
      %v1711 = vld [vmem:[#allocation3 + $0xd8] sm:$0xff]
      %v1712 = vld [vmem:[#allocation3 + $0xe0] sm:$0xff]
      %v1713 = vld [vmem:[#allocation3 + $0xf0] sm:$0xff]
      %v1714 = vld [vmem:[#allocation3 + $0xf8] sm:$0xff]
      %v1715 = vld [vmem:[#allocation3 + $0x108] sm:$0xff]
      %v1716 = vld [vmem:[#allocation3 + $0x110] sm:$0xff]
      %v1717 = vld [vmem:[#allocation3 + $0x120] sm:$0xff]
      %v1718 = vld [vmem:[#allocation3 + $0x128] sm:$0xff]
      %v1719 = vld [vmem:[#allocation3 + $0x138] sm:$0xff]
      %v1720 = vld [vmem:[#allocation3 + $0x140] sm:$0xff]
      %v1721 = vld [vmem:[#allocation3 + $0x150] sm:$0xff]
      %v1722 = vld [vmem:[#allocation3 + $0x158] sm:$0xff]
      %v1723 = vld [vmem:[#allocation3 + $0x168] sm:$0xff]
      %v1724 = vld [vmem:[#allocation3 + $0x170] sm:$0xff]
      %v1725 = vpack.c.bf16 %v1694, %v1693
      %v1726 = vpack.c.bf16 %v1696, %v1695
      %v1727 = vpack.c.bf16 %v1698, %v1697
      %v1728 = vpack.c.bf16 %v1700, %v1699
      %v1729 = vpack.c.bf16 %v1702, %v1701
      %v1730 = vpack.c.bf16 %v1704, %v1703
      %v1731 = vpack.c.bf16 %v1706, %v1705
      %v1732 = vpack.c.bf16 %v1708, %v1707
      %v1733 = vpack.c.bf16 %v1710, %v1709
      %v1734 = vpack.c.bf16 %v1712, %v1711
      %v1735 = vpack.c.bf16 %v1714, %v1713
      %v1736 = vpack.c.bf16 %v1716, %v1715
      %v1737 = vpack.c.bf16 %v1718, %v1717
      %v1738 = vpack.c.bf16 %v1720, %v1719
      %v1739 = vpack.c.bf16 %v1722, %v1721
      %v1740 = vpack.c.bf16 %v1724, %v1723
      %1741 = vst.msk [vmem:[#allocation4] sm:$0xff] %vm1614, %v1725
      %1742 = vst.msk [vmem:[#allocation4 + $0x8] sm:$0xff] %vm1614, %v1726
      %1743 = vst.msk [vmem:[#allocation4 + $0x10] sm:$0xff] %vm1614, %v1727
      %1744 = vst.msk [vmem:[#allocation4 + $0x18] sm:$0xff] %vm1614, %v1728
      %1745 = vst.msk [vmem:[#allocation4 + $0x20] sm:$0xff] %vm1614, %v1729
      %1746 = vst.msk [vmem:[#allocation4 + $0x28] sm:$0xff] %vm1614, %v1730
      %1747 = vst.msk [vmem:[#allocation4 + $0x30] sm:$0xff] %vm1614, %v1731
      %1748 = vst.msk [vmem:[#allocation4 + $0x38] sm:$0xff] %vm1614, %v1732
      %1749 = vst.msk [vmem:[#allocation4 + $0x40] sm:$0xff] %vm1614, %v1733
      %1750 = vst.msk [vmem:[#allocation4 + $0x48] sm:$0xff] %vm1614, %v1734
      %1751 = vst.msk [vmem:[#allocation4 + $0x50] sm:$0xff] %vm1614, %v1735
      %1752 = vst.msk [vmem:[#allocation4 + $0x58] sm:$0xff] %vm1614, %v1736
      %1753 = vst.msk [vmem:[#allocation4 + $0x60] sm:$0xff] %vm1614, %v1737
      %1754 = vst.msk [vmem:[#allocation4 + $0x68] sm:$0xff] %vm1614, %v1738
      %1755 = vst.msk [vmem:[#allocation4 + $0x70] sm:$0xff] %vm1614, %v1739
      %1756 = vst.msk [vmem:[#allocation4 + $0x78] sm:$0xff] %vm1614, %v1740
      %v1757 = vld [vmem:[#allocation3 + $0x1] sm:$0xff]
      %v1758 = vld [vmem:[#allocation3 + $0x9] sm:$0xff]
      %v1759 = vld [vmem:[#allocation3 + $0x19] sm:$0xff]
      %v1760 = vld [vmem:[#allocation3 + $0x21] sm:$0xff]
      %v1761 = vld [vmem:[#allocation3 + $0x31] sm:$0xff]
      %v1762 = vld [vmem:[#allocation3 + $0x39] sm:$0xff]
      %v1763 = vld [vmem:[#allocation3 + $0x49] sm:$0xff]
      %v1764 = vld [vmem:[#allocation3 + $0x51] sm:$0xff]
      %v1765 = vld [vmem:[#allocation3 + $0x61] sm:$0xff]
      %v1766 = vld [vmem:[#allocation3 + $0x69] sm:$0xff]
      %v1767 = vld [vmem:[#allocation3 + $0x79] sm:$0xff]
      %v1768 = vld [vmem:[#allocation3 + $0x81] sm:$0xff]
      %v1769 = vld [vmem:[#allocation3 + $0x91] sm:$0xff]
      %v1770 = vld [vmem:[#allocation3 + $0x99] sm:$0xff]
      %v1771 = vld [vmem:[#allocation3 + $0xa9] sm:$0xff]
      %v1772 = vld [vmem:[#allocation3 + $0xb1] sm:$0xff]
      %v1773 = vld [vmem:[#allocation3 + $0xc1] sm:$0xff]
      %v1774 = vld [vmem:[#allocation3 + $0xc9] sm:$0xff]
      %v1775 = vld [vmem:[#allocation3 + $0xd9] sm:$0xff]
      %v1776 = vld [vmem:[#allocation3 + $0xe1] sm:$0xff]
      %v1777 = vld [vmem:[#allocation3 + $0xf1] sm:$0xff]
      %v1778 = vld [vmem:[#allocation3 + $0xf9] sm:$0xff]
      %v1779 = vld [vmem:[#allocation3 + $0x109] sm:$0xff]
      %v1780 = vld [vmem:[#allocation3 + $0x111] sm:$0xff]
      %v1781 = vld [vmem:[#allocation3 + $0x121] sm:$0xff]
      %v1782 = vld [vmem:[#allocation3 + $0x129] sm:$0xff]
      %v1783 = vld [vmem:[#allocation3 + $0x139] sm:$0xff]
      %v1784 = vld [vmem:[#allocation3 + $0x141] sm:$0xff]
      %v1785 = vld [vmem:[#allocation3 + $0x151] sm:$0xff]
      %v1786 = vld [vmem:[#allocation3 + $0x159] sm:$0xff]
      %v1787 = vld [vmem:[#allocation3 + $0x169] sm:$0xff]
      %v1788 = vld [vmem:[#allocation3 + $0x171] sm:$0xff]
      %v1789 = vpack.c.bf16 %v1758, %v1757
      %v1790 = vpack.c.bf16 %v1760, %v1759
      %v1791 = vpack.c.bf16 %v1762, %v1761
      %v1792 = vpack.c.bf16 %v1764, %v1763
      %v1793 = vpack.c.bf16 %v1766, %v1765
      %v1794 = vpack.c.bf16 %v1768, %v1767
      %v1795 = vpack.c.bf16 %v1770, %v1769
      %v1796 = vpack.c.bf16 %v1772, %v1771
      %v1797 = vpack.c.bf16 %v1774, %v1773
      %v1798 = vpack.c.bf16 %v1776, %v1775
      %v1799 = vpack.c.bf16 %v1778, %v1777
      %v1800 = vpack.c.bf16 %v1780, %v1779
      %v1801 = vpack.c.bf16 %v1782, %v1781
      %v1802 = vpack.c.bf16 %v1784, %v1783
      %v1803 = vpack.c.bf16 %v1786, %v1785
      %v1804 = vpack.c.bf16 %v1788, %v1787
      %1821 = vrot.lane.b32.xlu0 %v1789, 8
      %v1822 = vpop.permute.xlu0 %1821
      %1823 = vrot.lane.b32.xlu0 %v1790, 8
      %v1824 = vpop.permute.xlu0 %1823
      %1825 = vrot.lane.b32.xlu0 %v1791, 8
      %v1826 = vpop.permute.xlu0 %1825
      %1827 = vrot.lane.b32.xlu0 %v1792, 8
      %v1828 = vpop.permute.xlu0 %1827
      %1829 = vrot.lane.b32.xlu0 %v1793, 8
      %v1830 = vpop.permute.xlu0 %1829
      %1831 = vrot.lane.b32.xlu0 %v1794, 8
      %v1832 = vpop.permute.xlu0 %1831
      %1833 = vrot.lane.b32.xlu0 %v1795, 8
      %v1834 = vpop.permute.xlu0 %1833
      %1835 = vrot.lane.b32.xlu0 %v1796, 8
      %v1836 = vpop.permute.xlu0 %1835
      %1837 = vrot.lane.b32.xlu0 %v1797, 8
      %v1838 = vpop.permute.xlu0 %1837
      %1839 = vrot.lane.b32.xlu0 %v1798, 8
      %v1840 = vpop.permute.xlu0 %1839
      %1841 = vrot.lane.b32.xlu0 %v1799, 8
      %v1842 = vpop.permute.xlu0 %1841
      %1843 = vrot.lane.b32.xlu0 %v1800, 8
      %v1844 = vpop.permute.xlu0 %1843
      %1845 = vrot.lane.b32.xlu0 %v1801, 8
      %v1846 = vpop.permute.xlu0 %1845
      %1847 = vrot.lane.b32.xlu0 %v1802, 8
      %v1848 = vpop.permute.xlu0 %1847
      %1849 = vrot.lane.b32.xlu0 %v1803, 8
      %v1850 = vpop.permute.xlu0 %1849
      %1851 = vrot.lane.b32.xlu0 %v1804, 8
      %v1852 = vpop.permute.xlu0 %1851
      %vm1869 = vcmask 130112
      %1870 = vst.msk [vmem:[#allocation4] sm:$0xff] %vm1869, %v1822
      %1871 = vst.msk [vmem:[#allocation4 + $0x8] sm:$0xff] %vm1869, %v1824
      %1872 = vst.msk [vmem:[#allocation4 + $0x10] sm:$0xff] %vm1869, %v1826
      %1873 = vst.msk [vmem:[#allocation4 + $0x18] sm:$0xff] %vm1869, %v1828
      %1874 = vst.msk [vmem:[#allocation4 + $0x20] sm:$0xff] %vm1869, %v1830
      %1875 = vst.msk [vmem:[#allocation4 + $0x28] sm:$0xff] %vm1869, %v1832
      %1876 = vst.msk [vmem:[#allocation4 + $0x30] sm:$0xff] %vm1869, %v1834
      %1877 = vst.msk [vmem:[#allocation4 + $0x38] sm:$0xff] %vm1869, %v1836
      %1878 = vst.msk [vmem:[#allocation4 + $0x40] sm:$0xff] %vm1869, %v1838
      %1879 = vst.msk [vmem:[#allocation4 + $0x48] sm:$0xff] %vm1869, %v1840
      %1880 = vst.msk [vmem:[#allocation4 + $0x50] sm:$0xff] %vm1869, %v1842
      %1881 = vst.msk [vmem:[#allocation4 + $0x58] sm:$0xff] %vm1869, %v1844
      %1882 = vst.msk [vmem:[#allocation4 + $0x60] sm:$0xff] %vm1869, %v1846
      %1883 = vst.msk [vmem:[#allocation4 + $0x68] sm:$0xff] %vm1869, %v1848
      %1884 = vst.msk [vmem:[#allocation4 + $0x70] sm:$0xff] %vm1869, %v1850
      %1885 = vst.msk [vmem:[#allocation4 + $0x78] sm:$0xff] %vm1869, %v1852
      %v1886 = vld [vmem:[#allocation3 + $0x2] sm:$0xff]
      %v1887 = vld [vmem:[#allocation3 + $0xa] sm:$0xff]
      %v1888 = vld [vmem:[#allocation3 + $0x1a] sm:$0xff]
      %v1889 = vld [vmem:[#allocation3 + $0x22] sm:$0xff]
      %v1890 = vld [vmem:[#allocation3 + $0x32] sm:$0xff]
      %v1891 = vld [vmem:[#allocation3 + $0x3a] sm:$0xff]
      %v1892 = vld [vmem:[#allocation3 + $0x4a] sm:$0xff]
      %v1893 = vld [vmem:[#allocation3 + $0x52] sm:$0xff]
      %v1894 = vld [vmem:[#allocation3 + $0x62] sm:$0xff]
      %v1895 = vld [vmem:[#allocation3 + $0x6a] sm:$0xff]
      %v1896 = vld [vmem:[#allocation3 + $0x7a] sm:$0xff]
      %v1897 = vld [vmem:[#allocation3 + $0x82] sm:$0xff]
      %v1898 = vld [vmem:[#allocation3 + $0x92] sm:$0xff]
      %v1899 = vld [vmem:[#allocation3 + $0x9a] sm:$0xff]
      %v1900 = vld [vmem:[#allocation3 + $0xaa] sm:$0xff]
      %v1901 = vld [vmem:[#allocation3 + $0xb2] sm:$0xff]
      %v1902 = vld [vmem:[#allocation3 + $0xc2] sm:$0xff]
      %v1903 = vld [vmem:[#allocation3 + $0xca] sm:$0xff]
      %v1904 = vld [vmem:[#allocation3 + $0xda] sm:$0xff]
      %v1905 = vld [vmem:[#allocation3 + $0xe2] sm:$0xff]
      %v1906 = vld [vmem:[#allocation3 + $0xf2] sm:$0xff]
      %v1907 = vld [vmem:[#allocation3 + $0xfa] sm:$0xff]
      %v1908 = vld [vmem:[#allocation3 + $0x10a] sm:$0xff]
      %v1909 = vld [vmem:[#allocation3 + $0x112] sm:$0xff]
      %v1910 = vld [vmem:[#allocation3 + $0x122] sm:$0xff]
      %v1911 = vld [vmem:[#allocation3 + $0x12a] sm:$0xff]
      %v1912 = vld [vmem:[#allocation3 + $0x13a] sm:$0xff]
      %v1913 = vld [vmem:[#allocation3 + $0x142] sm:$0xff]
      %v1914 = vld [vmem:[#allocation3 + $0x152] sm:$0xff]
      %v1915 = vld [vmem:[#allocation3 + $0x15a] sm:$0xff]
      %v1916 = vld [vmem:[#allocation3 + $0x16a] sm:$0xff]
      %v1917 = vld [vmem:[#allocation3 + $0x172] sm:$0xff]
      %v1918 = vpack.c.bf16 %v1887, %v1886
      %v1919 = vpack.c.bf16 %v1889, %v1888
      %v1920 = vpack.c.bf16 %v1891, %v1890
      %v1921 = vpack.c.bf16 %v1893, %v1892
      %v1922 = vpack.c.bf16 %v1895, %v1894
      %v1923 = vpack.c.bf16 %v1897, %v1896
      %v1924 = vpack.c.bf16 %v1899, %v1898
      %v1925 = vpack.c.bf16 %v1901, %v1900
      %v1926 = vpack.c.bf16 %v1903, %v1902
      %v1927 = vpack.c.bf16 %v1905, %v1904
      %v1928 = vpack.c.bf16 %v1907, %v1906
      %v1929 = vpack.c.bf16 %v1909, %v1908
      %v1930 = vpack.c.bf16 %v1911, %v1910
      %v1931 = vpack.c.bf16 %v1913, %v1912
      %v1932 = vpack.c.bf16 %v1915, %v1914
      %v1933 = vpack.c.bf16 %v1917, %v1916
      %1950 = vrot.lane.b32.xlu0 %v1918, 16
      %v1951 = vpop.permute.xlu0 %1950
      %1952 = vrot.lane.b32.xlu0 %v1919, 16
      %v1953 = vpop.permute.xlu0 %1952
      %1954 = vrot.lane.b32.xlu0 %v1920, 16
      %v1955 = vpop.permute.xlu0 %1954
      %1956 = vrot.lane.b32.xlu0 %v1921, 16
      %v1957 = vpop.permute.xlu0 %1956
      %1958 = vrot.lane.b32.xlu0 %v1922, 16
      %v1959 = vpop.permute.xlu0 %1958
      %1960 = vrot.lane.b32.xlu0 %v1923, 16
      %v1961 = vpop.permute.xlu0 %1960
      %1962 = vrot.lane.b32.xlu0 %v1924, 16
      %v1963 = vpop.permute.xlu0 %1962
      %1964 = vrot.lane.b32.xlu0 %v1925, 16
      %v1965 = vpop.permute.xlu0 %1964
      %1966 = vrot.lane.b32.xlu0 %v1926, 16
      %v1967 = vpop.permute.xlu0 %1966
      %1968 = vrot.lane.b32.xlu0 %v1927, 16
      %v1969 = vpop.permute.xlu0 %1968
      %1970 = vrot.lane.b32.xlu0 %v1928, 16
      %v1971 = vpop.permute.xlu0 %1970
      %1972 = vrot.lane.b32.xlu0 %v1929, 16
      %v1973 = vpop.permute.xlu0 %1972
      %1974 = vrot.lane.b32.xlu0 %v1930, 16
      %v1975 = vpop.permute.xlu0 %1974
      %1976 = vrot.lane.b32.xlu0 %v1931, 16
      %v1977 = vpop.permute.xlu0 %1976
      %1978 = vrot.lane.b32.xlu0 %v1932, 16
      %v1979 = vpop.permute.xlu0 %1978
      %1980 = vrot.lane.b32.xlu0 %v1933, 16
      %v1981 = vpop.permute.xlu0 %1980
      %vm1998 = vcmask 195712
      %1999 = vst.msk [vmem:[#allocation4] sm:$0xff] %vm1998, %v1951
      %2000 = vst.msk [vmem:[#allocation4 + $0x8] sm:$0xff] %vm1998, %v1953
      %2001 = vst.msk [vmem:[#allocation4 + $0x10] sm:$0xff] %vm1998, %v1955
      %2002 = vst.msk [vmem:[#allocation4 + $0x18] sm:$0xff] %vm1998, %v1957
      %2003 = vst.msk [vmem:[#allocation4 + $0x20] sm:$0xff] %vm1998, %v1959
      %2004 = vst.msk [vmem:[#allocation4 + $0x28] sm:$0xff] %vm1998, %v1961
      %2005 = vst.msk [vmem:[#allocation4 + $0x30] sm:$0xff] %vm1998, %v1963
      %2006 = vst.msk [vmem:[#allocation4 + $0x38] sm:$0xff] %vm1998, %v1965
      %2007 = vst.msk [vmem:[#allocation4 + $0x40] sm:$0xff] %vm1998, %v1967
      %2008 = vst.msk [vmem:[#allocation4 + $0x48] sm:$0xff] %vm1998, %v1969
      %2009 = vst.msk [vmem:[#allocation4 + $0x50] sm:$0xff] %vm1998, %v1971
      %2010 = vst.msk [vmem:[#allocation4 + $0x58] sm:$0xff] %vm1998, %v1973
      %2011 = vst.msk [vmem:[#allocation4 + $0x60] sm:$0xff] %vm1998, %v1975
      %2012 = vst.msk [vmem:[#allocation4 + $0x68] sm:$0xff] %vm1998, %v1977
      %2013 = vst.msk [vmem:[#allocation4 + $0x70] sm:$0xff] %vm1998, %v1979
      %2014 = vst.msk [vmem:[#allocation4 + $0x78] sm:$0xff] %vm1998, %v1981
      %v2015 = vld [vmem:[%s1660] sm:$0xff]
      %v2016 = vld [vmem:[%s1660 + $0x8] sm:$0xff]
      %v2017 = vld [vmem:[%s1660 + $0x18] sm:$0xff]
      %v2018 = vld [vmem:[%s1660 + $0x20] sm:$0xff]
      %v2019 = vld [vmem:[%s1660 + $0x30] sm:$0xff]
      %v2020 = vld [vmem:[%s1660 + $0x38] sm:$0xff]
      %v2021 = vld [vmem:[%s1660 + $0x48] sm:$0xff]
      %v2022 = vld [vmem:[%s1660 + $0x50] sm:$0xff]
      %v2023 = vld [vmem:[%s1660 + $0x60] sm:$0xff]
      %v2024 = vld [vmem:[%s1660 + $0x68] sm:$0xff]
      %v2025 = vld [vmem:[%s1660 + $0x78] sm:$0xff]
      %v2026 = vld [vmem:[%s1660 + $0x80] sm:$0xff]
      %v2027 = vld [vmem:[%s1660 + $0x90] sm:$0xff]
      %v2028 = vld [vmem:[%s1660 + $0x98] sm:$0xff]
      %v2029 = vld [vmem:[%s1660 + $0xa8] sm:$0xff]
      %v2030 = vld [vmem:[%s1660 + $0xb0] sm:$0xff]
      %v2031 = vld [vmem:[%s1660 + $0xc0] sm:$0xff]
      %v2032 = vld [vmem:[%s1660 + $0xc8] sm:$0xff]
      %v2033 = vld [vmem:[%s1660 + $0xd8] sm:$0xff]
      %v2034 = vld [vmem:[%s1660 + $0xe0] sm:$0xff]
      %v2035 = vld [vmem:[%s1660 + $0xf0] sm:$0xff]
      %v2036 = vld [vmem:[%s1660 + $0xf8] sm:$0xff]
      %v2037 = vld [vmem:[%s1660 + $0x108] sm:$0xff]
      %v2038 = vld [vmem:[%s1660 + $0x110] sm:$0xff]
      %v2039 = vld [vmem:[%s1660 + $0x120] sm:$0xff]
      %v2040 = vld [vmem:[%s1660 + $0x128] sm:$0xff]
      %v2041 = vld [vmem:[%s1660 + $0x138] sm:$0xff]
      %v2042 = vld [vmem:[%s1660 + $0x140] sm:$0xff]
      %v2043 = vld [vmem:[%s1660 + $0x150] sm:$0xff]
      %v2044 = vld [vmem:[%s1660 + $0x158] sm:$0xff]
      %v2045 = vld [vmem:[%s1660 + $0x168] sm:$0xff]
      %v2046 = vld [vmem:[%s1660 + $0x170] sm:$0xff]
      %v2047 = vpack.c.bf16 %v2016, %v2015
      %v2048 = vpack.c.bf16 %v2018, %v2017
      %v2049 = vpack.c.bf16 %v2020, %v2019
      %v2050 = vpack.c.bf16 %v2022, %v2021
      %v2051 = vpack.c.bf16 %v2024, %v2023
      %v2052 = vpack.c.bf16 %v2026, %v2025
      %v2053 = vpack.c.bf16 %v2028, %v2027
      %v2054 = vpack.c.bf16 %v2030, %v2029
      %v2055 = vpack.c.bf16 %v2032, %v2031
      %v2056 = vpack.c.bf16 %v2034, %v2033
      %v2057 = vpack.c.bf16 %v2036, %v2035
      %v2058 = vpack.c.bf16 %v2038, %v2037
      %v2059 = vpack.c.bf16 %v2040, %v2039
      %v2060 = vpack.c.bf16 %v2042, %v2041
      %v2061 = vpack.c.bf16 %v2044, %v2043
      %v2062 = vpack.c.bf16 %v2046, %v2045
      %2079 = vrot.lane.b32.xlu0 %v2047, 24
      %v2080 = vpop.permute.xlu0 %2079
      %2081 = vrot.lane.b32.xlu0 %v2048, 24
      %v2082 = vpop.permute.xlu0 %2081
      %2083 = vrot.lane.b32.xlu0 %v2049, 24
      %v2084 = vpop.permute.xlu0 %2083
      %2085 = vrot.lane.b32.xlu0 %v2050, 24
      %v2086 = vpop.permute.xlu0 %2085
      %2087 = vrot.lane.b32.xlu0 %v2051, 24
      %v2088 = vpop.permute.xlu0 %2087
      %2089 = vrot.lane.b32.xlu0 %v2052, 24
      %v2090 = vpop.permute.xlu0 %2089
      %2091 = vrot.lane.b32.xlu0 %v2053, 24
      %v2092 = vpop.permute.xlu0 %2091
      %2093 = vrot.lane.b32.xlu0 %v2054, 24
      %v2094 = vpop.permute.xlu0 %2093
      %2095 = vrot.lane.b32.xlu0 %v2055, 24
      %v2096 = vpop.permute.xlu0 %2095
      %2097 = vrot.lane.b32.xlu0 %v2056, 24
      %v2098 = vpop.permute.xlu0 %2097
      %2099 = vrot.lane.b32.xlu0 %v2057, 24
      %v2100 = vpop.permute.xlu0 %2099
      %2101 = vrot.lane.b32.xlu0 %v2058, 24
      %v2102 = vpop.permute.xlu0 %2101
      %2103 = vrot.lane.b32.xlu0 %v2059, 24
      %v2104 = vpop.permute.xlu0 %2103
      %2105 = vrot.lane.b32.xlu0 %v2060, 24
      %v2106 = vpop.permute.xlu0 %2105
      %2107 = vrot.lane.b32.xlu0 %v2061, 24
      %v2108 = vpop.permute.xlu0 %2107
      %2109 = vrot.lane.b32.xlu0 %v2062, 24
      %v2110 = vpop.permute.xlu0 %2109
      %vm2127 = vcmask 261312
      %2128 = vst.msk [vmem:[#allocation4] sm:$0xff] %vm2127, %v2080
      %2129 = vst.msk [vmem:[#allocation4 + $0x8] sm:$0xff] %vm2127, %v2082
      %2130 = vst.msk [vmem:[#allocation4 + $0x10] sm:$0xff] %vm2127, %v2084
      %2131 = vst.msk [vmem:[#allocation4 + $0x18] sm:$0xff] %vm2127, %v2086
      %2132 = vst.msk [vmem:[#allocation4 + $0x20] sm:$0xff] %vm2127, %v2088
      %2133 = vst.msk [vmem:[#allocation4 + $0x28] sm:$0xff] %vm2127, %v2090
      %2134 = vst.msk [vmem:[#allocation4 + $0x30] sm:$0xff] %vm2127, %v2092
      %2135 = vst.msk [vmem:[#allocation4 + $0x38] sm:$0xff] %vm2127, %v2094
      %2136 = vst.msk [vmem:[#allocation4 + $0x40] sm:$0xff] %vm2127, %v2096
      %2137 = vst.msk [vmem:[#allocation4 + $0x48] sm:$0xff] %vm2127, %v2098
      %2138 = vst.msk [vmem:[#allocation4 + $0x50] sm:$0xff] %vm2127, %v2100
      %2139 = vst.msk [vmem:[#allocation4 + $0x58] sm:$0xff] %vm2127, %v2102
      %2140 = vst.msk [vmem:[#allocation4 + $0x60] sm:$0xff] %vm2127, %v2104
      %2141 = vst.msk [vmem:[#allocation4 + $0x68] sm:$0xff] %vm2127, %v2106
      %2142 = vst.msk [vmem:[#allocation4 + $0x70] sm:$0xff] %vm2127, %v2108
      %2143 = vst.msk [vmem:[#allocation4 + $0x78] sm:$0xff] %vm2127, %v2110
      %v2144 = vld [vmem:[%s1660 + $0x1] sm:$0xff]
      %v2145 = vld [vmem:[%s1660 + $0x9] sm:$0xff]
      %v2146 = vld [vmem:[%s1660 + $0x19] sm:$0xff]
      %v2147 = vld [vmem:[%s1660 + $0x21] sm:$0xff]
      %v2148 = vld [vmem:[%s1660 + $0x31] sm:$0xff]
      %v2149 = vld [vmem:[%s1660 + $0x39] sm:$0xff]
      %v2150 = vld [vmem:[%s1660 + $0x49] sm:$0xff]
      %v2151 = vld [vmem:[%s1660 + $0x51] sm:$0xff]
      %v2152 = vld [vmem:[%s1660 + $0x61] sm:$0xff]
      %v2153 = vld [vmem:[%s1660 + $0x69] sm:$0xff]
      %v2154 = vld [vmem:[%s1660 + $0x79] sm:$0xff]
      %v2155 = vld [vmem:[%s1660 + $0x81] sm:$0xff]
      %v2156 = vld [vmem:[%s1660 + $0x91] sm:$0xff]
      %v2157 = vld [vmem:[%s1660 + $0x99] sm:$0xff]
      %v2158 = vld [vmem:[%s1660 + $0xa9] sm:$0xff]
      %v2159 = vld [vmem:[%s1660 + $0xb1] sm:$0xff]
      %v2160 = vld [vmem:[%s1660 + $0xc1] sm:$0xff]
      %v2161 = vld [vmem:[%s1660 + $0xc9] sm:$0xff]
      %v2162 = vld [vmem:[%s1660 + $0xd9] sm:$0xff]
      %v2163 = vld [vmem:[%s1660 + $0xe1] sm:$0xff]
      %v2164 = vld [vmem:[%s1660 + $0xf1] sm:$0xff]
      %v2165 = vld [vmem:[%s1660 + $0xf9] sm:$0xff]
      %v2166 = vld [vmem:[%s1660 + $0x109] sm:$0xff]
      %v2167 = vld [vmem:[%s1660 + $0x111] sm:$0xff]
      %v2168 = vld [vmem:[%s1660 + $0x121] sm:$0xff]
      %v2169 = vld [vmem:[%s1660 + $0x129] sm:$0xff]
      %v2170 = vld [vmem:[%s1660 + $0x139] sm:$0xff]
      %v2171 = vld [vmem:[%s1660 + $0x141] sm:$0xff]
      %v2172 = vld [vmem:[%s1660 + $0x151] sm:$0xff]
      %v2173 = vld [vmem:[%s1660 + $0x159] sm:$0xff]
      %v2174 = vld [vmem:[%s1660 + $0x169] sm:$0xff]
      %v2175 = vld [vmem:[%s1660 + $0x171] sm:$0xff]
      %v2176 = vpack.c.bf16 %v2145, %v2144
      %v2177 = vpack.c.bf16 %v2147, %v2146
      %v2178 = vpack.c.bf16 %v2149, %v2148
      %v2179 = vpack.c.bf16 %v2151, %v2150
      %v2180 = vpack.c.bf16 %v2153, %v2152
      %v2181 = vpack.c.bf16 %v2155, %v2154
      %v2182 = vpack.c.bf16 %v2157, %v2156
      %v2183 = vpack.c.bf16 %v2159, %v2158
      %v2184 = vpack.c.bf16 %v2161, %v2160
      %v2185 = vpack.c.bf16 %v2163, %v2162
      %v2186 = vpack.c.bf16 %v2165, %v2164
      %v2187 = vpack.c.bf16 %v2167, %v2166
      %v2188 = vpack.c.bf16 %v2169, %v2168
      %v2189 = vpack.c.bf16 %v2171, %v2170
      %v2190 = vpack.c.bf16 %v2173, %v2172
      %v2191 = vpack.c.bf16 %v2175, %v2174
      %2208 = vrot.lane.b32.xlu0 %v2176, 32
      %v2209 = vpop.permute.xlu0 %2208
      %2210 = vrot.lane.b32.xlu0 %v2177, 32
      %v2211 = vpop.permute.xlu0 %2210
      %2212 = vrot.lane.b32.xlu0 %v2178, 32
      %v2213 = vpop.permute.xlu0 %2212
      %2214 = vrot.lane.b32.xlu0 %v2179, 32
      %v2215 = vpop.permute.xlu0 %2214
      %2216 = vrot.lane.b32.xlu0 %v2180, 32
      %v2217 = vpop.permute.xlu0 %2216
      %2218 = vrot.lane.b32.xlu0 %v2181, 32
      %v2219 = vpop.permute.xlu0 %2218
      %2220 = vrot.lane.b32.xlu0 %v2182, 32
      %v2221 = vpop.permute.xlu0 %2220
      %2222 = vrot.lane.b32.xlu0 %v2183, 32
      %v2223 = vpop.permute.xlu0 %2222
      %2224 = vrot.lane.b32.xlu0 %v2184, 32
      %v2225 = vpop.permute.xlu0 %2224
      %2226 = vrot.lane.b32.xlu0 %v2185, 32
      %v2227 = vpop.permute.xlu0 %2226
      %2228 = vrot.lane.b32.xlu0 %v2186, 32
      %v2229 = vpop.permute.xlu0 %2228
      %2230 = vrot.lane.b32.xlu0 %v2187, 32
      %v2231 = vpop.permute.xlu0 %2230
      %2232 = vrot.lane.b32.xlu0 %v2188, 32
      %v2233 = vpop.permute.xlu0 %2232
      %2234 = vrot.lane.b32.xlu0 %v2189, 32
      %v2235 = vpop.permute.xlu0 %2234
      %2236 = vrot.lane.b32.xlu0 %v2190, 32
      %v2237 = vpop.permute.xlu0 %2236
      %2238 = vrot.lane.b32.xlu0 %v2191, 32
      %v2239 = vpop.permute.xlu0 %2238
      %vm2256 = vcmask 326912
      %2257 = vst.msk [vmem:[#allocation4] sm:$0xff] %vm2256, %v2209
      %2258 = vst.msk [vmem:[#allocation4 + $0x8] sm:$0xff] %vm2256, %v2211
      %2259 = vst.msk [vmem:[#allocation4 + $0x10] sm:$0xff] %vm2256, %v2213
      %2260 = vst.msk [vmem:[#allocation4 + $0x18] sm:$0xff] %vm2256, %v2215
      %2261 = vst.msk [vmem:[#allocation4 + $0x20] sm:$0xff] %vm2256, %v2217
      %2262 = vst.msk [vmem:[#allocation4 + $0x28] sm:$0xff] %vm2256, %v2219
      %2263 = vst.msk [vmem:[#allocation4 + $0x30] sm:$0xff] %vm2256, %v2221
      %2264 = vst.msk [vmem:[#allocation4 + $0x38] sm:$0xff] %vm2256, %v2223
      %2265 = vst.msk [vmem:[#allocation4 + $0x40] sm:$0xff] %vm2256, %v2225
      %2266 = vst.msk [vmem:[#allocation4 + $0x48] sm:$0xff] %vm2256, %v2227
      %2267 = vst.msk [vmem:[#allocation4 + $0x50] sm:$0xff] %vm2256, %v2229
      %2268 = vst.msk [vmem:[#allocation4 + $0x58] sm:$0xff] %vm2256, %v2231
      %2269 = vst.msk [vmem:[#allocation4 + $0x60] sm:$0xff] %vm2256, %v2233
      %2270 = vst.msk [vmem:[#allocation4 + $0x68] sm:$0xff] %vm2256, %v2235
      %2271 = vst.msk [vmem:[#allocation4 + $0x70] sm:$0xff] %vm2256, %v2237
      %2272 = vst.msk [vmem:[#allocation4 + $0x78] sm:$0xff] %vm2256, %v2239
      %v2273 = vld [vmem:[%s1660 + $0x2] sm:$0xff]
      %v2274 = vld [vmem:[%s1660 + $0xa] sm:$0xff]
      %v2275 = vld [vmem:[%s1660 + $0x1a] sm:$0xff]
      %v2276 = vld [vmem:[%s1660 + $0x22] sm:$0xff]
      %v2277 = vld [vmem:[%s1660 + $0x32] sm:$0xff]
      %v2278 = vld [vmem:[%s1660 + $0x3a] sm:$0xff]
      %v2279 = vld [vmem:[%s1660 + $0x4a] sm:$0xff]
      %v2280 = vld [vmem:[%s1660 + $0x52] sm:$0xff]
      %v2281 = vld [vmem:[%s1660 + $0x62] sm:$0xff]
      %v2282 = vld [vmem:[%s1660 + $0x6a] sm:$0xff]
      %v2283 = vld [vmem:[%s1660 + $0x7a] sm:$0xff]
      %v2284 = vld [vmem:[%s1660 + $0x82] sm:$0xff]
      %v2285 = vld [vmem:[%s1660 + $0x92] sm:$0xff]
      %v2286 = vld [vmem:[%s1660 + $0x9a] sm:$0xff]
      %v2287 = vld [vmem:[%s1660 + $0xaa] sm:$0xff]
      %v2288 = vld [vmem:[%s1660 + $0xb2] sm:$0xff]
      %v2289 = vld [vmem:[%s1660 + $0xc2] sm:$0xff]
      %v2290 = vld [vmem:[%s1660 + $0xca] sm:$0xff]
      %v2291 = vld [vmem:[%s1660 + $0xda] sm:$0xff]
      %v2292 = vld [vmem:[%s1660 + $0xe2] sm:$0xff]
      %v2293 = vld [vmem:[%s1660 + $0xf2] sm:$0xff]
      %v2294 = vld [vmem:[%s1660 + $0xfa] sm:$0xff]
      %v2295 = vld [vmem:[%s1660 + $0x10a] sm:$0xff]
      %v2296 = vld [vmem:[%s1660 + $0x112] sm:$0xff]
      %v2297 = vld [vmem:[%s1660 + $0x122] sm:$0xff]
      %v2298 = vld [vmem:[%s1660 + $0x12a] sm:$0xff]
      %v2299 = vld [vmem:[%s1660 + $0x13a] sm:$0xff]
      %v2300 = vld [vmem:[%s1660 + $0x142] sm:$0xff]
      %v2301 = vld [vmem:[%s1660 + $0x152] sm:$0xff]
      %v2302 = vld [vmem:[%s1660 + $0x15a] sm:$0xff]
      %v2303 = vld [vmem:[%s1660 + $0x16a] sm:$0xff]
      %v2304 = vld [vmem:[%s1660 + $0x172] sm:$0xff]
      %v2305 = vpack.c.bf16 %v2274, %v2273
      %v2306 = vpack.c.bf16 %v2276, %v2275
      %v2307 = vpack.c.bf16 %v2278, %v2277
      %v2308 = vpack.c.bf16 %v2280, %v2279
      %v2309 = vpack.c.bf16 %v2282, %v2281
      %v2310 = vpack.c.bf16 %v2284, %v2283
      %v2311 = vpack.c.bf16 %v2286, %v2285
      %v2312 = vpack.c.bf16 %v2288, %v2287
      %v2313 = vpack.c.bf16 %v2290, %v2289
      %v2314 = vpack.c.bf16 %v2292, %v2291
      %v2315 = vpack.c.bf16 %v2294, %v2293
      %v2316 = vpack.c.bf16 %v2296, %v2295
      %v2317 = vpack.c.bf16 %v2298, %v2297
      %v2318 = vpack.c.bf16 %v2300, %v2299
      %v2319 = vpack.c.bf16 %v2302, %v2301
      %v2320 = vpack.c.bf16 %v2304, %v2303
      %2337 = vrot.lane.b32.xlu0 %v2305, 40
      %v2338 = vpop.permute.xlu0 %2337
      %2339 = vrot.lane.b32.xlu0 %v2306, 40
      %v2340 = vpop.permute.xlu0 %2339
      %2341 = vrot.lane.b32.xlu0 %v2307, 40
      %v2342 = vpop.permute.xlu0 %2341
      %2343 = vrot.lane.b32.xlu0 %v2308, 40
      %v2344 = vpop.permute.xlu0 %2343
      %2345 = vrot.lane.b32.xlu0 %v2309, 40
      %v2346 = vpop.permute.xlu0 %2345
      %2347 = vrot.lane.b32.xlu0 %v2310, 40
      %v2348 = vpop.permute.xlu0 %2347
      %2349 = vrot.lane.b32.xlu0 %v2311, 40
      %v2350 = vpop.permute.xlu0 %2349
      %2351 = vrot.lane.b32.xlu0 %v2312, 40
      %v2352 = vpop.permute.xlu0 %2351
      %2353 = vrot.lane.b32.xlu0 %v2313, 40
      %v2354 = vpop.permute.xlu0 %2353
      %2355 = vrot.lane.b32.xlu0 %v2314, 40
      %v2356 = vpop.permute.xlu0 %2355
      %2357 = vrot.lane.b32.xlu0 %v2315, 40
      %v2358 = vpop.permute.xlu0 %2357
      %2359 = vrot.lane.b32.xlu0 %v2316, 40
      %v2360 = vpop.permute.xlu0 %2359
      %2361 = vrot.lane.b32.xlu0 %v2317, 40
      %v2362 = vpop.permute.xlu0 %2361
      %2363 = vrot.lane.b32.xlu0 %v2318, 40
      %v2364 = vpop.permute.xlu0 %2363
      %2365 = vrot.lane.b32.xlu0 %v2319, 40
      %v2366 = vpop.permute.xlu0 %2365
      %2367 = vrot.lane.b32.xlu0 %v2320, 40
      %v2368 = vpop.permute.xlu0 %2367
      %vm2385 = vcmask 392512
      %2386 = vst.msk [vmem:[#allocation4] sm:$0xff] %vm2385, %v2338
      %2387 = vst.msk [vmem:[#allocation4 + $0x8] sm:$0xff] %vm2385, %v2340
      %2388 = vst.msk [vmem:[#allocation4 + $0x10] sm:$0xff] %vm2385, %v2342
      %2389 = vst.msk [vmem:[#allocation4 + $0x18] sm:$0xff] %vm2385, %v2344
      %2390 = vst.msk [vmem:[#allocation4 + $0x20] sm:$0xff] %vm2385, %v2346
      %2391 = vst.msk [vmem:[#allocation4 + $0x28] sm:$0xff] %vm2385, %v2348
      %2392 = vst.msk [vmem:[#allocation4 + $0x30] sm:$0xff] %vm2385, %v2350
      %2393 = vst.msk [vmem:[#allocation4 + $0x38] sm:$0xff] %vm2385, %v2352
      %2394 = vst.msk [vmem:[#allocation4 + $0x40] sm:$0xff] %vm2385, %v2354
      %2395 = vst.msk [vmem:[#allocation4 + $0x48] sm:$0xff] %vm2385, %v2356
      %2396 = vst.msk [vmem:[#allocation4 + $0x50] sm:$0xff] %vm2385, %v2358
      %2397 = vst.msk [vmem:[#allocation4 + $0x58] sm:$0xff] %vm2385, %v2360
      %2398 = vst.msk [vmem:[#allocation4 + $0x60] sm:$0xff] %vm2385, %v2362
      %2399 = vst.msk [vmem:[#allocation4 + $0x68] sm:$0xff] %vm2385, %v2364
      %2400 = vst.msk [vmem:[#allocation4 + $0x70] sm:$0xff] %vm2385, %v2366
      %2401 = vst.msk [vmem:[#allocation4 + $0x78] sm:$0xff] %vm2385, %v2368
      %s2402 = scalar_lea.vmem [#allocation3], 48
      %v2403 = vld [vmem:[%s2402] sm:$0xff]
      %v2404 = vld [vmem:[%s2402 + $0x8] sm:$0xff]
      %v2405 = vld [vmem:[%s2402 + $0x18] sm:$0xff]
      %v2406 = vld [vmem:[%s2402 + $0x20] sm:$0xff]
      %v2407 = vld [vmem:[%s2402 + $0x30] sm:$0xff]
      %v2408 = vld [vmem:[%s2402 + $0x38] sm:$0xff]
      %v2409 = vld [vmem:[%s2402 + $0x48] sm:$0xff]
      %v2410 = vld [vmem:[%s2402 + $0x50] sm:$0xff]
      %v2411 = vld [vmem:[%s2402 + $0x60] sm:$0xff]
      %v2412 = vld [vmem:[%s2402 + $0x68] sm:$0xff]
      %v2413 = vld [vmem:[%s2402 + $0x78] sm:$0xff]
      %v2414 = vld [vmem:[%s2402 + $0x80] sm:$0xff]
      %v2415 = vld [vmem:[%s2402 + $0x90] sm:$0xff]
      %v2416 = vld [vmem:[%s2402 + $0x98] sm:$0xff]
      %v2417 = vld [vmem:[%s2402 + $0xa8] sm:$0xff]
      %v2418 = vld [vmem:[%s2402 + $0xb0] sm:$0xff]
      %v2419 = vld [vmem:[%s2402 + $0xc0] sm:$0xff]
      %v2420 = vld [vmem:[%s2402 + $0xc8] sm:$0xff]
      %v2421 = vld [vmem:[%s2402 + $0xd8] sm:$0xff]
      %v2422 = vld [vmem:[%s2402 + $0xe0] sm:$0xff]
      %v2423 = vld [vmem:[%s2402 + $0xf0] sm:$0xff]
      %v2424 = vld [vmem:[%s2402 + $0xf8] sm:$0xff]
      %v2425 = vld [vmem:[%s2402 + $0x108] sm:$0xff]
      %v2426 = vld [vmem:[%s2402 + $0x110] sm:$0xff]
      %v2427 = vld [vmem:[%s2402 + $0x120] sm:$0xff]
      %v2428 = vld [vmem:[%s2402 + $0x128] sm:$0xff]
      %v2429 = vld [vmem:[%s2402 + $0x138] sm:$0xff]
      %v2430 = vld [vmem:[%s2402 + $0x140] sm:$0xff]
      %v2431 = vld [vmem:[%s2402 + $0x150] sm:$0xff]
      %v2432 = vld [vmem:[%s2402 + $0x158] sm:$0xff]
      %v2433 = vld [vmem:[%s2402 + $0x168] sm:$0xff]
      %v2434 = vld [vmem:[%s2402 + $0x170] sm:$0xff]
      %v2435 = vpack.c.bf16 %v2404, %v2403
      %v2436 = vpack.c.bf16 %v2406, %v2405
      %v2437 = vpack.c.bf16 %v2408, %v2407
      %v2438 = vpack.c.bf16 %v2410, %v2409
      %v2439 = vpack.c.bf16 %v2412, %v2411
      %v2440 = vpack.c.bf16 %v2414, %v2413
      %v2441 = vpack.c.bf16 %v2416, %v2415
      %v2442 = vpack.c.bf16 %v2418, %v2417
      %v2443 = vpack.c.bf16 %v2420, %v2419
      %v2444 = vpack.c.bf16 %v2422, %v2421
      %v2445 = vpack.c.bf16 %v2424, %v2423
      %v2446 = vpack.c.bf16 %v2426, %v2425
      %v2447 = vpack.c.bf16 %v2428, %v2427
      %v2448 = vpack.c.bf16 %v2430, %v2429
      %v2449 = vpack.c.bf16 %v2432, %v2431
      %v2450 = vpack.c.bf16 %v2434, %v2433
      %2467 = vrot.lane.b32.xlu0 %v2435, 48
      %v2468 = vpop.permute.xlu0 %2467
      %2469 = vrot.lane.b32.xlu0 %v2436, 48
      %v2470 = vpop.permute.xlu0 %2469
      %2471 = vrot.lane.b32.xlu0 %v2437, 48
      %v2472 = vpop.permute.xlu0 %2471
      %2473 = vrot.lane.b32.xlu0 %v2438, 48
      %v2474 = vpop.permute.xlu0 %2473
      %2475 = vrot.lane.b32.xlu0 %v2439, 48
      %v2476 = vpop.permute.xlu0 %2475
      %2477 = vrot.lane.b32.xlu0 %v2440, 48
      %v2478 = vpop.permute.xlu0 %2477
      %2479 = vrot.lane.b32.xlu0 %v2441, 48
      %v2480 = vpop.permute.xlu0 %2479
      %2481 = vrot.lane.b32.xlu0 %v2442, 48
      %v2482 = vpop.permute.xlu0 %2481
      %2483 = vrot.lane.b32.xlu0 %v2443, 48
      %v2484 = vpop.permute.xlu0 %2483
      %2485 = vrot.lane.b32.xlu0 %v2444, 48
      %v2486 = vpop.permute.xlu0 %2485
      %2487 = vrot.lane.b32.xlu0 %v2445, 48
      %v2488 = vpop.permute.xlu0 %2487
      %2489 = vrot.lane.b32.xlu0 %v2446, 48
      %v2490 = vpop.permute.xlu0 %2489
      %2491 = vrot.lane.b32.xlu0 %v2447, 48
      %v2492 = vpop.permute.xlu0 %2491
      %2493 = vrot.lane.b32.xlu0 %v2448, 48
      %v2494 = vpop.permute.xlu0 %2493
      %2495 = vrot.lane.b32.xlu0 %v2449, 48
      %v2496 = vpop.permute.xlu0 %2495
      %2497 = vrot.lane.b32.xlu0 %v2450, 48
      %v2498 = vpop.permute.xlu0 %2497
      %vm2515 = vcmask 458112
      %2516 = vst.msk [vmem:[#allocation4] sm:$0xff] %vm2515, %v2468
      %2517 = vst.msk [vmem:[#allocation4 + $0x8] sm:$0xff] %vm2515, %v2470
      %2518 = vst.msk [vmem:[#allocation4 + $0x10] sm:$0xff] %vm2515, %v2472
      %2519 = vst.msk [vmem:[#allocation4 + $0x18] sm:$0xff] %vm2515, %v2474
      %2520 = vst.msk [vmem:[#allocation4 + $0x20] sm:$0xff] %vm2515, %v2476
      %2521 = vst.msk [vmem:[#allocation4 + $0x28] sm:$0xff] %vm2515, %v2478
      %2522 = vst.msk [vmem:[#allocation4 + $0x30] sm:$0xff] %vm2515, %v2480
      %2523 = vst.msk [vmem:[#allocation4 + $0x38] sm:$0xff] %vm2515, %v2482
      %2524 = vst.msk [vmem:[#allocation4 + $0x40] sm:$0xff] %vm2515, %v2484
      %2525 = vst.msk [vmem:[#allocation4 + $0x48] sm:$0xff] %vm2515, %v2486
      %2526 = vst.msk [vmem:[#allocation4 + $0x50] sm:$0xff] %vm2515, %v2488
      %2527 = vst.msk [vmem:[#allocation4 + $0x58] sm:$0xff] %vm2515, %v2490
      %2528 = vst.msk [vmem:[#allocation4 + $0x60] sm:$0xff] %vm2515, %v2492
      %2529 = vst.msk [vmem:[#allocation4 + $0x68] sm:$0xff] %vm2515, %v2494
      %2530 = vst.msk [vmem:[#allocation4 + $0x70] sm:$0xff] %vm2515, %v2496
      %2531 = vst.msk [vmem:[#allocation4 + $0x78] sm:$0xff] %vm2515, %v2498
      %v2532 = vld [vmem:[%s2402 + $0x1] sm:$0xff]
      %v2533 = vld [vmem:[%s2402 + $0x9] sm:$0xff]
      %v2534 = vld [vmem:[%s2402 + $0x19] sm:$0xff]
      %v2535 = vld [vmem:[%s2402 + $0x21] sm:$0xff]
      %v2536 = vld [vmem:[%s2402 + $0x31] sm:$0xff]
      %v2537 = vld [vmem:[%s2402 + $0x39] sm:$0xff]
      %v2538 = vld [vmem:[%s2402 + $0x49] sm:$0xff]
      %v2539 = vld [vmem:[%s2402 + $0x51] sm:$0xff]
      %v2540 = vld [vmem:[%s2402 + $0x61] sm:$0xff]
      %v2541 = vld [vmem:[%s2402 + $0x69] sm:$0xff]
      %v2542 = vld [vmem:[%s2402 + $0x79] sm:$0xff]
      %v2543 = vld [vmem:[%s2402 + $0x81] sm:$0xff]
      %v2544 = vld [vmem:[%s2402 + $0x91] sm:$0xff]
      %v2545 = vld [vmem:[%s2402 + $0x99] sm:$0xff]
      %v2546 = vld [vmem:[%s2402 + $0xa9] sm:$0xff]
      %v2547 = vld [vmem:[%s2402 + $0xb1] sm:$0xff]
      %v2548 = vld [vmem:[%s2402 + $0xc1] sm:$0xff]
      %v2549 = vld [vmem:[%s2402 + $0xc9] sm:$0xff]
      %v2550 = vld [vmem:[%s2402 + $0xd9] sm:$0xff]
      %v2551 = vld [vmem:[%s2402 + $0xe1] sm:$0xff]
      %v2552 = vld [vmem:[%s2402 + $0xf1] sm:$0xff]
      %v2553 = vld [vmem:[%s2402 + $0xf9] sm:$0xff]
      %v2554 = vld [vmem:[%s2402 + $0x109] sm:$0xff]
      %v2555 = vld [vmem:[%s2402 + $0x111] sm:$0xff]
      %v2556 = vld [vmem:[%s2402 + $0x121] sm:$0xff]
      %v2557 = vld [vmem:[%s2402 + $0x129] sm:$0xff]
      %v2558 = vld [vmem:[%s2402 + $0x139] sm:$0xff]
      %v2559 = vld [vmem:[%s2402 + $0x141] sm:$0xff]
      %v2560 = vld [vmem:[%s2402 + $0x151] sm:$0xff]
      %v2561 = vld [vmem:[%s2402 + $0x159] sm:$0xff]
      %v2562 = vld [vmem:[%s2402 + $0x169] sm:$0xff]
      %v2563 = vld [vmem:[%s2402 + $0x171] sm:$0xff]
      %v2564 = vpack.c.bf16 %v2533, %v2532
      %v2565 = vpack.c.bf16 %v2535, %v2534
      %v2566 = vpack.c.bf16 %v2537, %v2536
      %v2567 = vpack.c.bf16 %v2539, %v2538
      %v2568 = vpack.c.bf16 %v2541, %v2540
      %v2569 = vpack.c.bf16 %v2543, %v2542
      %v2570 = vpack.c.bf16 %v2545, %v2544
      %v2571 = vpack.c.bf16 %v2547, %v2546
      %v2572 = vpack.c.bf16 %v2549, %v2548
      %v2573 = vpack.c.bf16 %v2551, %v2550
      %v2574 = vpack.c.bf16 %v2553, %v2552
      %v2575 = vpack.c.bf16 %v2555, %v2554
      %v2576 = vpack.c.bf16 %v2557, %v2556
      %v2577 = vpack.c.bf16 %v2559, %v2558
      %v2578 = vpack.c.bf16 %v2561, %v2560
      %v2579 = vpack.c.bf16 %v2563, %v2562
      %2596 = vrot.lane.b32.xlu0 %v2564, 56
      %v2597 = vpop.permute.xlu0 %2596
      %2598 = vrot.lane.b32.xlu0 %v2565, 56
      %v2599 = vpop.permute.xlu0 %2598
      %2600 = vrot.lane.b32.xlu0 %v2566, 56
      %v2601 = vpop.permute.xlu0 %2600
      %2602 = vrot.lane.b32.xlu0 %v2567, 56
      %v2603 = vpop.permute.xlu0 %2602
      %2604 = vrot.lane.b32.xlu0 %v2568, 56
      %v2605 = vpop.permute.xlu0 %2604
      %2606 = vrot.lane.b32.xlu0 %v2569, 56
      %v2607 = vpop.permute.xlu0 %2606
      %2608 = vrot.lane.b32.xlu0 %v2570, 56
      %v2609 = vpop.permute.xlu0 %2608
      %2610 = vrot.lane.b32.xlu0 %v2571, 56
      %v2611 = vpop.permute.xlu0 %2610
      %2612 = vrot.lane.b32.xlu0 %v2572, 56
      %v2613 = vpop.permute.xlu0 %2612
      %2614 = vrot.lane.b32.xlu0 %v2573, 56
      %v2615 = vpop.permute.xlu0 %2614
      %2616 = vrot.lane.b32.xlu0 %v2574, 56
      %v2617 = vpop.permute.xlu0 %2616
      %2618 = vrot.lane.b32.xlu0 %v2575, 56
      %v2619 = vpop.permute.xlu0 %2618
      %2620 = vrot.lane.b32.xlu0 %v2576, 56
      %v2621 = vpop.permute.xlu0 %2620
      %2622 = vrot.lane.b32.xlu0 %v2577, 56
      %v2623 = vpop.permute.xlu0 %2622
      %2624 = vrot.lane.b32.xlu0 %v2578, 56
      %v2625 = vpop.permute.xlu0 %2624
      %2626 = vrot.lane.b32.xlu0 %v2579, 56
      %v2627 = vpop.permute.xlu0 %2626
      %vm2644 = vcmask 523712
      %2645 = vst.msk [vmem:[#allocation4] sm:$0xff] %vm2644, %v2597
      %2646 = vst.msk [vmem:[#allocation4 + $0x8] sm:$0xff] %vm2644, %v2599
      %2647 = vst.msk [vmem:[#allocation4 + $0x10] sm:$0xff] %vm2644, %v2601
      %2648 = vst.msk [vmem:[#allocation4 + $0x18] sm:$0xff] %vm2644, %v2603
      %2649 = vst.msk [vmem:[#allocation4 + $0x20] sm:$0xff] %vm2644, %v2605
      %2650 = vst.msk [vmem:[#allocation4 + $0x28] sm:$0xff] %vm2644, %v2607
      %2651 = vst.msk [vmem:[#allocation4 + $0x30] sm:$0xff] %vm2644, %v2609
      %2652 = vst.msk [vmem:[#allocation4 + $0x38] sm:$0xff] %vm2644, %v2611
      %2653 = vst.msk [vmem:[#allocation4 + $0x40] sm:$0xff] %vm2644, %v2613
      %2654 = vst.msk [vmem:[#allocation4 + $0x48] sm:$0xff] %vm2644, %v2615
      %2655 = vst.msk [vmem:[#allocation4 + $0x50] sm:$0xff] %vm2644, %v2617
      %2656 = vst.msk [vmem:[#allocation4 + $0x58] sm:$0xff] %vm2644, %v2619
      %2657 = vst.msk [vmem:[#allocation4 + $0x60] sm:$0xff] %vm2644, %v2621
      %2658 = vst.msk [vmem:[#allocation4 + $0x68] sm:$0xff] %vm2644, %v2623
      %2659 = vst.msk [vmem:[#allocation4 + $0x70] sm:$0xff] %vm2644, %v2625
      %2660 = vst.msk [vmem:[#allocation4 + $0x78] sm:$0xff] %vm2644, %v2627
      %v2661 = vld [vmem:[%s2402 + $0x2] sm:$0xff]
      %v2662 = vld [vmem:[%s2402 + $0xa] sm:$0xff]
      %v2663 = vld [vmem:[%s2402 + $0x1a] sm:$0xff]
      %v2664 = vld [vmem:[%s2402 + $0x22] sm:$0xff]
      %v2665 = vld [vmem:[%s2402 + $0x32] sm:$0xff]
      %v2666 = vld [vmem:[%s2402 + $0x3a] sm:$0xff]
      %v2667 = vld [vmem:[%s2402 + $0x4a] sm:$0xff]
      %v2668 = vld [vmem:[%s2402 + $0x52] sm:$0xff]
      %v2669 = vld [vmem:[%s2402 + $0x62] sm:$0xff]
      %v2670 = vld [vmem:[%s2402 + $0x6a] sm:$0xff]
      %v2671 = vld [vmem:[%s2402 + $0x7a] sm:$0xff]
      %v2672 = vld [vmem:[%s2402 + $0x82] sm:$0xff]
      %v2673 = vld [vmem:[%s2402 + $0x92] sm:$0xff]
      %v2674 = vld [vmem:[%s2402 + $0x9a] sm:$0xff]
      %v2675 = vld [vmem:[%s2402 + $0xaa] sm:$0xff]
      %v2676 = vld [vmem:[%s2402 + $0xb2] sm:$0xff]
      %v2677 = vld [vmem:[%s2402 + $0xc2] sm:$0xff]
      %v2678 = vld [vmem:[%s2402 + $0xca] sm:$0xff]
      %v2679 = vld [vmem:[%s2402 + $0xda] sm:$0xff]
      %v2680 = vld [vmem:[%s2402 + $0xe2] sm:$0xff]
      %v2681 = vld [vmem:[%s2402 + $0xf2] sm:$0xff]
      %v2682 = vld [vmem:[%s2402 + $0xfa] sm:$0xff]
      %v2683 = vld [vmem:[%s2402 + $0x10a] sm:$0xff]
      %v2684 = vld [vmem:[%s2402 + $0x112] sm:$0xff]
      %v2685 = vld [vmem:[%s2402 + $0x122] sm:$0xff]
      %v2686 = vld [vmem:[%s2402 + $0x12a] sm:$0xff]
      %v2687 = vld [vmem:[%s2402 + $0x13a] sm:$0xff]
      %v2688 = vld [vmem:[%s2402 + $0x142] sm:$0xff]
      %v2689 = vld [vmem:[%s2402 + $0x152] sm:$0xff]
      %v2690 = vld [vmem:[%s2402 + $0x15a] sm:$0xff]
      %v2691 = vld [vmem:[%s2402 + $0x16a] sm:$0xff]
      %v2692 = vld [vmem:[%s2402 + $0x172] sm:$0xff]
      %v2693 = vpack.c.bf16 %v2662, %v2661
      %v2694 = vpack.c.bf16 %v2664, %v2663
      %v2695 = vpack.c.bf16 %v2666, %v2665
      %v2696 = vpack.c.bf16 %v2668, %v2667
      %v2697 = vpack.c.bf16 %v2670, %v2669
      %v2698 = vpack.c.bf16 %v2672, %v2671
      %v2699 = vpack.c.bf16 %v2674, %v2673
      %v2700 = vpack.c.bf16 %v2676, %v2675
      %v2701 = vpack.c.bf16 %v2678, %v2677
      %v2702 = vpack.c.bf16 %v2680, %v2679
      %v2703 = vpack.c.bf16 %v2682, %v2681
      %v2704 = vpack.c.bf16 %v2684, %v2683
      %v2705 = vpack.c.bf16 %v2686, %v2685
      %v2706 = vpack.c.bf16 %v2688, %v2687
      %v2707 = vpack.c.bf16 %v2690, %v2689
      %v2708 = vpack.c.bf16 %v2692, %v2691
      %2725 = vrot.lane.b32.xlu0 %v2693, 64
      %v2726 = vpop.permute.xlu0 %2725
      %2727 = vrot.lane.b32.xlu0 %v2694, 64
      %v2728 = vpop.permute.xlu0 %2727
      %2729 = vrot.lane.b32.xlu0 %v2695, 64
      %v2730 = vpop.permute.xlu0 %2729
      %2731 = vrot.lane.b32.xlu0 %v2696, 64
      %v2732 = vpop.permute.xlu0 %2731
      %2733 = vrot.lane.b32.xlu0 %v2697, 64
      %v2734 = vpop.permute.xlu0 %2733
      %2735 = vrot.lane.b32.xlu0 %v2698, 64
      %v2736 = vpop.permute.xlu0 %2735
      %2737 = vrot.lane.b32.xlu0 %v2699, 64
      %v2738 = vpop.permute.xlu0 %2737
      %2739 = vrot.lane.b32.xlu0 %v2700, 64
      %v2740 = vpop.permute.xlu0 %2739
      %2741 = vrot.lane.b32.xlu0 %v2701, 64
      %v2742 = vpop.permute.xlu0 %2741
      %2743 = vrot.lane.b32.xlu0 %v2702, 64
      %v2744 = vpop.permute.xlu0 %2743
      %2745 = vrot.lane.b32.xlu0 %v2703, 64
      %v2746 = vpop.permute.xlu0 %2745
      %2747 = vrot.lane.b32.xlu0 %v2704, 64
      %v2748 = vpop.permute.xlu0 %2747
      %2749 = vrot.lane.b32.xlu0 %v2705, 64
      %v2750 = vpop.permute.xlu0 %2749
      %2751 = vrot.lane.b32.xlu0 %v2706, 64
      %v2752 = vpop.permute.xlu0 %2751
      %2753 = vrot.lane.b32.xlu0 %v2707, 64
      %v2754 = vpop.permute.xlu0 %2753
      %2755 = vrot.lane.b32.xlu0 %v2708, 64
      %v2756 = vpop.permute.xlu0 %2755
      %vm2773 = vcmask 589312
      %2774 = vst.msk [vmem:[#allocation4] sm:$0xff] %vm2773, %v2726
      %2775 = vst.msk [vmem:[#allocation4 + $0x8] sm:$0xff] %vm2773, %v2728
      %2776 = vst.msk [vmem:[#allocation4 + $0x10] sm:$0xff] %vm2773, %v2730
      %2777 = vst.msk [vmem:[#allocation4 + $0x18] sm:$0xff] %vm2773, %v2732
      %2778 = vst.msk [vmem:[#allocation4 + $0x20] sm:$0xff] %vm2773, %v2734
      %2779 = vst.msk [vmem:[#allocation4 + $0x28] sm:$0xff] %vm2773, %v2736
      %2780 = vst.msk [vmem:[#allocation4 + $0x30] sm:$0xff] %vm2773, %v2738
      %2781 = vst.msk [vmem:[#allocation4 + $0x38] sm:$0xff] %vm2773, %v2740
      %2782 = vst.msk [vmem:[#allocation4 + $0x40] sm:$0xff] %vm2773, %v2742
      %2783 = vst.msk [vmem:[#allocation4 + $0x48] sm:$0xff] %vm2773, %v2744
      %2784 = vst.msk [vmem:[#allocation4 + $0x50] sm:$0xff] %vm2773, %v2746
      %2785 = vst.msk [vmem:[#allocation4 + $0x58] sm:$0xff] %vm2773, %v2748
      %2786 = vst.msk [vmem:[#allocation4 + $0x60] sm:$0xff] %vm2773, %v2750
      %2787 = vst.msk [vmem:[#allocation4 + $0x68] sm:$0xff] %vm2773, %v2752
      %2788 = vst.msk [vmem:[#allocation4 + $0x70] sm:$0xff] %vm2773, %v2754
      %2789 = vst.msk [vmem:[#allocation4 + $0x78] sm:$0xff] %vm2773, %v2756
      %v2790 = vld [vmem:[#allocation4] sm:$0xff]
      %v2791 = vld [vmem:[#allocation4 + $0x8] sm:$0xff]
      %v2792 = vld [vmem:[#allocation4 + $0x10] sm:$0xff]
      %v2793 = vld [vmem:[#allocation4 + $0x18] sm:$0xff]
      %v2794 = vld [vmem:[#allocation4 + $0x20] sm:$0xff]
      %v2795 = vld [vmem:[#allocation4 + $0x28] sm:$0xff]
      %v2796 = vld [vmem:[#allocation4 + $0x30] sm:$0xff]
      %v2797 = vld [vmem:[#allocation4 + $0x38] sm:$0xff]
      %v2798 = vld [vmem:[#allocation4 + $0x40] sm:$0xff]
      %v2799 = vld [vmem:[#allocation4 + $0x48] sm:$0xff]
      %v2800 = vld [vmem:[#allocation4 + $0x50] sm:$0xff]
      %v2801 = vld [vmem:[#allocation4 + $0x58] sm:$0xff]
      %v2802 = vld [vmem:[#allocation4 + $0x60] sm:$0xff]
      %v2803 = vld [vmem:[#allocation4 + $0x68] sm:$0xff]
      %v2804 = vld [vmem:[#allocation4 + $0x70] sm:$0xff]
      %v2805 = vld [vmem:[#allocation4 + $0x78] sm:$0xff]
      %v2806 = vld [vmem:[%s3] sm:$0xf]
      %v2807 = vld [vmem:[%s3 + $0x4] sm:$0xf]
      %v2808 = vld [vmem:[%s3 + $0x8] sm:$0xf]
      %v2809 = vld [vmem:[%s3 + $0xc] sm:$0xf]
      %v2810 = vld [vmem:[%s3 + $0x10] sm:$0xf]
      %v2811 = vld [vmem:[%s3 + $0x14] sm:$0xf]
      %v2812 = vld [vmem:[%s3 + $0x18] sm:$0xf]
      %v2813 = vld [vmem:[%s3 + $0x1c] sm:$0xf]
      %v2814 = vld [vmem:[%s3 + $0x20] sm:$0xf]
      %v2815 = vld [vmem:[%s4] sm:$0x1]
      %v2817 = vlaneseq
      %v2818 = vshrl.u32 %v2817, 7
      %v2819 = vsub.s32 0, %v2818
      %v2820 = vrot.slane %v2815, %v2819
      %v2831 = vunpack.c.l.b16 %v2806
      %v2832 = vunpack.c.l.b16 %v2807
      %v2833 = vunpack.c.l.b16 %v2808
      %v2834 = vunpack.c.l.b16 %v2809
      %v2835 = vunpack.c.l.b16 %v2810
      %v2836 = vunpack.c.l.b16 %v2811
      %v2837 = vunpack.c.l.b16 %v2812
      %v2838 = vunpack.c.l.b16 %v2813
      %v2839 = vunpack.c.l.b16 %v2814
      %v2840 = vpack.c.b16 %v2832, %v2831
      %v2841 = vpack.c.b16 %v2834, %v2833
      %v2842 = vpack.c.b16 %v2836, %v2835
      %v2843 = vpack.c.b16 %v2838, %v2837
      %v2844 = vpack.c.b16 %v2839, %v2839
      %vm2849 = vcmask 588800
      %v2851 = vsel %vm2849, %v2790, 0
      %v2854 = vsel %vm2849, %v2791, 0
      %v2857 = vsel %vm2849, %v2792, 0
      %v2860 = vsel %vm2849, %v2793, 0
      %v2863 = vsel %vm2849, %v2794, 0
      %v2866 = vsel %vm2849, %v2795, 0
      %v2869 = vsel %vm2849, %v2796, 0
      %v2872 = vsel %vm2849, %v2797, 0
      %v2875 = vsel %vm2849, %v2798, 0
      %v2878 = vsel %vm2849, %v2799, 0
      %v2881 = vsel %vm2849, %v2800, 0
      %v2884 = vsel %vm2849, %v2801, 0
      %v2887 = vsel %vm2849, %v2802, 0
      %v2890 = vsel %vm2849, %v2803, 0
      %v2893 = vsel %vm2849, %v2804, 0
      %v2896 = vsel %vm2849, %v2805, 0
      %vm2898 = vcmask 1043456
      %v2900 = vsel %vm2898, %v2844, 0
      %2902 = vmatprep.subr.bf16.mxu0 0
      %2903 = vmatpush1.bf16.msra.mxu0 %v2840
      %2904 = vmatprep.subr.bf16.mxu0 0
      %2905 = vmatpush1.bf16.msra.mxu0 %v2841
      %2906 = vmatprep.subr.bf16.mxu0 0
      %2907 = vmatpush1.bf16.msra.mxu0 %v2842
      %2908 = vmatprep.subr.bf16.mxu0 0
      %2909 = vmatpush1.bf16.msra.mxu0 %v2843
      %2910 = vmatprep.subr.bf16.mxu0 0
      %2911 = vmatpush1.bf16.msra.mxu0 %v2900
      %2912 = vmatprep.subr.bf16.mxu0 0
      %2913 = vmatpush1.bf16.msra.mxu0 0
      %2914 = vmatprep.subr.bf16.mxu0 0
      %2915 = vmatpush1.bf16.msra.mxu0 0
      %2916 = vmatprep.subr.bf16.mxu0 0
      %2917 = vmatpush1.bf16.msra.mxu0 0
      %2918 = vmatprep.subr.bf16.mxu0 0
      %2919 = vmatpush1.bf16.msra.mxu0 0
      %2920 = vmatprep.subr.bf16.mxu0 0
      %2921 = vmatpush1.bf16.msra.mxu0 0
      %2922 = vmatprep.subr.bf16.mxu0 0
      %2923 = vmatpush1.bf16.msra.mxu0 0
      %2924 = vmatprep.subr.bf16.mxu0 0
      %2925 = vmatpush1.bf16.msra.mxu0 0
      %2926 = vmatprep.subr.bf16.mxu0 0
      %2927 = vmatpush1.bf16.msra.mxu0 0
      %2928 = vmatprep.subr.bf16.mxu0 0
      %2929 = vmatpush1.bf16.msra.mxu0 0
      %2930 = vmatprep.subr.bf16.mxu0 0
      %2931 = vmatpush1.bf16.msra.mxu0 0
      %2932 = vmatprep.subr.bf16.mxu0 0
      %2933 = vmatpush1.bf16.msra.mxu0 0
      %2934 = vmatprep.mubr.bf16.mxu0 0
      %2935 = vmatmul.mubr.bf16.gmra.mrb[0].mxu0 %v2851
      %v2936 = vpop.f32.mrb[0].mxu0
      %v2937 = vadd.f32 %v2820, %v2936
      %v2938 = vpop.f32.mrb[0].mxu0
      %v2939 = vpop.f32.mrb[0].mxu0
      %v2940 = vadd.f32 %v2820, %v2939
      %v2941 = vpop.f32.mrb[0].mxu0
      %2942 = vmatprep.mubr.bf16.mxu0 0
      %2943 = vmatmul.mubr.bf16.gmra.mrb[0].mxu0 %v2854
      %v2944 = vpop.f32.mrb[0].mxu0
      %v2945 = vadd.f32 %v2820, %v2944
      %v2946 = vpop.f32.mrb[0].mxu0
      %v2947 = vpop.f32.mrb[0].mxu0
      %v2948 = vadd.f32 %v2820, %v2947
      %v2949 = vpop.f32.mrb[0].mxu0
      %2950 = vmatprep.mubr.bf16.mxu0 0
      %2951 = vmatmul.mubr.bf16.gmra.mrb[0].mxu0 %v2857
      %v2952 = vpop.f32.mrb[0].mxu0
      %v2953 = vadd.f32 %v2820, %v2952
      %v2954 = vpop.f32.mrb[0].mxu0
      %v2955 = vpop.f32.mrb[0].mxu0
      %v2956 = vadd.f32 %v2820, %v2955
      %v2957 = vpop.f32.mrb[0].mxu0
      %2958 = vmatprep.mubr.bf16.mxu0 0
      %2959 = vmatmul.mubr.bf16.gmra.mrb[0].mxu0 %v2860
      %v2960 = vpop.f32.mrb[0].mxu0
      %v2961 = vadd.f32 %v2820, %v2960
      %v2962 = vpop.f32.mrb[0].mxu0
      %v2963 = vpop.f32.mrb[0].mxu0
      %v2964 = vadd.f32 %v2820, %v2963
      %v2965 = vpop.f32.mrb[0].mxu0
      %2966 = vmatprep.mubr.bf16.mxu0 0
      %2967 = vmatmul.mubr.bf16.gmra.mrb[0].mxu0 %v2863
      %v2968 = vpop.f32.mrb[0].mxu0
      %v2969 = vadd.f32 %v2820, %v2968
      %v2970 = vpop.f32.mrb[0].mxu0
      %v2971 = vpop.f32.mrb[0].mxu0
      %v2972 = vadd.f32 %v2820, %v2971
      %v2973 = vpop.f32.mrb[0].mxu0
      %2974 = vmatprep.mubr.bf16.mxu0 0
      %2975 = vmatmul.mubr.bf16.gmra.mrb[0].mxu0 %v2866
      %v2976 = vpop.f32.mrb[0].mxu0
      %v2977 = vadd.f32 %v2820, %v2976
      %v2978 = vpop.f32.mrb[0].mxu0
      %v2979 = vpop.f32.mrb[0].mxu0
      %v2980 = vadd.f32 %v2820, %v2979
      %v2981 = vpop.f32.mrb[0].mxu0
      %2982 = vmatprep.mubr.bf16.mxu0 0
      %2983 = vmatmul.mubr.bf16.gmra.mrb[0].mxu0 %v2869
      %v2984 = vpop.f32.mrb[0].mxu0
      %v2985 = vadd.f32 %v2820, %v2984
      %v2986 = vpop.f32.mrb[0].mxu0
      %v2987 = vpop.f32.mrb[0].mxu0
      %v2988 = vadd.f32 %v2820, %v2987
      %v2989 = vpop.f32.mrb[0].mxu0
      %2990 = vmatprep.mubr.bf16.mxu0 0
      %2991 = vmatmul.mubr.bf16.gmra.mrb[0].mxu0 %v2872
      %v2992 = vpop.f32.mrb[0].mxu0
      %v2993 = vadd.f32 %v2820, %v2992
      %v2994 = vpop.f32.mrb[0].mxu0
      %v2995 = vpop.f32.mrb[0].mxu0
      %v2996 = vadd.f32 %v2820, %v2995
      %v2997 = vpop.f32.mrb[0].mxu0
      %2998 = vmatprep.mubr.bf16.mxu0 0
      %2999 = vmatmul.mubr.bf16.gmra.mrb[0].mxu0 %v2875
      %v3000 = vpop.f32.mrb[0].mxu0
      %v3001 = vadd.f32 %v2820, %v3000
      %v3002 = vpop.f32.mrb[0].mxu0
      %v3003 = vpop.f32.mrb[0].mxu0
      %v3004 = vadd.f32 %v2820, %v3003
      %v3005 = vpop.f32.mrb[0].mxu0
      %3006 = vmatprep.mubr.bf16.mxu0 0
      %3007 = vmatmul.mubr.bf16.gmra.mrb[0].mxu0 %v2878
      %v3008 = vpop.f32.mrb[0].mxu0
      %v3009 = vadd.f32 %v2820, %v3008
      %v3010 = vpop.f32.mrb[0].mxu0
      %v3011 = vpop.f32.mrb[0].mxu0
      %v3012 = vadd.f32 %v2820, %v3011
      %v3013 = vpop.f32.mrb[0].mxu0
      %3014 = vmatprep.mubr.bf16.mxu0 0
      %3015 = vmatmul.mubr.bf16.gmra.mrb[0].mxu0 %v2881
      %v3016 = vpop.f32.mrb[0].mxu0
      %v3017 = vadd.f32 %v2820, %v3016
      %v3018 = vpop.f32.mrb[0].mxu0
      %v3019 = vpop.f32.mrb[0].mxu0
      %v3020 = vadd.f32 %v2820, %v3019
      %v3021 = vpop.f32.mrb[0].mxu0
      %3022 = vmatprep.mubr.bf16.mxu0 0
      %3023 = vmatmul.mubr.bf16.gmra.mrb[0].mxu0 %v2884
      %v3024 = vpop.f32.mrb[0].mxu0
      %v3025 = vadd.f32 %v2820, %v3024
      %v3026 = vpop.f32.mrb[0].mxu0
      %v3027 = vpop.f32.mrb[0].mxu0
      %v3028 = vadd.f32 %v2820, %v3027
      %v3029 = vpop.f32.mrb[0].mxu0
      %3030 = vmatprep.mubr.bf16.mxu0 0
      %3031 = vmatmul.mubr.bf16.gmra.mrb[0].mxu0 %v2887
      %v3032 = vpop.f32.mrb[0].mxu0
      %v3033 = vadd.f32 %v2820, %v3032
      %v3034 = vpop.f32.mrb[0].mxu0
      %v3035 = vpop.f32.mrb[0].mxu0
      %v3036 = vadd.f32 %v2820, %v3035
      %v3037 = vpop.f32.mrb[0].mxu0
      %3038 = vmatprep.mubr.bf16.mxu0 0
      %3039 = vmatmul.mubr.bf16.gmra.mrb[0].mxu0 %v2890
      %v3040 = vpop.f32.mrb[0].mxu0
      %v3041 = vadd.f32 %v2820, %v3040
      %v3042 = vpop.f32.mrb[0].mxu0
      %v3043 = vpop.f32.mrb[0].mxu0
      %v3044 = vadd.f32 %v2820, %v3043
      %v3045 = vpop.f32.mrb[0].mxu0
      %3046 = vmatprep.mubr.bf16.mxu0 0
      %3047 = vmatmul.mubr.bf16.gmra.mrb[0].mxu0 %v2893
      %v3048 = vpop.f32.mrb[0].mxu0
      %v3049 = vadd.f32 %v2820, %v3048
      %v3050 = vpop.f32.mrb[0].mxu0
      %v3051 = vpop.f32.mrb[0].mxu0
      %v3052 = vadd.f32 %v2820, %v3051
      %v3053 = vpop.f32.mrb[0].mxu0
      %3054 = vmatprep.mubr.bf16.mxu0 0
      %3055 = vmatmul.mubr.bf16.gmra.mrb[0].mxu0 %v2896
      %v3056 = vpop.f32.mrb[0].mxu0
      %v3057 = vadd.f32 %v2820, %v3056
      %v3058 = vpop.f32.mrb[0].mxu0
      %v3059 = vpop.f32.mrb[0].mxu0
      %v3060 = vadd.f32 %v2820, %v3059
      %v3061 = vpop.f32.mrb[0].mxu0
      %3062 = vdwg.mxu0
      %v3063 = vmax.f32 %v2937, 0.0
      %v3064 = vmax.f32 %v2940, 0.0
      %v3065 = vmax.f32 %v2945, 0.0
      %v3066 = vmax.f32 %v2948, 0.0
      %v3067 = vmax.f32 %v2953, 0.0
      %v3068 = vmax.f32 %v2956, 0.0
      %v3069 = vmax.f32 %v2961, 0.0
      %v3070 = vmax.f32 %v2964, 0.0
      %v3071 = vmax.f32 %v2969, 0.0
      %v3072 = vmax.f32 %v2972, 0.0
      %v3073 = vmax.f32 %v2977, 0.0
      %v3074 = vmax.f32 %v2980, 0.0
      %v3075 = vmax.f32 %v2985, 0.0
      %v3076 = vmax.f32 %v2988, 0.0
      %v3077 = vmax.f32 %v2993, 0.0
      %v3078 = vmax.f32 %v2996, 0.0
      %v3079 = vmax.f32 %v3001, 0.0
      %v3080 = vmax.f32 %v3004, 0.0
      %v3081 = vmax.f32 %v3009, 0.0
      %v3082 = vmax.f32 %v3012, 0.0
      %v3083 = vmax.f32 %v3017, 0.0
      %v3084 = vmax.f32 %v3020, 0.0
      %v3085 = vmax.f32 %v3025, 0.0
      %v3086 = vmax.f32 %v3028, 0.0
      %v3087 = vmax.f32 %v3033, 0.0
      %v3088 = vmax.f32 %v3036, 0.0
      %v3089 = vmax.f32 %v3041, 0.0
      %v3090 = vmax.f32 %v3044, 0.0
      %v3091 = vmax.f32 %v3049, 0.0
      %v3092 = vmax.f32 %v3052, 0.0
      %v3093 = vmax.f32 %v3057, 0.0
      %v3094 = vmax.f32 %v3060, 0.0
      %v3095 = vpack.c.bf16 %v3064, %v3063
      %v3096 = vpack.c.bf16 %v3066, %v3065
      %v3097 = vpack.c.bf16 %v3068, %v3067
      %v3098 = vpack.c.bf16 %v3070, %v3069
      %v3099 = vpack.c.bf16 %v3072, %v3071
      %v3100 = vpack.c.bf16 %v3074, %v3073
      %v3101 = vpack.c.bf16 %v3076, %v3075
      %v3102 = vpack.c.bf16 %v3078, %v3077
      %v3103 = vpack.c.bf16 %v3080, %v3079
      %v3104 = vpack.c.bf16 %v3082, %v3081
      %v3105 = vpack.c.bf16 %v3084, %v3083
      %v3106 = vpack.c.bf16 %v3086, %v3085
      %v3107 = vpack.c.bf16 %v3088, %v3087
      %v3108 = vpack.c.bf16 %v3090, %v3089
      %v3109 = vpack.c.bf16 %v3092, %v3091
      %v3110 = vpack.c.bf16 %v3094, %v3093
      %v3127 = vunpack.c.l.b16 %v3095
      %v3128 = vunpack.c.h.b16 %v3095
      %v3129 = vunpack.c.l.b16 %v3096
      %v3130 = vunpack.c.h.b16 %v3096
      %v3131 = vunpack.c.l.b16 %v3097
      %v3132 = vunpack.c.h.b16 %v3097
      %v3133 = vunpack.c.l.b16 %v3098
      %v3134 = vunpack.c.h.b16 %v3098
      %v3135 = vunpack.c.l.b16 %v3099
      %v3136 = vunpack.c.h.b16 %v3099
      %v3137 = vunpack.c.l.b16 %v3100
      %v3138 = vunpack.c.h.b16 %v3100
      %v3139 = vunpack.c.l.b16 %v3101
      %v3140 = vunpack.c.h.b16 %v3101
      %v3141 = vunpack.c.l.b16 %v3102
      %v3142 = vunpack.c.h.b16 %v3102
      %v3143 = vunpack.c.l.b16 %v3103
      %v3144 = vunpack.c.h.b16 %v3103
      %v3145 = vunpack.c.l.b16 %v3104
      %v3146 = vunpack.c.h.b16 %v3104
      %v3147 = vunpack.c.l.b16 %v3105
      %v3148 = vunpack.c.h.b16 %v3105
      %v3149 = vunpack.c.l.b16 %v3106
      %v3150 = vunpack.c.h.b16 %v3106
      %v3151 = vunpack.c.l.b16 %v3107
      %v3152 = vunpack.c.h.b16 %v3107
      %v3153 = vunpack.c.l.b16 %v3108
      %v3154 = vunpack.c.h.b16 %v3108
      %v3155 = vunpack.c.l.b16 %v3109
      %v3156 = vunpack.c.h.b16 %v3109
      %v3157 = vunpack.c.l.b16 %v3110
      %v3158 = vunpack.c.h.b16 %v3110
      %v3159 = vpack.c.b16 %v3127, %v3127
      %v3160 = vpack.c.b16 %v3128, %v3128
      %v3161 = vpack.c.b16 %v3129, %v3129
      %v3162 = vpack.c.b16 %v3130, %v3130
      %v3163 = vpack.c.b16 %v3131, %v3131
      %v3164 = vpack.c.b16 %v3132, %v3132
      %v3165 = vpack.c.b16 %v3133, %v3133
      %v3166 = vpack.c.b16 %v3134, %v3134
      %v3167 = vpack.c.b16 %v3135, %v3135
      %v3168 = vpack.c.b16 %v3136, %v3136
      %v3169 = vpack.c.b16 %v3137, %v3137
      %v3170 = vpack.c.b16 %v3138, %v3138
      %v3171 = vpack.c.b16 %v3139, %v3139
      %v3172 = vpack.c.b16 %v3140, %v3140
      %v3173 = vpack.c.b16 %v3141, %v3141
      %v3174 = vpack.c.b16 %v3142, %v3142
      %v3175 = vpack.c.b16 %v3143, %v3143
      %v3176 = vpack.c.b16 %v3144, %v3144
      %v3177 = vpack.c.b16 %v3145, %v3145
      %v3178 = vpack.c.b16 %v3146, %v3146
      %v3179 = vpack.c.b16 %v3147, %v3147
      %v3180 = vpack.c.b16 %v3148, %v3148
      %v3181 = vpack.c.b16 %v3149, %v3149
      %v3182 = vpack.c.b16 %v3150, %v3150
      %v3183 = vpack.c.b16 %v3151, %v3151
      %v3184 = vpack.c.b16 %v3152, %v3152
      %v3185 = vpack.c.b16 %v3153, %v3153
      %v3186 = vpack.c.b16 %v3154, %v3154
      %v3187 = vpack.c.b16 %v3155, %v3155
      %v3188 = vpack.c.b16 %v3156, %v3156
      %v3189 = vpack.c.b16 %v3157, %v3157
      %v3190 = vpack.c.b16 %v3158, %v3158
      %3223 = vst [vmem:[%s224] sm:$0xf] %v3159
      %3224 = vst [vmem:[%s224 + $0x4] sm:$0xf] %v3160
      %3225 = vst [vmem:[%s224 + $0x8] sm:$0xf] %v3161
      %3226 = vst [vmem:[%s224 + $0xc] sm:$0xf] %v3162
      %3227 = vst [vmem:[%s224 + $0x10] sm:$0xf] %v3163
      %3228 = vst [vmem:[%s224 + $0x14] sm:$0xf] %v3164
      %3229 = vst [vmem:[%s224 + $0x18] sm:$0xf] %v3165
      %3230 = vst [vmem:[%s224 + $0x1c] sm:$0xf] %v3166
      %3231 = vst [vmem:[%s224 + $0x20] sm:$0xf] %v3167
      %3232 = vst [vmem:[%s224 + $0x24] sm:$0xf] %v3168
      %3233 = vst [vmem:[%s224 + $0x28] sm:$0xf] %v3169
      %3234 = vst [vmem:[%s224 + $0x2c] sm:$0xf] %v3170
      %3235 = vst [vmem:[%s224 + $0x30] sm:$0xf] %v3171
      %3236 = vst [vmem:[%s224 + $0x34] sm:$0xf] %v3172
      %3237 = vst [vmem:[%s224 + $0x38] sm:$0xf] %v3173
      %3238 = vst [vmem:[%s224 + $0x3c] sm:$0xf] %v3174
      %3239 = vst [vmem:[%s224 + $0x40] sm:$0xf] %v3175
      %3240 = vst [vmem:[%s224 + $0x44] sm:$0xf] %v3176
      %3241 = vst [vmem:[%s224 + $0x48] sm:$0xf] %v3177
      %3242 = vst [vmem:[%s224 + $0x4c] sm:$0xf] %v3178
      %3243 = vst [vmem:[%s224 + $0x50] sm:$0xf] %v3179
      %3244 = vst [vmem:[%s224 + $0x54] sm:$0xf] %v3180
      %3245 = vst [vmem:[%s224 + $0x58] sm:$0xf] %v3181
      %3246 = vst [vmem:[%s224 + $0x5c] sm:$0xf] %v3182
      %3247 = vst [vmem:[%s224 + $0x60] sm:$0xf] %v3183
      %3248 = vst [vmem:[%s224 + $0x64] sm:$0xf] %v3184
      %3249 = vst [vmem:[%s224 + $0x68] sm:$0xf] %v3185
      %3250 = vst [vmem:[%s224 + $0x6c] sm:$0xf] %v3186
      %3251 = vst [vmem:[%s224 + $0x70] sm:$0xf] %v3187
      %3252 = vst [vmem:[%s224 + $0x74] sm:$0xf] %v3188
      %3253 = vst [vmem:[%s224 + $0x78] sm:$0xf] %v3189
      %3254 = vst [vmem:[%s224 + $0x7c] sm:$0xf] %v3190
      %p3255 = scmp.lt.s32.totalorder %s16, 1
      %s3256 = scalar_select %p3255, %s16, 1
      %s3257 = smul.addr %s3256, 32
      %s3258 = smul.addr %s3257, 4
      %s3259 = scalar_lea.vmem %s5, %s3258
      // Predicated region
      $region41: #{generalized_rcnn_forward.2} parent=39 // pred_check
        %p3260 = pneg %p144
      $region42: #{generalized_rcnn_forward.2} parent=39 // pred_check_branch
        %3262 = sbr.rel (%p3260) target = $region44
      $region43: #{generalized_rcnn_forward.2} parent=39 // pred_region
        _
      $region44: #{generalized_rcnn_forward.2} parent=39 // pred_fallthru
        _
    $region40: #{generalized_rcnn_forward.2} parent=5 // pred_fallthru
      _
    %p3263 = scmp.le.s32.totalorder 2, %s11
    // Predicated region
    $region45: #{generalized_rcnn_forward.2} parent=5 // pred_check
      %p3264 = pneg %p3263
    $region46: #{generalized_rcnn_forward.2} parent=5 // pred_check_branch
      %3266 = sbr.rel (%p3264) target = $region48
    $region47: #{generalized_rcnn_forward.2} parent=5 // pred_region
      %s3267 = ssub.s32 %s11, 2
      // Predicated region
      $region49: #{generalized_rcnn_forward.2} parent=47 // pred_check
        %p3268 = pneg %p150
      $region50: #{generalized_rcnn_forward.2} parent=47 // pred_check_branch
        %3270 = sbr.rel (%p3268) target = $region52
      $region51: #{generalized_rcnn_forward.2} parent=47 // pred_region
        %p3271 = scmp.lt.s32.totalorder %s17, 1
        %s3272 = scalar_select %p3271, %s17, 1
        %s3273 = smul.addr %s3272, 32
        %s3274 = smul.addr %s3273, 4
        %s3275 = scalar_lea.vmem %s5, %s3274
      $region52: #{generalized_rcnn_forward.2} parent=47 // pred_fallthru
        _
    $region48: #{generalized_rcnn_forward.2} parent=5 // pred_fallthru
      _
  $region6: #{generalized_rcnn_forward.2} parent=0 // loop_footer
    %s15 = sadd.s32 1, %s11
  $region7: #{generalized_rcnn_forward.2} parent=0 // loop_footer_branch
    %10 = sbr.rel target = $region3
  $region8: #{generalized_rcnn_forward.2} parent=0 // loop_exit
    _

</llo_original>
